<compile_context>
chip_gen: v5e
topology: v5e:2x2
jax: 0.10.0
libtpu: 0.0.40
codegen_flags: <defaults>
</compile_context>

<pallas_src>
import functools

import jax
import jax.numpy as jnp
from jax.experimental import pallas as pl
from jax.experimental.pallas import tpu as pltpu

# ----------------------------- configuration --------------------------------
B, S, H = 2, 8, 32          # batch, seq, hidden   (scaled-down BERT: 768 -> 32)
NH, DH = 4, 8               # heads, head_dim
I = 64                      # FFN intermediate
L = 2                       # encoder layers
VOCAB, TYPES, MAXPOS = 100, 2, 16
NEG = -10000.0              # BERT additive mask value
LN_EPS = 1e-12
M = B * S                   # fused token axis
QA_PAD = 128                # lane-dense width for the fused qa head (2 real cols)


# ----------------------------- in-kernel helpers ------------------------------
def _layernorm(y, g, b):
    mu = jnp.mean(y, axis=-1, keepdims=True)
    yc = y - mu
    var = jnp.mean(yc * yc, axis=-1, keepdims=True)
    return yc * jax.lax.rsqrt(var + LN_EPS) * g + b


def _gelu(y):
    # tanh-approximate GELU (synthetic weights, exact erf not required)
    c = 0.7978845608028654
    return 0.5 * y * (1.0 + jnp.tanh(c * (y + 0.044715 * y * y * y)))


# ----------------------------- Pallas kernel ---------------------------------
def _encoder_kernel(x_ref, mask_ref, embg_ref, embb_ref,
                    wqkv_ref, bqkv_ref, wo_ref, bo_ref, ln1g_ref, ln1b_ref,
                    wi_ref, bi_ref, wo2_ref, bo2_ref, ln2g_ref, ln2b_ref,
                    qaw_ref, qab_ref, qa_ref, *, scale):
    """Fused: embedding LN + L x (QKV-proj + MHA + out-proj + LN, FFN + LN)
    + qa_outputs projection."""
    x = _layernorm(x_ref[...], embg_ref[...], embb_ref[...])       # (M, H)
    mask = mask_ref[...]                                            # (B, S)

    for l in range(L):                                              # static unroll
        # ---------------- attention block ----------------
        qkv = jnp.dot(x, wqkv_ref[l], preferred_element_type=jnp.float32)
        qkv = qkv + bqkv_ref[l]                                     # (M, 3H)
        wo = wo_ref[l]                                              # (H, H)

        # Head merge folded into the output projection:
        #   ctx @ wo == sum_h ctx_h @ wo[h*DH:(h+1)*DH, :]
        attn = jnp.zeros((M, H), jnp.float32) + bo_ref[l]
        for h in range(NH):                                         # static unroll
            q_h = qkv[:, h * DH:(h + 1) * DH].reshape(B, S, DH)
            k_h = qkv[:, H + h * DH:H + (h + 1) * DH].reshape(B, S, DH)
            v_h = qkv[:, 2 * H + h * DH:2 * H + (h + 1) * DH].reshape(B, S, DH)
            s = jnp.einsum("bqd,bkd->bqk", q_h, k_h,
                           preferred_element_type=jnp.float32) * scale
            s = s + mask[:, None, :]
            s = s - jnp.max(s, axis=-1, keepdims=True)
            p = jnp.exp(s)
            p = p / jnp.sum(p, axis=-1, keepdims=True)
            ctx_h = jnp.einsum("bqk,bkd->bqd", p, v_h,
                               preferred_element_type=jnp.float32)  # (B, S, DH)
            attn = attn + jnp.dot(ctx_h.reshape(M, DH),
                                  wo[h * DH:(h + 1) * DH, :],
                                  preferred_element_type=jnp.float32)
        x = _layernorm(attn + x, ln1g_ref[l], ln1b_ref[l])

        # ---------------- FFN block ----------------
        hmid = jnp.dot(x, wi_ref[l], preferred_element_type=jnp.float32) + bi_ref[l]
        hmid = _gelu(hmid)
        hout = jnp.dot(hmid, wo2_ref[l], preferred_element_type=jnp.float32) + bo2_ref[l]
        x = _layernorm(hout + x, ln2g_ref[l], ln2b_ref[l])

    # ---------------- qa_outputs (lane-dense padded) ----------------
    qa_ref[...] = (jnp.dot(x, qaw_ref[...], preferred_element_type=jnp.float32)
                   + qab_ref[...])


def pallas_encoder(x_emb, add_mask, emb_g, emb_b, stacked, qa_w_pad, qa_b_pad):
    full2 = lambda a, b: pl.BlockSpec((a, b), lambda i: (0, 0))
    full3 = lambda a, b, c: pl.BlockSpec((a, b, c), lambda i: (0, 0, 0))
    return pl.pallas_call(
        functools.partial(_encoder_kernel, scale=1.0 / (DH ** 0.5)),
        out_shape=jax.ShapeDtypeStruct((M, QA_PAD), jnp.float32),
        grid=(1,),
        in_specs=[
            full2(M, H),                 # x (post-embedding sum, pre-LN)
            full2(B, S),                 # additive attention mask
            full2(1, H), full2(1, H),    # embedding LN gamma / beta
            full3(L, H, 3 * H),          # wqkv
            full3(L, 1, 3 * H),          # bqkv
            full3(L, H, H),              # wo
            full3(L, 1, H),              # bo
            full3(L, 1, H), full3(L, 1, H),   # ln1 gamma / beta
            full3(L, H, I),              # wi
            full3(L, 1, I),              # bi
            full3(L, I, H),              # wo2
            full3(L, 1, H),              # bo2
            full3(L, 1, H), full3(L, 1, H),   # ln2 gamma / beta
            full2(H, QA_PAD),            # padded qa weight
            full2(1, QA_PAD),            # padded qa bias
        ],
        out_specs=full2(M, QA_PAD),
        compiler_params=pltpu.CompilerParams(
            dimension_semantics=("arbitrary",)),
    )(x_emb, add_mask, emb_g, emb_b,
      stacked["wqkv"], stacked["bqkv"], stacked["wo"], stacked["bo"],
      stacked["ln1_g"], stacked["ln1_b"],
      stacked["wi"], stacked["bi"], stacked["wo2"], stacked["bo2"],
      stacked["ln2_g"], stacked["ln2_b"],
      qa_w_pad, qa_b_pad)


# ----------------------------- parameters ------------------------------------
def init_params(key):
    def nrm(k, shape):
        return 0.02 * jax.random.normal(k, shape, jnp.float32)

    keys = jax.random.split(key, 4 + L)
    p = {
        "word_emb": nrm(keys[0], (VOCAB, H)),
        "pos_emb": nrm(keys[1], (MAXPOS, H)),
        "type_emb": nrm(keys[2], (TYPES, H)),
        "emb_ln_g": jnp.ones((H,), jnp.float32),
        "emb_ln_b": jnp.zeros((H,), jnp.float32),
        # qa_outputs = nn.Linear(hidden_size, 2)  (stored as (in, out))
        "qa_w": nrm(keys[3], (H, 2)),
        "qa_b": jnp.zeros((2,), jnp.float32),
        "layers": [],
    }
    for l in range(L):
        lk = jax.random.split(keys[4 + l], 6)
        p["layers"].append({
            "wq": nrm(lk[0], (H, H)), "bq": jnp.zeros((H,), jnp.float32),
            "wk": nrm(lk[1], (H, H)), "bk": jnp.zeros((H,), jnp.float32),
            "wv": nrm(lk[2], (H, H)), "bv": jnp.zeros((H,), jnp.float32),
            "wo": nrm(lk[3], (H, H)), "bo": jnp.zeros((H,), jnp.float32),
            "ln1_g": jnp.ones((H,), jnp.float32), "ln1_b": jnp.zeros((H,), jnp.float32),
            "wi": nrm(lk[4], (H, I)), "bi": jnp.zeros((I,), jnp.float32),
            "wo2": nrm(lk[5], (I, H)), "bo2": jnp.zeros((H,), jnp.float32),
            "ln2_g": jnp.ones((H,), jnp.float32), "ln2_b": jnp.zeros((H,), jnp.float32),
        })
    return p


def _stack_layers(params):
    """Stack per-layer weights along a leading layer axis (constant-folded
    under jit since params are captured constants)."""
    Ls = params["layers"]
    return {
        "wqkv": jnp.stack([jnp.concatenate([lp["wq"], lp["wk"], lp["wv"]], axis=1)
                           for lp in Ls]),                             # (L, H, 3H)
        "bqkv": jnp.stack([jnp.concatenate([lp["bq"], lp["bk"], lp["bv"]])
                           .reshape(1, 3 * H) for lp in Ls]),          # (L, 1, 3H)
        "wo":   jnp.stack([lp["wo"] for lp in Ls]),                    # (L, H, H)
        "bo":   jnp.stack([lp["bo"].reshape(1, H) for lp in Ls]),      # (L, 1, H)
        "ln1_g": jnp.stack([lp["ln1_g"].reshape(1, H) for lp in Ls]),
        "ln1_b": jnp.stack([lp["ln1_b"].reshape(1, H) for lp in Ls]),
        "wi":   jnp.stack([lp["wi"] for lp in Ls]),                    # (L, H, I)
        "bi":   jnp.stack([lp["bi"].reshape(1, I) for lp in Ls]),      # (L, 1, I)
        "wo2":  jnp.stack([lp["wo2"] for lp in Ls]),                   # (L, I, H)
        "bo2":  jnp.stack([lp["bo2"].reshape(1, H) for lp in Ls]),
        "ln2_g": jnp.stack([lp["ln2_g"].reshape(1, H) for lp in Ls]),
        "ln2_b": jnp.stack([lp["ln2_b"].reshape(1, H) for lp in Ls]),
    }


# ----------------------------- forward (Pallas) -------------------------------
def domain_qa_forward(params, input_ids, token_type_ids, attention_mask):
    # --- embeddings (gather is glue; everything after is one Pallas kernel) ---
    we = params["word_emb"][input_ids]                      # (B, S, H)
    pe = params["pos_emb"][jnp.arange(S)][None]             # (1, S, H)
    te = params["type_emb"][token_type_ids]                 # (B, S, H)
    x_emb = (we + pe + te).reshape(M, H)

    # --- additive attention mask, (B, S); broadcast to heads inside the kernel ---
    add_mask = (1.0 - attention_mask.astype(jnp.float32)) * NEG

    # --- lane-dense padded qa head (2 real columns of 128) ---
    qa_w_pad = jnp.zeros((H, QA_PAD), jnp.float32).at[:, :2].set(params["qa_w"])
    qa_b_pad = jnp.zeros((1, QA_PAD), jnp.float32).at[:, :2].set(
        params["qa_b"].reshape(1, 2))

    stacked = _stack_layers(params)
    logits_pad = pallas_encoder(
        x_emb, add_mask,
        params["emb_ln_g"].reshape(1, H), params["emb_ln_b"].reshape(1, H),
        stacked, qa_w_pad, qa_b_pad)

    # --- qa_outputs: Linear(H, 2) -> split(1, dim=-1) -> squeeze(-1) ---
    logits = logits_pad[:, :2].reshape(B, S, 2)
    start_logits = logits[..., 0]                           # (B, S)
    end_logits = logits[..., 1]                             # (B, S)
    return start_logits, end_logits


# ----------------------------- pure-JAX reference -----------------------------
def _ref_forward(params, input_ids, token_type_ids, attention_mask):
    def ln(x, g, b):
        mu = jnp.mean(x, -1, keepdims=True)
        xc = x - mu
        var = jnp.mean(xc * xc, -1, keepdims=True)
        return xc * jax.lax.rsqrt(var + LN_EPS) * g + b

    def gelu(y):
        c = 0.7978845608028654
        return 0.5 * y * (1.0 + jnp.tanh(c * (y + 0.044715 * y ** 3)))

    x = (params["word_emb"][input_ids]
         + params["pos_emb"][jnp.arange(S)][None]
         + params["type_emb"][token_type_ids])              # (B, S, H)
    x = ln(x, params["emb_ln_g"], params["emb_ln_b"])
    ext = ((1.0 - attention_mask.astype(jnp.float32)) * NEG)[:, None, None, :]
    for lp in params["layers"]:
        def heads(t):
            return t.reshape(B, S, NH, DH).transpose(0, 2, 1, 3)
        q, k, v = (heads(x @ lp[w] + lp[b]) for w, b in
                   (("wq", "bq"), ("wk", "bk"), ("wv", "bv")))
        s = jnp.einsum("bhqd,bhkd->bhqk", q, k) / (DH ** 0.5) + ext
        s = s - jnp.max(s, -1, keepdims=True)
        p = jnp.exp(s)
        p = p / jnp.sum(p, -1, keepdims=True)
        ctx = jnp.einsum("bhqk,bhkd->bhqd", p, v).transpose(0, 2, 1, 3).reshape(B, S, H)
        x = ln(ctx @ lp["wo"] + lp["bo"] + x, lp["ln1_g"], lp["ln1_b"])
        h = gelu(x @ lp["wi"] + lp["bi"]) @ lp["wo2"] + lp["bo2"]
        x = ln(h + x, lp["ln2_g"], lp["ln2_b"])
    logits = x @ params["qa_w"] + params["qa_b"]
    return logits[..., 0], logits[..., 1]


# ----------------------------- main -------------------------------------------
if __name__ == "__main__":
    key = jax.random.PRNGKey(0)
    pkey, ikey = jax.random.split(key)
    params = init_params(pkey)

    input_ids = jax.random.randint(ikey, (B, S), 0, VOCAB, dtype=jnp.int32)
    token_type_ids = jnp.concatenate(
        [jnp.zeros((B, S // 2), jnp.int32), jnp.ones((B, S // 2), jnp.int32)], axis=1)
    attention_mask = jnp.array([[1] * S, [1] * (S - 2) + [0] * 2], dtype=jnp.int32)

    fwd = jax.jit(lambda ids, tt, am: domain_qa_forward(params, ids, tt, am))
    start_logits, end_logits = fwd(input_ids, token_type_ids, attention_mask)
    jax.block_until_ready((start_logits, end_logits))

    ref_start, ref_end = _ref_forward(params, input_ids, token_type_ids, attention_mask)
    assert start_logits.shape == (B, S) and end_logits.shape == (B, S)
    assert jnp.allclose(start_logits, ref_start, rtol=1e-4, atol=1e-4)
    assert jnp.allclose(end_logits, ref_end, rtol=1e-4, atol=1e-4)

    print("KERNEL_OK")
</pallas_src>

<mosaic_0001>
module attributes {stable_mosaic.version = 11 : i64} {
  func.func @_encoder_kernel(%arg0: i32, %arg1: memref<16x32xf32, #tpu.memory_space<vmem>>, %arg2: memref<2x8xf32, #tpu.memory_space<vmem>>, %arg3: memref<1x32xf32, #tpu.memory_space<vmem>>, %arg4: memref<1x32xf32, #tpu.memory_space<vmem>>, %arg5: memref<2x32x96xf32, #tpu.memory_space<vmem>>, %arg6: memref<2x1x96xf32, #tpu.memory_space<vmem>>, %arg7: memref<2x32x32xf32, #tpu.memory_space<vmem>>, %arg8: memref<2x1x32xf32, #tpu.memory_space<vmem>>, %arg9: memref<2x1x32xf32, #tpu.memory_space<vmem>>, %arg10: memref<2x1x32xf32, #tpu.memory_space<vmem>>, %arg11: memref<2x32x64xf32, #tpu.memory_space<vmem>>, %arg12: memref<2x1x64xf32, #tpu.memory_space<vmem>>, %arg13: memref<2x64x32xf32, #tpu.memory_space<vmem>>, %arg14: memref<2x1x32xf32, #tpu.memory_space<vmem>>, %arg15: memref<2x1x32xf32, #tpu.memory_space<vmem>>, %arg16: memref<2x1x32xf32, #tpu.memory_space<vmem>>, %arg17: memref<32x128xf32, #tpu.memory_space<vmem>>, %arg18: memref<1x128xf32, #tpu.memory_space<vmem>>, %arg19: memref<16x128xf32, #tpu.memory_space<vmem>>) attributes {dimension_semantics = [#tpu.dimension_semantics<arbitrary>], iteration_bounds = array<i64: 1>, scalar_prefetch = 0 : i64, scratch_operands = 0 : i64, tpu.core_type = #tpu.core_type<tc>, window_params = [{pipeline_mode = #tpu.pipeline_mode<synchronous>, transform_indices = @transform_0, window_bounds = array<i64: 16, 32>}, {pipeline_mode = #tpu.pipeline_mode<synchronous>, transform_indices = @transform_1, window_bounds = array<i64: 2, 8>}, {pipeline_mode = #tpu.pipeline_mode<synchronous>, transform_indices = @transform_2, window_bounds = array<i64: 1, 32>}, {pipeline_mode = #tpu.pipeline_mode<synchronous>, transform_indices = @transform_3, window_bounds = array<i64: 1, 32>}, {pipeline_mode = #tpu.pipeline_mode<synchronous>, transform_indices = @transform_4, window_bounds = array<i64: 2, 32, 96>}, {pipeline_mode = #tpu.pipeline_mode<synchronous>, transform_indices = @transform_5, window_bounds = array<i64: 2, 1, 96>}, {pipeline_mode = #tpu.pipeline_mode<synchronous>, transform_indices = @transform_6, window_bounds = array<i64: 2, 32, 32>}, {pipeline_mode = #tpu.pipeline_mode<synchronous>, transform_indices = @transform_7, window_bounds = array<i64: 2, 1, 32>}, {pipeline_mode = #tpu.pipeline_mode<synchronous>, transform_indices = @transform_8, window_bounds = array<i64: 2, 1, 32>}, {pipeline_mode = #tpu.pipeline_mode<synchronous>, transform_indices = @transform_9, window_bounds = array<i64: 2, 1, 32>}, {pipeline_mode = #tpu.pipeline_mode<synchronous>, transform_indices = @transform_10, window_bounds = array<i64: 2, 32, 64>}, {pipeline_mode = #tpu.pipeline_mode<synchronous>, transform_indices = @transform_11, window_bounds = array<i64: 2, 1, 64>}, {pipeline_mode = #tpu.pipeline_mode<synchronous>, transform_indices = @transform_12, window_bounds = array<i64: 2, 64, 32>}, {pipeline_mode = #tpu.pipeline_mode<synchronous>, transform_indices = @transform_13, window_bounds = array<i64: 2, 1, 32>}, {pipeline_mode = #tpu.pipeline_mode<synchronous>, transform_indices = @transform_14, window_bounds = array<i64: 2, 1, 32>}, {pipeline_mode = #tpu.pipeline_mode<synchronous>, transform_indices = @transform_15, window_bounds = array<i64: 2, 1, 32>}, {pipeline_mode = #tpu.pipeline_mode<synchronous>, transform_indices = @transform_16, window_bounds = array<i64: 32, 128>}, {pipeline_mode = #tpu.pipeline_mode<synchronous>, transform_indices = @transform_17, window_bounds = array<i64: 1, 128>}, {pipeline_mode = #tpu.pipeline_mode<synchronous>, transform_indices = @transform_18, window_bounds = array<i64: 16, 128>}]} {
    %c0 = arith.constant 0 : index
    %c0_0 = arith.constant 0 : index
    %0 = vector.load %arg1[%c0, %c0_0] : memref<16x32xf32, #tpu.memory_space<vmem>>, vector<16x32xf32>
    %c0_1 = arith.constant 0 : index
    %c0_2 = arith.constant 0 : index
    %1 = vector.load %arg3[%c0_1, %c0_2] : memref<1x32xf32, #tpu.memory_space<vmem>>, vector<1x32xf32>
    %c0_3 = arith.constant 0 : index
    %c0_4 = arith.constant 0 : index
    %2 = vector.load %arg4[%c0_3, %c0_4] : memref<1x32xf32, #tpu.memory_space<vmem>>, vector<1x32xf32>
    %cst = arith.constant dense<0.000000e+00> : vector<16xf32>
    %3 = vector.multi_reduction <add>, %0, %cst [1] : vector<16x32xf32> to vector<16xf32>
    %4 = vector.shape_cast %3 : vector<16xf32> to vector<16x1xf32>
    %cst_5 = arith.constant 3.200000e+01 : f32
    %5 = vector.broadcast %cst_5 : f32 to vector<16x1xf32>
    %6 = arith.divf %4, %5 : vector<16x1xf32>
    %7 = vector.broadcast %6 : vector<16x1xf32> to vector<16x32xf32>
    %8 = arith.subf %0, %7 : vector<16x32xf32>
    %9 = arith.mulf %8, %8 : vector<16x32xf32>
    %cst_6 = arith.constant dense<0.000000e+00> : vector<16xf32>
    %10 = vector.multi_reduction <add>, %9, %cst_6 [1] : vector<16x32xf32> to vector<16xf32>
    %11 = vector.shape_cast %10 : vector<16xf32> to vector<16x1xf32>
    %cst_7 = arith.constant 3.200000e+01 : f32
    %12 = vector.broadcast %cst_7 : f32 to vector<16x1xf32>
    %13 = arith.divf %11, %12 : vector<16x1xf32>
    %cst_8 = arith.constant 9.99999996E-13 : f32
    %14 = vector.broadcast %cst_8 : f32 to vector<16x1xf32>
    %15 = arith.addf %13, %14 : vector<16x1xf32>
    %16 = math.rsqrt %15 : vector<16x1xf32>
    %17 = vector.broadcast %16 : vector<16x1xf32> to vector<16x32xf32>
    %18 = arith.mulf %8, %17 : vector<16x32xf32>
    %19 = vector.broadcast %1 : vector<1x32xf32> to vector<16x32xf32>
    %20 = arith.mulf %18, %19 : vector<16x32xf32>
    %21 = vector.broadcast %2 : vector<1x32xf32> to vector<16x32xf32>
    %22 = arith.addf %20, %21 : vector<16x32xf32>
    %c0_9 = arith.constant 0 : index
    %c0_10 = arith.constant 0 : index
    %23 = vector.load %arg2[%c0_9, %c0_10] : memref<2x8xf32, #tpu.memory_space<vmem>>, vector<2x8xf32>
    %c0_11 = arith.constant 0 : index
    %c0_12 = arith.constant 0 : index
    %c0_13 = arith.constant 0 : index
    %24 = vector.load %arg5[%c0_11, %c0_12, %c0_13] : memref<2x32x96xf32, #tpu.memory_space<vmem>>, vector<1x32x96xf32>
    %25 = vector.shape_cast %24 : vector<1x32x96xf32> to vector<32x96xf32>
    %cst_14 = arith.constant dense<0.000000e+00> : vector<16x96xf32>
    %26 = tpu.matmul %22, %25, %cst_14 {dimension_numbers = #tpu.dot_dimension_numbers<[1], [0], [0], [1], [0, 0, 1, 1], [], []>} : vector<16x32xf32>, vector<32x96xf32>, vector<16x96xf32> -> vector<16x96xf32>
    %c0_15 = arith.constant 0 : index
    %c0_16 = arith.constant 0 : index
    %c0_17 = arith.constant 0 : index
    %27 = vector.load %arg6[%c0_15, %c0_16, %c0_17] : memref<2x1x96xf32, #tpu.memory_space<vmem>>, vector<1x1x96xf32>
    %28 = vector.shape_cast %27 : vector<1x1x96xf32> to vector<1x96xf32>
    %29 = vector.broadcast %28 : vector<1x96xf32> to vector<16x96xf32>
    %30 = arith.addf %26, %29 : vector<16x96xf32>
    %c0_18 = arith.constant 0 : index
    %c0_19 = arith.constant 0 : index
    %c0_20 = arith.constant 0 : index
    %31 = vector.load %arg7[%c0_18, %c0_19, %c0_20] : memref<2x32x32xf32, #tpu.memory_space<vmem>>, vector<1x32x32xf32>
    %32 = vector.shape_cast %31 : vector<1x32x32xf32> to vector<32x32xf32>
    %cst_21 = arith.constant 0.000000e+00 : f32
    %33 = vector.broadcast %cst_21 : f32 to vector<16x32xf32>
    %c0_22 = arith.constant 0 : index
    %c0_23 = arith.constant 0 : index
    %c0_24 = arith.constant 0 : index
    %34 = vector.load %arg8[%c0_22, %c0_23, %c0_24] : memref<2x1x32xf32, #tpu.memory_space<vmem>>, vector<1x1x32xf32>
    %35 = vector.shape_cast %34 : vector<1x1x32xf32> to vector<1x32xf32>
    %36 = vector.broadcast %35 : vector<1x32xf32> to vector<16x32xf32>
    %37 = arith.addf %33, %36 : vector<16x32xf32>
    %38 = vector.extract_strided_slice %30 {offsets = [0, 0], sizes = [16, 8], strides = [1, 1]} : vector<16x96xf32> to vector<16x8xf32>
    %39 = vector.shape_cast %38 : vector<16x8xf32> to vector<2x8x8xf32>
    %40 = vector.extract_strided_slice %30 {offsets = [0, 32], sizes = [16, 8], strides = [1, 1]} : vector<16x96xf32> to vector<16x8xf32>
    %41 = vector.shape_cast %40 : vector<16x8xf32> to vector<2x8x8xf32>
    %42 = vector.extract_strided_slice %30 {offsets = [0, 64], sizes = [16, 8], strides = [1, 1]} : vector<16x96xf32> to vector<16x8xf32>
    %43 = vector.shape_cast %42 : vector<16x8xf32> to vector<2x8x8xf32>
    "tpu.trace_start"() <{level = 10 : i32, message = "bqd,bkd->bqk"}> : () -> ()
    %cst_25 = arith.constant dense<0.000000e+00> : vector<2x8x8xf32>
    %44 = tpu.matmul %39, %41, %cst_25 {dimension_numbers = #tpu.dot_dimension_numbers<[2], [2], [1], [1], [0, 0, 0, 1, 1, 1], [0], [0]>} : vector<2x8x8xf32>, vector<2x8x8xf32>, vector<2x8x8xf32> -> vector<2x8x8xf32>
    "tpu.trace_stop"() : () -> ()
    %cst_26 = arith.constant 0.353553385 : f32
    %45 = vector.broadcast %cst_26 : f32 to vector<2x8x8xf32>
    %46 = arith.mulf %44, %45 : vector<2x8x8xf32>
    %47 = vector.shape_cast %23 : vector<2x8xf32> to vector<2x1x8xf32>
    %48 = vector.broadcast %47 : vector<2x1x8xf32> to vector<2x8x8xf32>
    %49 = arith.addf %46, %48 : vector<2x8x8xf32>
    %cst_27 = arith.constant dense<0xFF800000> : vector<2x8xf32>
    %50 = vector.multi_reduction <maximumf>, %49, %cst_27 [2] : vector<2x8x8xf32> to vector<2x8xf32>
    %51 = vector.shape_cast %50 : vector<2x8xf32> to vector<2x8x1xf32>
    %52 = vector.broadcast %51 : vector<2x8x1xf32> to vector<2x8x8xf32>
    %53 = arith.subf %49, %52 : vector<2x8x8xf32>
    %54 = math.exp %53 : vector<2x8x8xf32>
    %cst_28 = arith.constant dense<0.000000e+00> : vector<2x8xf32>
    %55 = vector.multi_reduction <add>, %54, %cst_28 [2] : vector<2x8x8xf32> to vector<2x8xf32>
    %56 = vector.shape_cast %55 : vector<2x8xf32> to vector<2x8x1xf32>
    %57 = vector.broadcast %56 : vector<2x8x1xf32> to vector<2x8x8xf32>
    %58 = arith.divf %54, %57 : vector<2x8x8xf32>
    "tpu.trace_start"() <{level = 10 : i32, message = "bqk,bkd->bqd"}> : () -> ()
    %cst_29 = arith.constant dense<0.000000e+00> : vector<2x8x8xf32>
    %59 = tpu.matmul %58, %43, %cst_29 {dimension_numbers = #tpu.dot_dimension_numbers<[2], [1], [1], [2], [0, 0, 0, 1, 1, 2], [0], [0]>} : vector<2x8x8xf32>, vector<2x8x8xf32>, vector<2x8x8xf32> -> vector<2x8x8xf32>
    "tpu.trace_stop"() : () -> ()
    %60 = vector.shape_cast %59 : vector<2x8x8xf32> to vector<16x8xf32>
    %61 = vector.extract_strided_slice %32 {offsets = [0, 0], sizes = [8, 32], strides = [1, 1]} : vector<32x32xf32> to vector<8x32xf32>
    %cst_30 = arith.constant dense<0.000000e+00> : vector<16x32xf32>
    %62 = tpu.matmul %60, %61, %cst_30 {dimension_numbers = #tpu.dot_dimension_numbers<[1], [0], [0], [1], [0, 0, 1, 1], [], []>} : vector<16x8xf32>, vector<8x32xf32>, vector<16x32xf32> -> vector<16x32xf32>
    %63 = arith.addf %37, %62 : vector<16x32xf32>
    %64 = vector.extract_strided_slice %30 {offsets = [0, 8], sizes = [16, 8], strides = [1, 1]} : vector<16x96xf32> to vector<16x8xf32>
    %65 = vector.shape_cast %64 : vector<16x8xf32> to vector<2x8x8xf32>
    %66 = vector.extract_strided_slice %30 {offsets = [0, 40], sizes = [16, 8], strides = [1, 1]} : vector<16x96xf32> to vector<16x8xf32>
    %67 = vector.shape_cast %66 : vector<16x8xf32> to vector<2x8x8xf32>
    %68 = vector.extract_strided_slice %30 {offsets = [0, 72], sizes = [16, 8], strides = [1, 1]} : vector<16x96xf32> to vector<16x8xf32>
    %69 = vector.shape_cast %68 : vector<16x8xf32> to vector<2x8x8xf32>
    "tpu.trace_start"() <{level = 10 : i32, message = "bqd,bkd->bqk"}> : () -> ()
    %cst_31 = arith.constant dense<0.000000e+00> : vector<2x8x8xf32>
    %70 = tpu.matmul %65, %67, %cst_31 {dimension_numbers = #tpu.dot_dimension_numbers<[2], [2], [1], [1], [0, 0, 0, 1, 1, 1], [0], [0]>} : vector<2x8x8xf32>, vector<2x8x8xf32>, vector<2x8x8xf32> -> vector<2x8x8xf32>
    "tpu.trace_stop"() : () -> ()
    %cst_32 = arith.constant 0.353553385 : f32
    %71 = vector.broadcast %cst_32 : f32 to vector<2x8x8xf32>
    %72 = arith.mulf %70, %71 : vector<2x8x8xf32>
    %73 = vector.shape_cast %23 : vector<2x8xf32> to vector<2x1x8xf32>
    %74 = vector.broadcast %73 : vector<2x1x8xf32> to vector<2x8x8xf32>
    %75 = arith.addf %72, %74 : vector<2x8x8xf32>
    %cst_33 = arith.constant dense<0xFF800000> : vector<2x8xf32>
    %76 = vector.multi_reduction <maximumf>, %75, %cst_33 [2] : vector<2x8x8xf32> to vector<2x8xf32>
    %77 = vector.shape_cast %76 : vector<2x8xf32> to vector<2x8x1xf32>
    %78 = vector.broadcast %77 : vector<2x8x1xf32> to vector<2x8x8xf32>
    %79 = arith.subf %75, %78 : vector<2x8x8xf32>
    %80 = math.exp %79 : vector<2x8x8xf32>
    %cst_34 = arith.constant dense<0.000000e+00> : vector<2x8xf32>
    %81 = vector.multi_reduction <add>, %80, %cst_34 [2] : vector<2x8x8xf32> to vector<2x8xf32>
    %82 = vector.shape_cast %81 : vector<2x8xf32> to vector<2x8x1xf32>
    %83 = vector.broadcast %82 : vector<2x8x1xf32> to vector<2x8x8xf32>
    %84 = arith.divf %80, %83 : vector<2x8x8xf32>
    "tpu.trace_start"() <{level = 10 : i32, message = "bqk,bkd->bqd"}> : () -> ()
    %cst_35 = arith.constant dense<0.000000e+00> : vector<2x8x8xf32>
    %85 = tpu.matmul %84, %69, %cst_35 {dimension_numbers = #tpu.dot_dimension_numbers<[2], [1], [1], [2], [0, 0, 0, 1, 1, 2], [0], [0]>} : vector<2x8x8xf32>, vector<2x8x8xf32>, vector<2x8x8xf32> -> vector<2x8x8xf32>
    "tpu.trace_stop"() : () -> ()
    %86 = vector.shape_cast %85 : vector<2x8x8xf32> to vector<16x8xf32>
    %87 = vector.extract_strided_slice %32 {offsets = [8, 0], sizes = [8, 32], strides = [1, 1]} : vector<32x32xf32> to vector<8x32xf32>
    %cst_36 = arith.constant dense<0.000000e+00> : vector<16x32xf32>
    %88 = tpu.matmul %86, %87, %cst_36 {dimension_numbers = #tpu.dot_dimension_numbers<[1], [0], [0], [1], [0, 0, 1, 1], [], []>} : vector<16x8xf32>, vector<8x32xf32>, vector<16x32xf32> -> vector<16x32xf32>
    %89 = arith.addf %63, %88 : vector<16x32xf32>
    %90 = vector.extract_strided_slice %30 {offsets = [0, 16], sizes = [16, 8], strides = [1, 1]} : vector<16x96xf32> to vector<16x8xf32>
    %91 = vector.shape_cast %90 : vector<16x8xf32> to vector<2x8x8xf32>
    %92 = vector.extract_strided_slice %30 {offsets = [0, 48], sizes = [16, 8], strides = [1, 1]} : vector<16x96xf32> to vector<16x8xf32>
    %93 = vector.shape_cast %92 : vector<16x8xf32> to vector<2x8x8xf32>
    %94 = vector.extract_strided_slice %30 {offsets = [0, 80], sizes = [16, 8], strides = [1, 1]} : vector<16x96xf32> to vector<16x8xf32>
    %95 = vector.shape_cast %94 : vector<16x8xf32> to vector<2x8x8xf32>
    "tpu.trace_start"() <{level = 10 : i32, message = "bqd,bkd->bqk"}> : () -> ()
    %cst_37 = arith.constant dense<0.000000e+00> : vector<2x8x8xf32>
    %96 = tpu.matmul %91, %93, %cst_37 {dimension_numbers = #tpu.dot_dimension_numbers<[2], [2], [1], [1], [0, 0, 0, 1, 1, 1], [0], [0]>} : vector<2x8x8xf32>, vector<2x8x8xf32>, vector<2x8x8xf32> -> vector<2x8x8xf32>
    "tpu.trace_stop"() : () -> ()
    %cst_38 = arith.constant 0.353553385 : f32
    %97 = vector.broadcast %cst_38 : f32 to vector<2x8x8xf32>
    %98 = arith.mulf %96, %97 : vector<2x8x8xf32>
    %99 = vector.shape_cast %23 : vector<2x8xf32> to vector<2x1x8xf32>
    %100 = vector.broadcast %99 : vector<2x1x8xf32> to vector<2x8x8xf32>
    %101 = arith.addf %98, %100 : vector<2x8x8xf32>
    %cst_39 = arith.constant dense<0xFF800000> : vector<2x8xf32>
    %102 = vector.multi_reduction <maximumf>, %101, %cst_39 [2] : vector<2x8x8xf32> to vector<2x8xf32>
    %103 = vector.shape_cast %102 : vector<2x8xf32> to vector<2x8x1xf32>
    %104 = vector.broadcast %103 : vector<2x8x1xf32> to vector<2x8x8xf32>
    %105 = arith.subf %101, %104 : vector<2x8x8xf32>
    %106 = math.exp %105 : vector<2x8x8xf32>
    %cst_40 = arith.constant dense<0.000000e+00> : vector<2x8xf32>
    %107 = vector.multi_reduction <add>, %106, %cst_40 [2] : vector<2x8x8xf32> to vector<2x8xf32>
    %108 = vector.shape_cast %107 : vector<2x8xf32> to vector<2x8x1xf32>
    %109 = vector.broadcast %108 : vector<2x8x1xf32> to vector<2x8x8xf32>
    %110 = arith.divf %106, %109 : vector<2x8x8xf32>
    "tpu.trace_start"() <{level = 10 : i32, message = "bqk,bkd->bqd"}> : () -> ()
    %cst_41 = arith.constant dense<0.000000e+00> : vector<2x8x8xf32>
    %111 = tpu.matmul %110, %95, %cst_41 {dimension_numbers = #tpu.dot_dimension_numbers<[2], [1], [1], [2], [0, 0, 0, 1, 1, 2], [0], [0]>} : vector<2x8x8xf32>, vector<2x8x8xf32>, vector<2x8x8xf32> -> vector<2x8x8xf32>
    "tpu.trace_stop"() : () -> ()
    %112 = vector.shape_cast %111 : vector<2x8x8xf32> to vector<16x8xf32>
    %113 = vector.extract_strided_slice %32 {offsets = [16, 0], sizes = [8, 32], strides = [1, 1]} : vector<32x32xf32> to vector<8x32xf32>
    %cst_42 = arith.constant dense<0.000000e+00> : vector<16x32xf32>
    %114 = tpu.matmul %112, %113, %cst_42 {dimension_numbers = #tpu.dot_dimension_numbers<[1], [0], [0], [1], [0, 0, 1, 1], [], []>} : vector<16x8xf32>, vector<8x32xf32>, vector<16x32xf32> -> vector<16x32xf32>
    %115 = arith.addf %89, %114 : vector<16x32xf32>
    %116 = vector.extract_strided_slice %30 {offsets = [0, 24], sizes = [16, 8], strides = [1, 1]} : vector<16x96xf32> to vector<16x8xf32>
    %117 = vector.shape_cast %116 : vector<16x8xf32> to vector<2x8x8xf32>
    %118 = vector.extract_strided_slice %30 {offsets = [0, 56], sizes = [16, 8], strides = [1, 1]} : vector<16x96xf32> to vector<16x8xf32>
    %119 = vector.shape_cast %118 : vector<16x8xf32> to vector<2x8x8xf32>
    %120 = vector.extract_strided_slice %30 {offsets = [0, 88], sizes = [16, 8], strides = [1, 1]} : vector<16x96xf32> to vector<16x8xf32>
    %121 = vector.shape_cast %120 : vector<16x8xf32> to vector<2x8x8xf32>
    "tpu.trace_start"() <{level = 10 : i32, message = "bqd,bkd->bqk"}> : () -> ()
    %cst_43 = arith.constant dense<0.000000e+00> : vector<2x8x8xf32>
    %122 = tpu.matmul %117, %119, %cst_43 {dimension_numbers = #tpu.dot_dimension_numbers<[2], [2], [1], [1], [0, 0, 0, 1, 1, 1], [0], [0]>} : vector<2x8x8xf32>, vector<2x8x8xf32>, vector<2x8x8xf32> -> vector<2x8x8xf32>
    "tpu.trace_stop"() : () -> ()
    %cst_44 = arith.constant 0.353553385 : f32
    %123 = vector.broadcast %cst_44 : f32 to vector<2x8x8xf32>
    %124 = arith.mulf %122, %123 : vector<2x8x8xf32>
    %125 = vector.shape_cast %23 : vector<2x8xf32> to vector<2x1x8xf32>
    %126 = vector.broadcast %125 : vector<2x1x8xf32> to vector<2x8x8xf32>
    %127 = arith.addf %124, %126 : vector<2x8x8xf32>
    %cst_45 = arith.constant dense<0xFF800000> : vector<2x8xf32>
    %128 = vector.multi_reduction <maximumf>, %127, %cst_45 [2] : vector<2x8x8xf32> to vector<2x8xf32>
    %129 = vector.shape_cast %128 : vector<2x8xf32> to vector<2x8x1xf32>
    %130 = vector.broadcast %129 : vector<2x8x1xf32> to vector<2x8x8xf32>
    %131 = arith.subf %127, %130 : vector<2x8x8xf32>
    %132 = math.exp %131 : vector<2x8x8xf32>
    %cst_46 = arith.constant dense<0.000000e+00> : vector<2x8xf32>
    %133 = vector.multi_reduction <add>, %132, %cst_46 [2] : vector<2x8x8xf32> to vector<2x8xf32>
    %134 = vector.shape_cast %133 : vector<2x8xf32> to vector<2x8x1xf32>
    %135 = vector.broadcast %134 : vector<2x8x1xf32> to vector<2x8x8xf32>
    %136 = arith.divf %132, %135 : vector<2x8x8xf32>
    "tpu.trace_start"() <{level = 10 : i32, message = "bqk,bkd->bqd"}> : () -> ()
    %cst_47 = arith.constant dense<0.000000e+00> : vector<2x8x8xf32>
    %137 = tpu.matmul %136, %121, %cst_47 {dimension_numbers = #tpu.dot_dimension_numbers<[2], [1], [1], [2], [0, 0, 0, 1, 1, 2], [0], [0]>} : vector<2x8x8xf32>, vector<2x8x8xf32>, vector<2x8x8xf32> -> vector<2x8x8xf32>
    "tpu.trace_stop"() : () -> ()
    %138 = vector.shape_cast %137 : vector<2x8x8xf32> to vector<16x8xf32>
    %139 = vector.extract_strided_slice %32 {offsets = [24, 0], sizes = [8, 32], strides = [1, 1]} : vector<32x32xf32> to vector<8x32xf32>
    %cst_48 = arith.constant dense<0.000000e+00> : vector<16x32xf32>
    %140 = tpu.matmul %138, %139, %cst_48 {dimension_numbers = #tpu.dot_dimension_numbers<[1], [0], [0], [1], [0, 0, 1, 1], [], []>} : vector<16x8xf32>, vector<8x32xf32>, vector<16x32xf32> -> vector<16x32xf32>
    %141 = arith.addf %115, %140 : vector<16x32xf32>
    %142 = arith.addf %141, %22 : vector<16x32xf32>
    %c0_49 = arith.constant 0 : index
    %c0_50 = arith.constant 0 : index
    %c0_51 = arith.constant 0 : index
    %143 = vector.load %arg9[%c0_49, %c0_50, %c0_51] : memref<2x1x32xf32, #tpu.memory_space<vmem>>, vector<1x1x32xf32>
    %144 = vector.shape_cast %143 : vector<1x1x32xf32> to vector<1x32xf32>
    %c0_52 = arith.constant 0 : index
    %c0_53 = arith.constant 0 : index
    %c0_54 = arith.constant 0 : index
    %145 = vector.load %arg10[%c0_52, %c0_53, %c0_54] : memref<2x1x32xf32, #tpu.memory_space<vmem>>, vector<1x1x32xf32>
    %146 = vector.shape_cast %145 : vector<1x1x32xf32> to vector<1x32xf32>
    %cst_55 = arith.constant dense<0.000000e+00> : vector<16xf32>
    %147 = vector.multi_reduction <add>, %142, %cst_55 [1] : vector<16x32xf32> to vector<16xf32>
    %148 = vector.shape_cast %147 : vector<16xf32> to vector<16x1xf32>
    %cst_56 = arith.constant 3.200000e+01 : f32
    %149 = vector.broadcast %cst_56 : f32 to vector<16x1xf32>
    %150 = arith.divf %148, %149 : vector<16x1xf32>
    %151 = vector.broadcast %150 : vector<16x1xf32> to vector<16x32xf32>
    %152 = arith.subf %142, %151 : vector<16x32xf32>
    %153 = arith.mulf %152, %152 : vector<16x32xf32>
    %cst_57 = arith.constant dense<0.000000e+00> : vector<16xf32>
    %154 = vector.multi_reduction <add>, %153, %cst_57 [1] : vector<16x32xf32> to vector<16xf32>
    %155 = vector.shape_cast %154 : vector<16xf32> to vector<16x1xf32>
    %cst_58 = arith.constant 3.200000e+01 : f32
    %156 = vector.broadcast %cst_58 : f32 to vector<16x1xf32>
    %157 = arith.divf %155, %156 : vector<16x1xf32>
    %cst_59 = arith.constant 9.99999996E-13 : f32
    %158 = vector.broadcast %cst_59 : f32 to vector<16x1xf32>
    %159 = arith.addf %157, %158 : vector<16x1xf32>
    %160 = math.rsqrt %159 : vector<16x1xf32>
    %161 = vector.broadcast %160 : vector<16x1xf32> to vector<16x32xf32>
    %162 = arith.mulf %152, %161 : vector<16x32xf32>
    %163 = vector.broadcast %144 : vector<1x32xf32> to vector<16x32xf32>
    %164 = arith.mulf %162, %163 : vector<16x32xf32>
    %165 = vector.broadcast %146 : vector<1x32xf32> to vector<16x32xf32>
    %166 = arith.addf %164, %165 : vector<16x32xf32>
    %c0_60 = arith.constant 0 : index
    %c0_61 = arith.constant 0 : index
    %c0_62 = arith.constant 0 : index
    %167 = vector.load %arg11[%c0_60, %c0_61, %c0_62] : memref<2x32x64xf32, #tpu.memory_space<vmem>>, vector<1x32x64xf32>
    %168 = vector.shape_cast %167 : vector<1x32x64xf32> to vector<32x64xf32>
    %cst_63 = arith.constant dense<0.000000e+00> : vector<16x64xf32>
    %169 = tpu.matmul %166, %168, %cst_63 {dimension_numbers = #tpu.dot_dimension_numbers<[1], [0], [0], [1], [0, 0, 1, 1], [], []>} : vector<16x32xf32>, vector<32x64xf32>, vector<16x64xf32> -> vector<16x64xf32>
    %c0_64 = arith.constant 0 : index
    %c0_65 = arith.constant 0 : index
    %c0_66 = arith.constant 0 : index
    %170 = vector.load %arg12[%c0_64, %c0_65, %c0_66] : memref<2x1x64xf32, #tpu.memory_space<vmem>>, vector<1x1x64xf32>
    %171 = vector.shape_cast %170 : vector<1x1x64xf32> to vector<1x64xf32>
    %172 = vector.broadcast %171 : vector<1x64xf32> to vector<16x64xf32>
    %173 = arith.addf %169, %172 : vector<16x64xf32>
    %cst_67 = arith.constant 5.000000e-01 : f32
    %174 = vector.broadcast %cst_67 : f32 to vector<16x64xf32>
    %175 = arith.mulf %174, %173 : vector<16x64xf32>
    %cst_68 = arith.constant 4.471500e-02 : f32
    %176 = vector.broadcast %cst_68 : f32 to vector<16x64xf32>
    %177 = arith.mulf %176, %173 : vector<16x64xf32>
    %178 = arith.mulf %177, %173 : vector<16x64xf32>
    %179 = arith.mulf %178, %173 : vector<16x64xf32>
    %180 = arith.addf %173, %179 : vector<16x64xf32>
    %cst_69 = arith.constant 0.797884583 : f32
    %181 = vector.broadcast %cst_69 : f32 to vector<16x64xf32>
    %182 = arith.mulf %181, %180 : vector<16x64xf32>
    %183 = math.tanh %182 : vector<16x64xf32>
    %cst_70 = arith.constant 1.000000e+00 : f32
    %184 = vector.broadcast %cst_70 : f32 to vector<16x64xf32>
    %185 = arith.addf %184, %183 : vector<16x64xf32>
    %186 = arith.mulf %175, %185 : vector<16x64xf32>
    %c0_71 = arith.constant 0 : index
    %c0_72 = arith.constant 0 : index
    %c0_73 = arith.constant 0 : index
    %187 = vector.load %arg13[%c0_71, %c0_72, %c0_73] : memref<2x64x32xf32, #tpu.memory_space<vmem>>, vector<1x64x32xf32>
    %188 = vector.shape_cast %187 : vector<1x64x32xf32> to vector<64x32xf32>
    %cst_74 = arith.constant dense<0.000000e+00> : vector<16x32xf32>
    %189 = tpu.matmul %186, %188, %cst_74 {dimension_numbers = #tpu.dot_dimension_numbers<[1], [0], [0], [1], [0, 0, 1, 1], [], []>} : vector<16x64xf32>, vector<64x32xf32>, vector<16x32xf32> -> vector<16x32xf32>
    %c0_75 = arith.constant 0 : index
    %c0_76 = arith.constant 0 : index
    %c0_77 = arith.constant 0 : index
    %190 = vector.load %arg14[%c0_75, %c0_76, %c0_77] : memref<2x1x32xf32, #tpu.memory_space<vmem>>, vector<1x1x32xf32>
    %191 = vector.shape_cast %190 : vector<1x1x32xf32> to vector<1x32xf32>
    %192 = vector.broadcast %191 : vector<1x32xf32> to vector<16x32xf32>
    %193 = arith.addf %189, %192 : vector<16x32xf32>
    %194 = arith.addf %193, %166 : vector<16x32xf32>
    %c0_78 = arith.constant 0 : index
    %c0_79 = arith.constant 0 : index
    %c0_80 = arith.constant 0 : index
    %195 = vector.load %arg15[%c0_78, %c0_79, %c0_80] : memref<2x1x32xf32, #tpu.memory_space<vmem>>, vector<1x1x32xf32>
    %196 = vector.shape_cast %195 : vector<1x1x32xf32> to vector<1x32xf32>
    %c0_81 = arith.constant 0 : index
    %c0_82 = arith.constant 0 : index
    %c0_83 = arith.constant 0 : index
    %197 = vector.load %arg16[%c0_81, %c0_82, %c0_83] : memref<2x1x32xf32, #tpu.memory_space<vmem>>, vector<1x1x32xf32>
    %198 = vector.shape_cast %197 : vector<1x1x32xf32> to vector<1x32xf32>
    %cst_84 = arith.constant dense<0.000000e+00> : vector<16xf32>
    %199 = vector.multi_reduction <add>, %194, %cst_84 [1] : vector<16x32xf32> to vector<16xf32>
    %200 = vector.shape_cast %199 : vector<16xf32> to vector<16x1xf32>
    %cst_85 = arith.constant 3.200000e+01 : f32
    %201 = vector.broadcast %cst_85 : f32 to vector<16x1xf32>
    %202 = arith.divf %200, %201 : vector<16x1xf32>
    %203 = vector.broadcast %202 : vector<16x1xf32> to vector<16x32xf32>
    %204 = arith.subf %194, %203 : vector<16x32xf32>
    %205 = arith.mulf %204, %204 : vector<16x32xf32>
    %cst_86 = arith.constant dense<0.000000e+00> : vector<16xf32>
    %206 = vector.multi_reduction <add>, %205, %cst_86 [1] : vector<16x32xf32> to vector<16xf32>
    %207 = vector.shape_cast %206 : vector<16xf32> to vector<16x1xf32>
    %cst_87 = arith.constant 3.200000e+01 : f32
    %208 = vector.broadcast %cst_87 : f32 to vector<16x1xf32>
    %209 = arith.divf %207, %208 : vector<16x1xf32>
    %cst_88 = arith.constant 9.99999996E-13 : f32
    %210 = vector.broadcast %cst_88 : f32 to vector<16x1xf32>
    %211 = arith.addf %209, %210 : vector<16x1xf32>
    %212 = math.rsqrt %211 : vector<16x1xf32>
    %213 = vector.broadcast %212 : vector<16x1xf32> to vector<16x32xf32>
    %214 = arith.mulf %204, %213 : vector<16x32xf32>
    %215 = vector.broadcast %196 : vector<1x32xf32> to vector<16x32xf32>
    %216 = arith.mulf %214, %215 : vector<16x32xf32>
    %217 = vector.broadcast %198 : vector<1x32xf32> to vector<16x32xf32>
    %218 = arith.addf %216, %217 : vector<16x32xf32>
    %c1 = arith.constant 1 : index
    %c0_89 = arith.constant 0 : index
    %c0_90 = arith.constant 0 : index
    %219 = vector.load %arg5[%c1, %c0_89, %c0_90] : memref<2x32x96xf32, #tpu.memory_space<vmem>>, vector<1x32x96xf32>
    %220 = vector.shape_cast %219 : vector<1x32x96xf32> to vector<32x96xf32>
    %cst_91 = arith.constant dense<0.000000e+00> : vector<16x96xf32>
    %221 = tpu.matmul %218, %220, %cst_91 {dimension_numbers = #tpu.dot_dimension_numbers<[1], [0], [0], [1], [0, 0, 1, 1], [], []>} : vector<16x32xf32>, vector<32x96xf32>, vector<16x96xf32> -> vector<16x96xf32>
    %c1_92 = arith.constant 1 : index
    %c0_93 = arith.constant 0 : index
    %c0_94 = arith.constant 0 : index
    %222 = vector.load %arg6[%c1_92, %c0_93, %c0_94] : memref<2x1x96xf32, #tpu.memory_space<vmem>>, vector<1x1x96xf32>
    %223 = vector.shape_cast %222 : vector<1x1x96xf32> to vector<1x96xf32>
    %224 = vector.broadcast %223 : vector<1x96xf32> to vector<16x96xf32>
    %225 = arith.addf %221, %224 : vector<16x96xf32>
    %c1_95 = arith.constant 1 : index
    %c0_96 = arith.constant 0 : index
    %c0_97 = arith.constant 0 : index
    %226 = vector.load %arg7[%c1_95, %c0_96, %c0_97] : memref<2x32x32xf32, #tpu.memory_space<vmem>>, vector<1x32x32xf32>
    %227 = vector.shape_cast %226 : vector<1x32x32xf32> to vector<32x32xf32>
    %cst_98 = arith.constant 0.000000e+00 : f32
    %228 = vector.broadcast %cst_98 : f32 to vector<16x32xf32>
    %c1_99 = arith.constant 1 : index
    %c0_100 = arith.constant 0 : index
    %c0_101 = arith.constant 0 : index
    %229 = vector.load %arg8[%c1_99, %c0_100, %c0_101] : memref<2x1x32xf32, #tpu.memory_space<vmem>>, vector<1x1x32xf32>
    %230 = vector.shape_cast %229 : vector<1x1x32xf32> to vector<1x32xf32>
    %231 = vector.broadcast %230 : vector<1x32xf32> to vector<16x32xf32>
    %232 = arith.addf %228, %231 : vector<16x32xf32>
    %233 = vector.extract_strided_slice %225 {offsets = [0, 0], sizes = [16, 8], strides = [1, 1]} : vector<16x96xf32> to vector<16x8xf32>
    %234 = vector.shape_cast %233 : vector<16x8xf32> to vector<2x8x8xf32>
    %235 = vector.extract_strided_slice %225 {offsets = [0, 32], sizes = [16, 8], strides = [1, 1]} : vector<16x96xf32> to vector<16x8xf32>
    %236 = vector.shape_cast %235 : vector<16x8xf32> to vector<2x8x8xf32>
    %237 = vector.extract_strided_slice %225 {offsets = [0, 64], sizes = [16, 8], strides = [1, 1]} : vector<16x96xf32> to vector<16x8xf32>
    %238 = vector.shape_cast %237 : vector<16x8xf32> to vector<2x8x8xf32>
    "tpu.trace_start"() <{level = 10 : i32, message = "bqd,bkd->bqk"}> : () -> ()
    %cst_102 = arith.constant dense<0.000000e+00> : vector<2x8x8xf32>
    %239 = tpu.matmul %234, %236, %cst_102 {dimension_numbers = #tpu.dot_dimension_numbers<[2], [2], [1], [1], [0, 0, 0, 1, 1, 1], [0], [0]>} : vector<2x8x8xf32>, vector<2x8x8xf32>, vector<2x8x8xf32> -> vector<2x8x8xf32>
    "tpu.trace_stop"() : () -> ()
    %cst_103 = arith.constant 0.353553385 : f32
    %240 = vector.broadcast %cst_103 : f32 to vector<2x8x8xf32>
    %241 = arith.mulf %239, %240 : vector<2x8x8xf32>
    %242 = vector.shape_cast %23 : vector<2x8xf32> to vector<2x1x8xf32>
    %243 = vector.broadcast %242 : vector<2x1x8xf32> to vector<2x8x8xf32>
    %244 = arith.addf %241, %243 : vector<2x8x8xf32>
    %cst_104 = arith.constant dense<0xFF800000> : vector<2x8xf32>
    %245 = vector.multi_reduction <maximumf>, %244, %cst_104 [2] : vector<2x8x8xf32> to vector<2x8xf32>
    %246 = vector.shape_cast %245 : vector<2x8xf32> to vector<2x8x1xf32>
    %247 = vector.broadcast %246 : vector<2x8x1xf32> to vector<2x8x8xf32>
    %248 = arith.subf %244, %247 : vector<2x8x8xf32>
    %249 = math.exp %248 : vector<2x8x8xf32>
    %cst_105 = arith.constant dense<0.000000e+00> : vector<2x8xf32>
    %250 = vector.multi_reduction <add>, %249, %cst_105 [2] : vector<2x8x8xf32> to vector<2x8xf32>
    %251 = vector.shape_cast %250 : vector<2x8xf32> to vector<2x8x1xf32>
    %252 = vector.broadcast %251 : vector<2x8x1xf32> to vector<2x8x8xf32>
    %253 = arith.divf %249, %252 : vector<2x8x8xf32>
    "tpu.trace_start"() <{level = 10 : i32, message = "bqk,bkd->bqd"}> : () -> ()
    %cst_106 = arith.constant dense<0.000000e+00> : vector<2x8x8xf32>
    %254 = tpu.matmul %253, %238, %cst_106 {dimension_numbers = #tpu.dot_dimension_numbers<[2], [1], [1], [2], [0, 0, 0, 1, 1, 2], [0], [0]>} : vector<2x8x8xf32>, vector<2x8x8xf32>, vector<2x8x8xf32> -> vector<2x8x8xf32>
    "tpu.trace_stop"() : () -> ()
    %255 = vector.shape_cast %254 : vector<2x8x8xf32> to vector<16x8xf32>
    %256 = vector.extract_strided_slice %227 {offsets = [0, 0], sizes = [8, 32], strides = [1, 1]} : vector<32x32xf32> to vector<8x32xf32>
    %cst_107 = arith.constant dense<0.000000e+00> : vector<16x32xf32>
    %257 = tpu.matmul %255, %256, %cst_107 {dimension_numbers = #tpu.dot_dimension_numbers<[1], [0], [0], [1], [0, 0, 1, 1], [], []>} : vector<16x8xf32>, vector<8x32xf32>, vector<16x32xf32> -> vector<16x32xf32>
    %258 = arith.addf %232, %257 : vector<16x32xf32>
    %259 = vector.extract_strided_slice %225 {offsets = [0, 8], sizes = [16, 8], strides = [1, 1]} : vector<16x96xf32> to vector<16x8xf32>
    %260 = vector.shape_cast %259 : vector<16x8xf32> to vector<2x8x8xf32>
    %261 = vector.extract_strided_slice %225 {offsets = [0, 40], sizes = [16, 8], strides = [1, 1]} : vector<16x96xf32> to vector<16x8xf32>
    %262 = vector.shape_cast %261 : vector<16x8xf32> to vector<2x8x8xf32>
    %263 = vector.extract_strided_slice %225 {offsets = [0, 72], sizes = [16, 8], strides = [1, 1]} : vector<16x96xf32> to vector<16x8xf32>
    %264 = vector.shape_cast %263 : vector<16x8xf32> to vector<2x8x8xf32>
    "tpu.trace_start"() <{level = 10 : i32, message = "bqd,bkd->bqk"}> : () -> ()
    %cst_108 = arith.constant dense<0.000000e+00> : vector<2x8x8xf32>
    %265 = tpu.matmul %260, %262, %cst_108 {dimension_numbers = #tpu.dot_dimension_numbers<[2], [2], [1], [1], [0, 0, 0, 1, 1, 1], [0], [0]>} : vector<2x8x8xf32>, vector<2x8x8xf32>, vector<2x8x8xf32> -> vector<2x8x8xf32>
    "tpu.trace_stop"() : () -> ()
    %cst_109 = arith.constant 0.353553385 : f32
    %266 = vector.broadcast %cst_109 : f32 to vector<2x8x8xf32>
    %267 = arith.mulf %265, %266 : vector<2x8x8xf32>
    %268 = vector.shape_cast %23 : vector<2x8xf32> to vector<2x1x8xf32>
    %269 = vector.broadcast %268 : vector<2x1x8xf32> to vector<2x8x8xf32>
    %270 = arith.addf %267, %269 : vector<2x8x8xf32>
    %cst_110 = arith.constant dense<0xFF800000> : vector<2x8xf32>
    %271 = vector.multi_reduction <maximumf>, %270, %cst_110 [2] : vector<2x8x8xf32> to vector<2x8xf32>
    %272 = vector.shape_cast %271 : vector<2x8xf32> to vector<2x8x1xf32>
    %273 = vector.broadcast %272 : vector<2x8x1xf32> to vector<2x8x8xf32>
    %274 = arith.subf %270, %273 : vector<2x8x8xf32>
    %275 = math.exp %274 : vector<2x8x8xf32>
    %cst_111 = arith.constant dense<0.000000e+00> : vector<2x8xf32>
    %276 = vector.multi_reduction <add>, %275, %cst_111 [2] : vector<2x8x8xf32> to vector<2x8xf32>
    %277 = vector.shape_cast %276 : vector<2x8xf32> to vector<2x8x1xf32>
    %278 = vector.broadcast %277 : vector<2x8x1xf32> to vector<2x8x8xf32>
    %279 = arith.divf %275, %278 : vector<2x8x8xf32>
    "tpu.trace_start"() <{level = 10 : i32, message = "bqk,bkd->bqd"}> : () -> ()
    %cst_112 = arith.constant dense<0.000000e+00> : vector<2x8x8xf32>
    %280 = tpu.matmul %279, %264, %cst_112 {dimension_numbers = #tpu.dot_dimension_numbers<[2], [1], [1], [2], [0, 0, 0, 1, 1, 2], [0], [0]>} : vector<2x8x8xf32>, vector<2x8x8xf32>, vector<2x8x8xf32> -> vector<2x8x8xf32>
    "tpu.trace_stop"() : () -> ()
    %281 = vector.shape_cast %280 : vector<2x8x8xf32> to vector<16x8xf32>
    %282 = vector.extract_strided_slice %227 {offsets = [8, 0], sizes = [8, 32], strides = [1, 1]} : vector<32x32xf32> to vector<8x32xf32>
    %cst_113 = arith.constant dense<0.000000e+00> : vector<16x32xf32>
    %283 = tpu.matmul %281, %282, %cst_113 {dimension_numbers = #tpu.dot_dimension_numbers<[1], [0], [0], [1], [0, 0, 1, 1], [], []>} : vector<16x8xf32>, vector<8x32xf32>, vector<16x32xf32> -> vector<16x32xf32>
    %284 = arith.addf %258, %283 : vector<16x32xf32>
    %285 = vector.extract_strided_slice %225 {offsets = [0, 16], sizes = [16, 8], strides = [1, 1]} : vector<16x96xf32> to vector<16x8xf32>
    %286 = vector.shape_cast %285 : vector<16x8xf32> to vector<2x8x8xf32>
    %287 = vector.extract_strided_slice %225 {offsets = [0, 48], sizes = [16, 8], strides = [1, 1]} : vector<16x96xf32> to vector<16x8xf32>
    %288 = vector.shape_cast %287 : vector<16x8xf32> to vector<2x8x8xf32>
    %289 = vector.extract_strided_slice %225 {offsets = [0, 80], sizes = [16, 8], strides = [1, 1]} : vector<16x96xf32> to vector<16x8xf32>
    %290 = vector.shape_cast %289 : vector<16x8xf32> to vector<2x8x8xf32>
    "tpu.trace_start"() <{level = 10 : i32, message = "bqd,bkd->bqk"}> : () -> ()
    %cst_114 = arith.constant dense<0.000000e+00> : vector<2x8x8xf32>
    %291 = tpu.matmul %286, %288, %cst_114 {dimension_numbers = #tpu.dot_dimension_numbers<[2], [2], [1], [1], [0, 0, 0, 1, 1, 1], [0], [0]>} : vector<2x8x8xf32>, vector<2x8x8xf32>, vector<2x8x8xf32> -> vector<2x8x8xf32>
    "tpu.trace_stop"() : () -> ()
    %cst_115 = arith.constant 0.353553385 : f32
    %292 = vector.broadcast %cst_115 : f32 to vector<2x8x8xf32>
    %293 = arith.mulf %291, %292 : vector<2x8x8xf32>
    %294 = vector.shape_cast %23 : vector<2x8xf32> to vector<2x1x8xf32>
    %295 = vector.broadcast %294 : vector<2x1x8xf32> to vector<2x8x8xf32>
    %296 = arith.addf %293, %295 : vector<2x8x8xf32>
    %cst_116 = arith.constant dense<0xFF800000> : vector<2x8xf32>
    %297 = vector.multi_reduction <maximumf>, %296, %cst_116 [2] : vector<2x8x8xf32> to vector<2x8xf32>
    %298 = vector.shape_cast %297 : vector<2x8xf32> to vector<2x8x1xf32>
    %299 = vector.broadcast %298 : vector<2x8x1xf32> to vector<2x8x8xf32>
    %300 = arith.subf %296, %299 : vector<2x8x8xf32>
    %301 = math.exp %300 : vector<2x8x8xf32>
    %cst_117 = arith.constant dense<0.000000e+00> : vector<2x8xf32>
    %302 = vector.multi_reduction <add>, %301, %cst_117 [2] : vector<2x8x8xf32> to vector<2x8xf32>
    %303 = vector.shape_cast %302 : vector<2x8xf32> to vector<2x8x1xf32>
    %304 = vector.broadcast %303 : vector<2x8x1xf32> to vector<2x8x8xf32>
    %305 = arith.divf %301, %304 : vector<2x8x8xf32>
    "tpu.trace_start"() <{level = 10 : i32, message = "bqk,bkd->bqd"}> : () -> ()
    %cst_118 = arith.constant dense<0.000000e+00> : vector<2x8x8xf32>
    %306 = tpu.matmul %305, %290, %cst_118 {dimension_numbers = #tpu.dot_dimension_numbers<[2], [1], [1], [2], [0, 0, 0, 1, 1, 2], [0], [0]>} : vector<2x8x8xf32>, vector<2x8x8xf32>, vector<2x8x8xf32> -> vector<2x8x8xf32>
    "tpu.trace_stop"() : () -> ()
    %307 = vector.shape_cast %306 : vector<2x8x8xf32> to vector<16x8xf32>
    %308 = vector.extract_strided_slice %227 {offsets = [16, 0], sizes = [8, 32], strides = [1, 1]} : vector<32x32xf32> to vector<8x32xf32>
    %cst_119 = arith.constant dense<0.000000e+00> : vector<16x32xf32>
    %309 = tpu.matmul %307, %308, %cst_119 {dimension_numbers = #tpu.dot_dimension_numbers<[1], [0], [0], [1], [0, 0, 1, 1], [], []>} : vector<16x8xf32>, vector<8x32xf32>, vector<16x32xf32> -> vector<16x32xf32>
    %310 = arith.addf %284, %309 : vector<16x32xf32>
    %311 = vector.extract_strided_slice %225 {offsets = [0, 24], sizes = [16, 8], strides = [1, 1]} : vector<16x96xf32> to vector<16x8xf32>
    %312 = vector.shape_cast %311 : vector<16x8xf32> to vector<2x8x8xf32>
    %313 = vector.extract_strided_slice %225 {offsets = [0, 56], sizes = [16, 8], strides = [1, 1]} : vector<16x96xf32> to vector<16x8xf32>
    %314 = vector.shape_cast %313 : vector<16x8xf32> to vector<2x8x8xf32>
    %315 = vector.extract_strided_slice %225 {offsets = [0, 88], sizes = [16, 8], strides = [1, 1]} : vector<16x96xf32> to vector<16x8xf32>
    %316 = vector.shape_cast %315 : vector<16x8xf32> to vector<2x8x8xf32>
    "tpu.trace_start"() <{level = 10 : i32, message = "bqd,bkd->bqk"}> : () -> ()
    %cst_120 = arith.constant dense<0.000000e+00> : vector<2x8x8xf32>
    %317 = tpu.matmul %312, %314, %cst_120 {dimension_numbers = #tpu.dot_dimension_numbers<[2], [2], [1], [1], [0, 0, 0, 1, 1, 1], [0], [0]>} : vector<2x8x8xf32>, vector<2x8x8xf32>, vector<2x8x8xf32> -> vector<2x8x8xf32>
    "tpu.trace_stop"() : () -> ()
    %cst_121 = arith.constant 0.353553385 : f32
    %318 = vector.broadcast %cst_121 : f32 to vector<2x8x8xf32>
    %319 = arith.mulf %317, %318 : vector<2x8x8xf32>
    %320 = vector.shape_cast %23 : vector<2x8xf32> to vector<2x1x8xf32>
    %321 = vector.broadcast %320 : vector<2x1x8xf32> to vector<2x8x8xf32>
    %322 = arith.addf %319, %321 : vector<2x8x8xf32>
    %cst_122 = arith.constant dense<0xFF800000> : vector<2x8xf32>
    %323 = vector.multi_reduction <maximumf>, %322, %cst_122 [2] : vector<2x8x8xf32> to vector<2x8xf32>
    %324 = vector.shape_cast %323 : vector<2x8xf32> to vector<2x8x1xf32>
    %325 = vector.broadcast %324 : vector<2x8x1xf32> to vector<2x8x8xf32>
    %326 = arith.subf %322, %325 : vector<2x8x8xf32>
    %327 = math.exp %326 : vector<2x8x8xf32>
    %cst_123 = arith.constant dense<0.000000e+00> : vector<2x8xf32>
    %328 = vector.multi_reduction <add>, %327, %cst_123 [2] : vector<2x8x8xf32> to vector<2x8xf32>
    %329 = vector.shape_cast %328 : vector<2x8xf32> to vector<2x8x1xf32>
    %330 = vector.broadcast %329 : vector<2x8x1xf32> to vector<2x8x8xf32>
    %331 = arith.divf %327, %330 : vector<2x8x8xf32>
    "tpu.trace_start"() <{level = 10 : i32, message = "bqk,bkd->bqd"}> : () -> ()
    %cst_124 = arith.constant dense<0.000000e+00> : vector<2x8x8xf32>
    %332 = tpu.matmul %331, %316, %cst_124 {dimension_numbers = #tpu.dot_dimension_numbers<[2], [1], [1], [2], [0, 0, 0, 1, 1, 2], [0], [0]>} : vector<2x8x8xf32>, vector<2x8x8xf32>, vector<2x8x8xf32> -> vector<2x8x8xf32>
    "tpu.trace_stop"() : () -> ()
    %333 = vector.shape_cast %332 : vector<2x8x8xf32> to vector<16x8xf32>
    %334 = vector.extract_strided_slice %227 {offsets = [24, 0], sizes = [8, 32], strides = [1, 1]} : vector<32x32xf32> to vector<8x32xf32>
    %cst_125 = arith.constant dense<0.000000e+00> : vector<16x32xf32>
    %335 = tpu.matmul %333, %334, %cst_125 {dimension_numbers = #tpu.dot_dimension_numbers<[1], [0], [0], [1], [0, 0, 1, 1], [], []>} : vector<16x8xf32>, vector<8x32xf32>, vector<16x32xf32> -> vector<16x32xf32>
    %336 = arith.addf %310, %335 : vector<16x32xf32>
    %337 = arith.addf %336, %218 : vector<16x32xf32>
    %c1_126 = arith.constant 1 : index
    %c0_127 = arith.constant 0 : index
    %c0_128 = arith.constant 0 : index
    %338 = vector.load %arg9[%c1_126, %c0_127, %c0_128] : memref<2x1x32xf32, #tpu.memory_space<vmem>>, vector<1x1x32xf32>
    %339 = vector.shape_cast %338 : vector<1x1x32xf32> to vector<1x32xf32>
    %c1_129 = arith.constant 1 : index
    %c0_130 = arith.constant 0 : index
    %c0_131 = arith.constant 0 : index
    %340 = vector.load %arg10[%c1_129, %c0_130, %c0_131] : memref<2x1x32xf32, #tpu.memory_space<vmem>>, vector<1x1x32xf32>
    %341 = vector.shape_cast %340 : vector<1x1x32xf32> to vector<1x32xf32>
    %cst_132 = arith.constant dense<0.000000e+00> : vector<16xf32>
    %342 = vector.multi_reduction <add>, %337, %cst_132 [1] : vector<16x32xf32> to vector<16xf32>
    %343 = vector.shape_cast %342 : vector<16xf32> to vector<16x1xf32>
    %cst_133 = arith.constant 3.200000e+01 : f32
    %344 = vector.broadcast %cst_133 : f32 to vector<16x1xf32>
    %345 = arith.divf %343, %344 : vector<16x1xf32>
    %346 = vector.broadcast %345 : vector<16x1xf32> to vector<16x32xf32>
    %347 = arith.subf %337, %346 : vector<16x32xf32>
    %348 = arith.mulf %347, %347 : vector<16x32xf32>
    %cst_134 = arith.constant dense<0.000000e+00> : vector<16xf32>
    %349 = vector.multi_reduction <add>, %348, %cst_134 [1] : vector<16x32xf32> to vector<16xf32>
    %350 = vector.shape_cast %349 : vector<16xf32> to vector<16x1xf32>
    %cst_135 = arith.constant 3.200000e+01 : f32
    %351 = vector.broadcast %cst_135 : f32 to vector<16x1xf32>
    %352 = arith.divf %350, %351 : vector<16x1xf32>
    %cst_136 = arith.constant 9.99999996E-13 : f32
    %353 = vector.broadcast %cst_136 : f32 to vector<16x1xf32>
    %354 = arith.addf %352, %353 : vector<16x1xf32>
    %355 = math.rsqrt %354 : vector<16x1xf32>
    %356 = vector.broadcast %355 : vector<16x1xf32> to vector<16x32xf32>
    %357 = arith.mulf %347, %356 : vector<16x32xf32>
    %358 = vector.broadcast %339 : vector<1x32xf32> to vector<16x32xf32>
    %359 = arith.mulf %357, %358 : vector<16x32xf32>
    %360 = vector.broadcast %341 : vector<1x32xf32> to vector<16x32xf32>
    %361 = arith.addf %359, %360 : vector<16x32xf32>
    %c1_137 = arith.constant 1 : index
    %c0_138 = arith.constant 0 : index
    %c0_139 = arith.constant 0 : index
    %362 = vector.load %arg11[%c1_137, %c0_138, %c0_139] : memref<2x32x64xf32, #tpu.memory_space<vmem>>, vector<1x32x64xf32>
    %363 = vector.shape_cast %362 : vector<1x32x64xf32> to vector<32x64xf32>
    %cst_140 = arith.constant dense<0.000000e+00> : vector<16x64xf32>
    %364 = tpu.matmul %361, %363, %cst_140 {dimension_numbers = #tpu.dot_dimension_numbers<[1], [0], [0], [1], [0, 0, 1, 1], [], []>} : vector<16x32xf32>, vector<32x64xf32>, vector<16x64xf32> -> vector<16x64xf32>
    %c1_141 = arith.constant 1 : index
    %c0_142 = arith.constant 0 : index
    %c0_143 = arith.constant 0 : index
    %365 = vector.load %arg12[%c1_141, %c0_142, %c0_143] : memref<2x1x64xf32, #tpu.memory_space<vmem>>, vector<1x1x64xf32>
    %366 = vector.shape_cast %365 : vector<1x1x64xf32> to vector<1x64xf32>
    %367 = vector.broadcast %366 : vector<1x64xf32> to vector<16x64xf32>
    %368 = arith.addf %364, %367 : vector<16x64xf32>
    %cst_144 = arith.constant 5.000000e-01 : f32
    %369 = vector.broadcast %cst_144 : f32 to vector<16x64xf32>
    %370 = arith.mulf %369, %368 : vector<16x64xf32>
    %cst_145 = arith.constant 4.471500e-02 : f32
    %371 = vector.broadcast %cst_145 : f32 to vector<16x64xf32>
    %372 = arith.mulf %371, %368 : vector<16x64xf32>
    %373 = arith.mulf %372, %368 : vector<16x64xf32>
    %374 = arith.mulf %373, %368 : vector<16x64xf32>
    %375 = arith.addf %368, %374 : vector<16x64xf32>
    %cst_146 = arith.constant 0.797884583 : f32
    %376 = vector.broadcast %cst_146 : f32 to vector<16x64xf32>
    %377 = arith.mulf %376, %375 : vector<16x64xf32>
    %378 = math.tanh %377 : vector<16x64xf32>
    %cst_147 = arith.constant 1.000000e+00 : f32
    %379 = vector.broadcast %cst_147 : f32 to vector<16x64xf32>
    %380 = arith.addf %379, %378 : vector<16x64xf32>
    %381 = arith.mulf %370, %380 : vector<16x64xf32>
    %c1_148 = arith.constant 1 : index
    %c0_149 = arith.constant 0 : index
    %c0_150 = arith.constant 0 : index
    %382 = vector.load %arg13[%c1_148, %c0_149, %c0_150] : memref<2x64x32xf32, #tpu.memory_space<vmem>>, vector<1x64x32xf32>
    %383 = vector.shape_cast %382 : vector<1x64x32xf32> to vector<64x32xf32>
    %cst_151 = arith.constant dense<0.000000e+00> : vector<16x32xf32>
    %384 = tpu.matmul %381, %383, %cst_151 {dimension_numbers = #tpu.dot_dimension_numbers<[1], [0], [0], [1], [0, 0, 1, 1], [], []>} : vector<16x64xf32>, vector<64x32xf32>, vector<16x32xf32> -> vector<16x32xf32>
    %c1_152 = arith.constant 1 : index
    %c0_153 = arith.constant 0 : index
    %c0_154 = arith.constant 0 : index
    %385 = vector.load %arg14[%c1_152, %c0_153, %c0_154] : memref<2x1x32xf32, #tpu.memory_space<vmem>>, vector<1x1x32xf32>
    %386 = vector.shape_cast %385 : vector<1x1x32xf32> to vector<1x32xf32>
    %387 = vector.broadcast %386 : vector<1x32xf32> to vector<16x32xf32>
    %388 = arith.addf %384, %387 : vector<16x32xf32>
    %389 = arith.addf %388, %361 : vector<16x32xf32>
    %c1_155 = arith.constant 1 : index
    %c0_156 = arith.constant 0 : index
    %c0_157 = arith.constant 0 : index
    %390 = vector.load %arg15[%c1_155, %c0_156, %c0_157] : memref<2x1x32xf32, #tpu.memory_space<vmem>>, vector<1x1x32xf32>
    %391 = vector.shape_cast %390 : vector<1x1x32xf32> to vector<1x32xf32>
    %c1_158 = arith.constant 1 : index
    %c0_159 = arith.constant 0 : index
    %c0_160 = arith.constant 0 : index
    %392 = vector.load %arg16[%c1_158, %c0_159, %c0_160] : memref<2x1x32xf32, #tpu.memory_space<vmem>>, vector<1x1x32xf32>
    %393 = vector.shape_cast %392 : vector<1x1x32xf32> to vector<1x32xf32>
    %cst_161 = arith.constant dense<0.000000e+00> : vector<16xf32>
    %394 = vector.multi_reduction <add>, %389, %cst_161 [1] : vector<16x32xf32> to vector<16xf32>
    %395 = vector.shape_cast %394 : vector<16xf32> to vector<16x1xf32>
    %cst_162 = arith.constant 3.200000e+01 : f32
    %396 = vector.broadcast %cst_162 : f32 to vector<16x1xf32>
    %397 = arith.divf %395, %396 : vector<16x1xf32>
    %398 = vector.broadcast %397 : vector<16x1xf32> to vector<16x32xf32>
    %399 = arith.subf %389, %398 : vector<16x32xf32>
    %400 = arith.mulf %399, %399 : vector<16x32xf32>
    %cst_163 = arith.constant dense<0.000000e+00> : vector<16xf32>
    %401 = vector.multi_reduction <add>, %400, %cst_163 [1] : vector<16x32xf32> to vector<16xf32>
    %402 = vector.shape_cast %401 : vector<16xf32> to vector<16x1xf32>
    %cst_164 = arith.constant 3.200000e+01 : f32
    %403 = vector.broadcast %cst_164 : f32 to vector<16x1xf32>
    %404 = arith.divf %402, %403 : vector<16x1xf32>
    %cst_165 = arith.constant 9.99999996E-13 : f32
    %405 = vector.broadcast %cst_165 : f32 to vector<16x1xf32>
    %406 = arith.addf %404, %405 : vector<16x1xf32>
    %407 = math.rsqrt %406 : vector<16x1xf32>
    %408 = vector.broadcast %407 : vector<16x1xf32> to vector<16x32xf32>
    %409 = arith.mulf %399, %408 : vector<16x32xf32>
    %410 = vector.broadcast %391 : vector<1x32xf32> to vector<16x32xf32>
    %411 = arith.mulf %409, %410 : vector<16x32xf32>
    %412 = vector.broadcast %393 : vector<1x32xf32> to vector<16x32xf32>
    %413 = arith.addf %411, %412 : vector<16x32xf32>
    %c0_166 = arith.constant 0 : index
    %c0_167 = arith.constant 0 : index
    %414 = vector.load %arg17[%c0_166, %c0_167] : memref<32x128xf32, #tpu.memory_space<vmem>>, vector<32x128xf32>
    %cst_168 = arith.constant dense<0.000000e+00> : vector<16x128xf32>
    %415 = tpu.matmul %413, %414, %cst_168 {dimension_numbers = #tpu.dot_dimension_numbers<[1], [0], [0], [1], [0, 0, 1, 1], [], []>} : vector<16x32xf32>, vector<32x128xf32>, vector<16x128xf32> -> vector<16x128xf32>
    %c0_169 = arith.constant 0 : index
    %c0_170 = arith.constant 0 : index
    %416 = vector.load %arg18[%c0_169, %c0_170] : memref<1x128xf32, #tpu.memory_space<vmem>>, vector<1x128xf32>
    %417 = vector.broadcast %416 : vector<1x128xf32> to vector<16x128xf32>
    %418 = arith.addf %415, %417 : vector<16x128xf32>
    %c0_171 = arith.constant 0 : index
    %c0_172 = arith.constant 0 : index
    %419 = vector.load %arg19[%c0_171, %c0_172] : memref<16x128xf32, #tpu.memory_space<vmem>>, vector<16x128xf32>
    tpu.vector_store %arg19[%c0_171, %c0_172], %418 {strides = array<i32>} : memref<16x128xf32, #tpu.memory_space<vmem>>, vector<16x128xf32>,
    return
  }
  func.func @transform_0(%arg0: i32) -> (i32, i32) {
    %c0_i32 = arith.constant 0 : i32
    %c0_i32_0 = arith.constant 0 : i32
    %c0_i32_1 = arith.constant 0 : i32
    return %c0_i32, %c0_i32_0 : i32, i32
  }
  func.func @transform_1(%arg0: i32) -> (i32, i32) {
    %c0_i32 = arith.constant 0 : i32
    %c0_i32_0 = arith.constant 0 : i32
    %c0_i32_1 = arith.constant 0 : i32
    return %c0_i32, %c0_i32_0 : i32, i32
  }
  func.func @transform_2(%arg0: i32) -> (i32, i32) {
    %c0_i32 = arith.constant 0 : i32
    %c0_i32_0 = arith.constant 0 : i32
    %c0_i32_1 = arith.constant 0 : i32
    return %c0_i32, %c0_i32_0 : i32, i32
  }
  func.func @transform_3(%arg0: i32) -> (i32, i32) {
    %c0_i32 = arith.constant 0 : i32
    %c0_i32_0 = arith.constant 0 : i32
    %c0_i32_1 = arith.constant 0 : i32
    return %c0_i32, %c0_i32_0 : i32, i32
  }
  func.func @transform_4(%arg0: i32) -> (i32, i32, i32) {
    %c0_i32 = arith.constant 0 : i32
    %c0_i32_0 = arith.constant 0 : i32
    %c0_i32_1 = arith.constant 0 : i32
    %c0_i32_2 = arith.constant 0 : i32
    return %c0_i32, %c0_i32_0, %c0_i32_1 : i32, i32, i32
  }
  func.func @transform_5(%arg0: i32) -> (i32, i32, i32) {
    %c0_i32 = arith.constant 0 : i32
    %c0_i32_0 = arith.constant 0 : i32
    %c0_i32_1 = arith.constant 0 : i32
    %c0_i32_2 = arith.constant 0 : i32
    return %c0_i32, %c0_i32_0, %c0_i32_1 : i32, i32, i32
  }
  func.func @transform_6(%arg0: i32) -> (i32, i32, i32) {
    %c0_i32 = arith.constant 0 : i32
    %c0_i32_0 = arith.constant 0 : i32
    %c0_i32_1 = arith.constant 0 : i32
    %c0_i32_2 = arith.constant 0 : i32
    return %c0_i32, %c0_i32_0, %c0_i32_1 : i32, i32, i32
  }
  func.func @transform_7(%arg0: i32) -> (i32, i32, i32) {
    %c0_i32 = arith.constant 0 : i32
    %c0_i32_0 = arith.constant 0 : i32
    %c0_i32_1 = arith.constant 0 : i32
    %c0_i32_2 = arith.constant 0 : i32
    return %c0_i32, %c0_i32_0, %c0_i32_1 : i32, i32, i32
  }
  func.func @transform_8(%arg0: i32) -> (i32, i32, i32) {
    %c0_i32 = arith.constant 0 : i32
    %c0_i32_0 = arith.constant 0 : i32
    %c0_i32_1 = arith.constant 0 : i32
    %c0_i32_2 = arith.constant 0 : i32
    return %c0_i32, %c0_i32_0, %c0_i32_1 : i32, i32, i32
  }
  func.func @transform_9(%arg0: i32) -> (i32, i32, i32) {
    %c0_i32 = arith.constant 0 : i32
    %c0_i32_0 = arith.constant 0 : i32
    %c0_i32_1 = arith.constant 0 : i32
    %c0_i32_2 = arith.constant 0 : i32
    return %c0_i32, %c0_i32_0, %c0_i32_1 : i32, i32, i32
  }
  func.func @transform_10(%arg0: i32) -> (i32, i32, i32) {
    %c0_i32 = arith.constant 0 : i32
    %c0_i32_0 = arith.constant 0 : i32
    %c0_i32_1 = arith.constant 0 : i32
    %c0_i32_2 = arith.constant 0 : i32
    return %c0_i32, %c0_i32_0, %c0_i32_1 : i32, i32, i32
  }
  func.func @transform_11(%arg0: i32) -> (i32, i32, i32) {
    %c0_i32 = arith.constant 0 : i32
    %c0_i32_0 = arith.constant 0 : i32
    %c0_i32_1 = arith.constant 0 : i32
    %c0_i32_2 = arith.constant 0 : i32
    return %c0_i32, %c0_i32_0, %c0_i32_1 : i32, i32, i32
  }
  func.func @transform_12(%arg0: i32) -> (i32, i32, i32) {
    %c0_i32 = arith.constant 0 : i32
    %c0_i32_0 = arith.constant 0 : i32
    %c0_i32_1 = arith.constant 0 : i32
    %c0_i32_2 = arith.constant 0 : i32
    return %c0_i32, %c0_i32_0, %c0_i32_1 : i32, i32, i32
  }
  func.func @transform_13(%arg0: i32) -> (i32, i32, i32) {
    %c0_i32 = arith.constant 0 : i32
    %c0_i32_0 = arith.constant 0 : i32
    %c0_i32_1 = arith.constant 0 : i32
    %c0_i32_2 = arith.constant 0 : i32
    return %c0_i32, %c0_i32_0, %c0_i32_1 : i32, i32, i32
  }
  func.func @transform_14(%arg0: i32) -> (i32, i32, i32) {
    %c0_i32 = arith.constant 0 : i32
    %c0_i32_0 = arith.constant 0 : i32
    %c0_i32_1 = arith.constant 0 : i32
    %c0_i32_2 = arith.constant 0 : i32
    return %c0_i32, %c0_i32_0, %c0_i32_1 : i32, i32, i32
  }
  func.func @transform_15(%arg0: i32) -> (i32, i32, i32) {
    %c0_i32 = arith.constant 0 : i32
    %c0_i32_0 = arith.constant 0 : i32
    %c0_i32_1 = arith.constant 0 : i32
    %c0_i32_2 = arith.constant 0 : i32
    return %c0_i32, %c0_i32_0, %c0_i32_1 : i32, i32, i32
  }
  func.func @transform_16(%arg0: i32) -> (i32, i32) {
    %c0_i32 = arith.constant 0 : i32
    %c0_i32_0 = arith.constant 0 : i32
    %c0_i32_1 = arith.constant 0 : i32
    return %c0_i32, %c0_i32_0 : i32, i32
  }
  func.func @transform_17(%arg0: i32) -> (i32, i32) {
    %c0_i32 = arith.constant 0 : i32
    %c0_i32_0 = arith.constant 0 : i32
    %c0_i32_1 = arith.constant 0 : i32
    return %c0_i32, %c0_i32_0 : i32, i32
  }
  func.func @transform_18(%arg0: i32) -> (i32, i32) {
    %c0_i32 = arith.constant 0 : i32
    %c0_i32_0 = arith.constant 0 : i32
    %c0_i32_1 = arith.constant 0 : i32
    return %c0_i32, %c0_i32_0 : i32, i32
  }
}

</mosaic_0001>

<llo_original>
// kernel: _lambda_.1
$region0: #{_lambda_.1}
  #allocation0 [shape = 'u32[]', space=smem, size = 0x4, offset = 0x4, fixed_abs, tag = 'smem constant byte address 0x4 - core index']
  #allocation1 [shape = 'u32[72,128]{1,0:T(1,128)}', space=vmem, size = 0x9000, scoped, tag = 'internal scratch']
  %s0 = inlined_call_operand.vmem [shape: f32[16,32], index: 0, kind: input, shape index: {}]
  %s1 = inlined_call_operand.vmem [shape: f32[2,8], index: 1, kind: input, shape index: {}]
  %s2 = inlined_call_operand.vmem [shape: f32[1,32], index: 2, kind: input, shape index: {}]
  %s3 = inlined_call_operand.vmem [shape: f32[1,32], index: 3, kind: input, shape index: {}]
  %s4 = inlined_call_operand.vmem [shape: f32[2,32,96], index: 4, kind: input, shape index: {}]
  %s5 = inlined_call_operand.vmem [shape: f32[2,1,96], index: 5, kind: input, shape index: {}]
  %s6 = inlined_call_operand.vmem [shape: f32[2,32,32], index: 6, kind: input, shape index: {}]
  %s7 = inlined_call_operand.vmem [shape: f32[2,1,32], index: 7, kind: input, shape index: {}, may-alias: {7,9,13,15}]
  %s8 = inlined_call_operand.vmem [shape: f32[2,1,32], index: 8, kind: input, shape index: {}, may-alias: {8,14}]
  %s9 = inlined_call_operand.vmem [shape: f32[2,1,32], index: 9, kind: input, shape index: {}, may-alias: {7,9,13,15}]
  %s10 = inlined_call_operand.vmem [shape: f32[2,32,64], index: 10, kind: input, shape index: {}]
  %s11 = inlined_call_operand.vmem [shape: f32[2,1,64], index: 11, kind: input, shape index: {}]
  %s12 = inlined_call_operand.vmem [shape: f32[2,64,32], index: 12, kind: input, shape index: {}]
  %s13 = inlined_call_operand.vmem [shape: f32[2,1,32], index: 13, kind: input, shape index: {}, may-alias: {7,9,13,15}]
  %s14 = inlined_call_operand.vmem [shape: f32[2,1,32], index: 14, kind: input, shape index: {}, may-alias: {8,14}]
  %s15 = inlined_call_operand.vmem [shape: f32[2,1,32], index: 15, kind: input, shape index: {}, may-alias: {7,9,13,15}]
  %s16 = inlined_call_operand.vmem [shape: f32[32,128], index: 16, kind: input, shape index: {}]
  %s17 = inlined_call_operand.vmem [shape: f32[1,128], index: 17, kind: input, shape index: {}]
  %s18 = inlined_call_operand.vmem [shape: f32[16,128], index: 18, kind: output, shape index: {}]
  %s19 = sld [smem:[#allocation0]]
  $region82: #{_lambda_.1} parent=0
    _
  %s21 = ssub.s32 1, %s19
  %s22 = scalar_select 0, %s21, %s19
  // Predicated region
  $region2: #{_lambda_.1} parent=0 // pred_check
    _
  $region3: #{_lambda_.1} parent=0 // pred_check_branch
    %24 = sbr.rel (0) target = $region5
  $region4: #{_lambda_.1} parent=0 // pred_region
    _
  $region5: #{_lambda_.1} parent=0 // pred_fallthru
    _
  // Predicated region
  $region6: #{_lambda_.1} parent=0 // pred_check
    _
  $region7: #{_lambda_.1} parent=0 // pred_check_branch
    %26 = sbr.rel (0) target = $region9
  $region8: #{_lambda_.1} parent=0 // pred_region
    _
  $region9: #{_lambda_.1} parent=0 // pred_fallthru
    _
  // Predicated region
  $region10: #{_lambda_.1} parent=0 // pred_check
    _
  $region11: #{_lambda_.1} parent=0 // pred_check_branch
    %28 = sbr.rel (0) target = $region13
  $region12: #{_lambda_.1} parent=0 // pred_region
    _
  $region13: #{_lambda_.1} parent=0 // pred_fallthru
    _
  // Predicated region
  $region14: #{_lambda_.1} parent=0 // pred_check
    _
  $region15: #{_lambda_.1} parent=0 // pred_check_branch
    %30 = sbr.rel (0) target = $region17
  $region16: #{_lambda_.1} parent=0 // pred_region
    _
  $region17: #{_lambda_.1} parent=0 // pred_fallthru
    _
  // Predicated region
  $region18: #{_lambda_.1} parent=0 // pred_check
    _
  $region19: #{_lambda_.1} parent=0 // pred_check_branch
    %32 = sbr.rel (0) target = $region21
  $region20: #{_lambda_.1} parent=0 // pred_region
    _
  $region21: #{_lambda_.1} parent=0 // pred_fallthru
    _
  // Predicated region
  $region22: #{_lambda_.1} parent=0 // pred_check
    _
  $region23: #{_lambda_.1} parent=0 // pred_check_branch
    %34 = sbr.rel (0) target = $region25
  $region24: #{_lambda_.1} parent=0 // pred_region
    _
  $region25: #{_lambda_.1} parent=0 // pred_fallthru
    _
  // Predicated region
  $region26: #{_lambda_.1} parent=0 // pred_check
    _
  $region27: #{_lambda_.1} parent=0 // pred_check_branch
    %36 = sbr.rel (0) target = $region29
  $region28: #{_lambda_.1} parent=0 // pred_region
    _
  $region29: #{_lambda_.1} parent=0 // pred_fallthru
    _
  // Predicated region
  $region30: #{_lambda_.1} parent=0 // pred_check
    _
  $region31: #{_lambda_.1} parent=0 // pred_check_branch
    %38 = sbr.rel (0) target = $region33
  $region32: #{_lambda_.1} parent=0 // pred_region
    _
  $region33: #{_lambda_.1} parent=0 // pred_fallthru
    _
  // Predicated region
  $region34: #{_lambda_.1} parent=0 // pred_check
    _
  $region35: #{_lambda_.1} parent=0 // pred_check_branch
    %40 = sbr.rel (0) target = $region37
  $region36: #{_lambda_.1} parent=0 // pred_region
    _
  $region37: #{_lambda_.1} parent=0 // pred_fallthru
    _
  // Predicated region
  $region38: #{_lambda_.1} parent=0 // pred_check
    _
  $region39: #{_lambda_.1} parent=0 // pred_check_branch
    %42 = sbr.rel (0) target = $region41
  $region40: #{_lambda_.1} parent=0 // pred_region
    _
  $region41: #{_lambda_.1} parent=0 // pred_fallthru
    _
  // Predicated region
  $region42: #{_lambda_.1} parent=0 // pred_check
    _
  $region43: #{_lambda_.1} parent=0 // pred_check_branch
    %44 = sbr.rel (0) target = $region45
  $region44: #{_lambda_.1} parent=0 // pred_region
    _
  $region45: #{_lambda_.1} parent=0 // pred_fallthru
    _
  // Predicated region
  $region46: #{_lambda_.1} parent=0 // pred_check
    _
  $region47: #{_lambda_.1} parent=0 // pred_check_branch
    %46 = sbr.rel (0) target = $region49
  $region48: #{_lambda_.1} parent=0 // pred_region
    _
  $region49: #{_lambda_.1} parent=0 // pred_fallthru
    _
  // Predicated region
  $region50: #{_lambda_.1} parent=0 // pred_check
    _
  $region51: #{_lambda_.1} parent=0 // pred_check_branch
    %48 = sbr.rel (0) target = $region53
  $region52: #{_lambda_.1} parent=0 // pred_region
    _
  $region53: #{_lambda_.1} parent=0 // pred_fallthru
    _
  // Predicated region
  $region54: #{_lambda_.1} parent=0 // pred_check
    _
  $region55: #{_lambda_.1} parent=0 // pred_check_branch
    %50 = sbr.rel (0) target = $region57
  $region56: #{_lambda_.1} parent=0 // pred_region
    _
  $region57: #{_lambda_.1} parent=0 // pred_fallthru
    _
  // Predicated region
  $region58: #{_lambda_.1} parent=0 // pred_check
    _
  $region59: #{_lambda_.1} parent=0 // pred_check_branch
    %52 = sbr.rel (0) target = $region61
  $region60: #{_lambda_.1} parent=0 // pred_region
    _
  $region61: #{_lambda_.1} parent=0 // pred_fallthru
    _
  // Predicated region
  $region62: #{_lambda_.1} parent=0 // pred_check
    _
  $region63: #{_lambda_.1} parent=0 // pred_check_branch
    %54 = sbr.rel (0) target = $region65
  $region64: #{_lambda_.1} parent=0 // pred_region
    _
  $region65: #{_lambda_.1} parent=0 // pred_fallthru
    _
  // Predicated region
  $region66: #{_lambda_.1} parent=0 // pred_check
    _
  $region67: #{_lambda_.1} parent=0 // pred_check_branch
    %56 = sbr.rel (0) target = $region69
  $region68: #{_lambda_.1} parent=0 // pred_region
    _
  $region69: #{_lambda_.1} parent=0 // pred_fallthru
    _
  // Predicated region
  $region70: #{_lambda_.1} parent=0 // pred_check
    _
  $region71: #{_lambda_.1} parent=0 // pred_check_branch
    %58 = sbr.rel (0) target = $region73
  $region72: #{_lambda_.1} parent=0 // pred_region
    _
  $region73: #{_lambda_.1} parent=0 // pred_fallthru
    _
  %v59 = vld [vmem:[%s0] sm:$0xff]
  %v60 = vld [vmem:[%s0 + $0x8] sm:$0xff]
  %v61 = vld [vmem:[%s2] sm:$0x1]
  %v62 = vld [vmem:[%s3] sm:$0x1]
  %vm63 = vcmask 261120
  %v64 = vsel %vm63, %v59, 0.0
  %65 = vadd.xlane.f32.xlu0 %v64
  %v66 = vpop.xlane.xlu0 %65
  %v67 = vsel %vm63, %v60, 0.0
  %68 = vadd.xlane.f32.xlu0 %v67
  %v69 = vpop.xlane.xlu0 %68
  %v70 = vrcp.pop 32.0
  %v71 = vmul.f32 32.0, %v70
  %v72 = vsub.f32 1.0, %v71
  %v73 = vmul.f32 %v70, %v72
  %v74 = vadd.f32 %v70, %v73
  %vm75 = vweird.f32 %v70
  %v76 = vsel %vm75, %v70, %v74
  %v77 = vmul.f32 %v66, %v76
  %v78 = vmul.f32 %v69, %v76
  %v79 = vsub.f32 %v59, %v77
  %v80 = vsub.f32 %v60, %v78
  %v81 = vmul.f32 %v79, %v79
  %v82 = vmul.f32 %v80, %v80
  %v83 = vsel %vm63, %v81, 0.0
  %84 = vadd.xlane.f32.xlu0 %v83
  %v85 = vpop.xlane.xlu0 %84
  %v86 = vsel %vm63, %v82, 0.0
  %87 = vadd.xlane.f32.xlu0 %v86
  %v88 = vpop.xlane.xlu0 %87
  %v89 = vmul.f32 %v85, %v76
  %v90 = vmul.f32 %v88, %v76
  %v91 = vadd.f32 %v89, 1e-12
  %v92 = vadd.f32 %v90, 1e-12
  %v93 = vrsqrt.pop %v91
  %v94 = vmul.f32 %v93, %v91
  %v95 = vmul.f32 %v94, %v93
  %v96 = vmul.f32 0.5, %v95
  %v97 = vsub.f32 1.5, %v96
  %v98 = vmul.f32 %v93, %v97
  %vm99 = vweird.f32 %v91
  %vm100 = vweird.f32 %v93
  %vm101 = vmor %vm99, %vm100
  %v102 = vsel %vm101, %v93, %v98
  %v103 = vrsqrt.pop %v92
  %v104 = vmul.f32 %v103, %v92
  %v105 = vmul.f32 %v104, %v103
  %v106 = vmul.f32 0.5, %v105
  %v107 = vsub.f32 1.5, %v106
  %v108 = vmul.f32 %v103, %v107
  %vm109 = vweird.f32 %v92
  %vm110 = vweird.f32 %v103
  %vm111 = vmor %vm109, %vm110
  %v112 = vsel %vm111, %v103, %v108
  %v113 = vmul.f32 %v79, %v102
  %v114 = vmul.f32 %v80, %v112
  %v116 = vperm.slane %v61, 0
  %v118 = vmul.f32 %v113, %v116
  %v119 = vmul.f32 %v114, %v116
  %v121 = vperm.slane %v62, 0
  %v123 = vadd.f32 %v118, %v121
  %v124 = vadd.f32 %v119, %v121
  %v125 = vld [vmem:[%s1] sm:$0x3]
  %v126 = vld [vmem:[%s4] sm:$0xff]
  %v127 = vld [vmem:[%s4 + $0x8] sm:$0xff]
  %v128 = vld [vmem:[%s4 + $0x10] sm:$0xff]
  %v129 = vld [vmem:[%s4 + $0x18] sm:$0xff]
  %v130 = vld [vmem:[%s5] sm:$0x1]
  %v132 = vperm.slane %v130, 0
  %v135 = vsel %vm63, %v123, 0
  %v138 = vsel %vm63, %v124, 0
  %140 = vmatpush.msra.mxu0 0.0
  %141 = vmatpush.msra.mxu0 0.0
  %142 = vmatpush.msra.mxu0 0.0
  %143 = vmatpush.msra.mxu0 0.0
  %144 = vmatpush.msra.mxu0 0.0
  %145 = vmatpush.msra.mxu0 0.0
  %146 = vmatpush.msra.mxu0 0.0
  %147 = vmatpush.msra.mxu0 0.0
  %148 = vmatpush.msra.mxu0 0.0
  %149 = vmatpush.msra.mxu0 0.0
  %150 = vmatpush.msra.mxu0 0.0
  %151 = vmatpush.msra.mxu0 0.0
  %152 = vmatpush.msra.mxu0 %v129
  %153 = vmatpush.msra.mxu0 %v128
  %154 = vmatpush.msra.mxu0 %v127
  %155 = vmatpush.msra.mxu0 %v126
  %156 = vmatmul.f32.gmra.mxu0 %v135
  %v157 = vpop.f32.mrf.mxu0
  %v158 = vadd.f32 %v132, %v157
  %159 = vmatmul.f32.gmra.mxu0 %v138
  %v160 = vpop.f32.mrf.mxu0
  %v161 = vadd.f32 %v132, %v160
  %162 = vdwg.mxu0
  %v163 = vld [vmem:[%s6] sm:$0xff]
  %v164 = vld [vmem:[%s6 + $0x8] sm:$0xff]
  %v165 = vld [vmem:[%s6 + $0x10] sm:$0xff]
  %v166 = vld [vmem:[%s6 + $0x18] sm:$0xff]
  %v167 = vld [vmem:[%s7] sm:$0x1]
  %v169 = vperm.slane %v167, 0
  %v171 = vadd.f32 %v169, 0.0
  %173 = vrot.lane.b32.xlu0 %v158, 96
  %v174 = vpop.permute.xlu0 %173
  %vm175 = vcmask 64512
  %v176 = vsel %vm175, %v158, 0
  %v178 = vsel %vm175, %v174, 0
  %180 = vmatpush.xpose.msra.mxu0 0.0
  %181 = vmatpush.xpose.msra.mxu0 0.0
  %182 = vmatpush.xpose.msra.mxu0 0.0
  %183 = vmatpush.xpose.msra.mxu0 0.0
  %184 = vmatpush.xpose.msra.mxu0 0.0
  %185 = vmatpush.xpose.msra.mxu0 0.0
  %186 = vmatpush.xpose.msra.mxu0 0.0
  %187 = vmatpush.xpose.msra.mxu0 0.0
  %188 = vmatpush.xpose.msra.mxu0 0.0
  %189 = vmatpush.xpose.msra.mxu0 0.0
  %190 = vmatpush.xpose.msra.mxu0 0.0
  %191 = vmatpush.xpose.msra.mxu0 0.0
  %192 = vmatpush.xpose.msra.mxu0 0.0
  %193 = vmatpush.xpose.msra.mxu0 0.0
  %194 = vmatpush.xpose.msra.mxu0 0.0
  %195 = vmatpush.xpose.msra.mxu0 %v178
  %196 = vmatmul.f32.gmra.mxu0 %v176
  %v197 = vpop.f32.mrf.mxu0
  %v198 = vadd.f32 0.0, %v197
  %199 = vdwg.mxu0
  %201 = vrot.lane.b32.xlu0 %v161, 96
  %v202 = vpop.permute.xlu0 %201
  %v203 = vsel %vm175, %v161, 0
  %v205 = vsel %vm175, %v202, 0
  %207 = vmatpush.xpose.msra.mxu0 0.0
  %208 = vmatpush.xpose.msra.mxu0 0.0
  %209 = vmatpush.xpose.msra.mxu0 0.0
  %210 = vmatpush.xpose.msra.mxu0 0.0
  %211 = vmatpush.xpose.msra.mxu0 0.0
  %212 = vmatpush.xpose.msra.mxu0 0.0
  %213 = vmatpush.xpose.msra.mxu0 0.0
  %214 = vmatpush.xpose.msra.mxu0 0.0
  %215 = vmatpush.xpose.msra.mxu0 0.0
  %216 = vmatpush.xpose.msra.mxu0 0.0
  %217 = vmatpush.xpose.msra.mxu0 0.0
  %218 = vmatpush.xpose.msra.mxu0 0.0
  %219 = vmatpush.xpose.msra.mxu0 0.0
  %220 = vmatpush.xpose.msra.mxu0 0.0
  %221 = vmatpush.xpose.msra.mxu0 0.0
  %222 = vmatpush.xpose.msra.mxu0 %v205
  %223 = vmatmul.f32.gmra.mxu0 %v203
  %v224 = vpop.f32.mrf.mxu0
  %v225 = vadd.f32 0.0, %v224
  %226 = vdwg.mxu0
  %v227 = vmul.f32 %v198, 0.35355338
  %v228 = vmul.f32 %v225, 0.35355338
  %v230 = vrot.slane %v125, 1
  %v231 = vperm.slane %v125, 0
  %v232 = vperm.slane %v230, 0
  %v235 = vadd.f32 %v227, %v231
  %v236 = vadd.f32 %v228, %v232
  %v237 = vsel %vm175, %v235, -inf
  %238 = vmax.xlane.f32.xlu0 %v237
  %v239 = vpop.xlane.xlu0 %238
  %v240 = vsel %vm175, %v236, -inf
  %241 = vmax.xlane.f32.xlu0 %v240
  %v242 = vpop.xlane.xlu0 %241
  %v243 = vsub.f32 %v235, %v239
  %v244 = vsub.f32 %v236, %v242
  %v245 = vmul.f32 %v243, 1.442695
  %v246 = vpow.pop %v245
  %v247 = vmul.f32 %v244, 1.442695
  %v248 = vpow.pop %v247
  %v249 = vsel %vm175, %v246, 0.0
  %250 = vadd.xlane.f32.xlu0 %v249
  %v251 = vpop.xlane.xlu0 %250
  %v252 = vsel %vm175, %v248, 0.0
  %253 = vadd.xlane.f32.xlu0 %v252
  %v254 = vpop.xlane.xlu0 %253
  %v255 = vrcp.pop %v251
  %v256 = vmul.f32 %v251, %v255
  %v257 = vsub.f32 1.0, %v256
  %v258 = vmul.f32 %v255, %v257
  %v259 = vadd.f32 %v255, %v258
  %vm260 = vweird.f32 %v251
  %vm261 = vweird.f32 %v255
  %vm262 = vmor %vm260, %vm261
  %v263 = vsel %vm262, %v255, %v259
  %v264 = vand.u32 2147483647, %v251
  %vm265 = vcmp.eq.f32.partialorder %v264, 8.507059e+37
  %v266 = vand.u32 %v251, 2147483648
  %v267 = vor.u32 1.1754944e-38, %v266
  %v268 = vsel %vm265, %v267, %v263
  %v269 = vmul.f32 %v246, %v268
  %v270 = vrcp.pop %v254
  %v271 = vmul.f32 %v254, %v270
  %v272 = vsub.f32 1.0, %v271
  %v273 = vmul.f32 %v270, %v272
  %v274 = vadd.f32 %v270, %v273
  %vm275 = vweird.f32 %v254
  %vm276 = vweird.f32 %v270
  %vm277 = vmor %vm275, %vm276
  %v278 = vsel %vm277, %v270, %v274
  %v279 = vand.u32 2147483647, %v254
  %vm280 = vcmp.eq.f32.partialorder %v279, 8.507059e+37
  %v281 = vand.u32 %v254, 2147483648
  %v282 = vor.u32 1.1754944e-38, %v281
  %v283 = vsel %vm280, %v282, %v278
  %v284 = vmul.f32 %v248, %v283
  %285 = vrot.lane.b32.xlu0 %v158, 64
  %v286 = vpop.permute.xlu0 %285
  %v289 = vsel %vm175, %v269, 0
  %291 = vmatpush.msra.mxu0 0.0
  %292 = vmatpush.msra.mxu0 0.0
  %293 = vmatpush.msra.mxu0 0.0
  %294 = vmatpush.msra.mxu0 0.0
  %295 = vmatpush.msra.mxu0 0.0
  %296 = vmatpush.msra.mxu0 0.0
  %297 = vmatpush.msra.mxu0 0.0
  %298 = vmatpush.msra.mxu0 0.0
  %299 = vmatpush.msra.mxu0 0.0
  %300 = vmatpush.msra.mxu0 0.0
  %301 = vmatpush.msra.mxu0 0.0
  %302 = vmatpush.msra.mxu0 0.0
  %303 = vmatpush.msra.mxu0 0.0
  %304 = vmatpush.msra.mxu0 0.0
  %305 = vmatpush.msra.mxu0 0.0
  %306 = vmatpush.msra.mxu0 %v286
  %307 = vmatmul.f32.gmra.mxu0 %v289
  %v308 = vpop.f32.mrf.mxu0
  %v309 = vadd.f32 0.0, %v308
  %310 = vdwg.mxu0
  %311 = vrot.lane.b32.xlu0 %v161, 64
  %v312 = vpop.permute.xlu0 %311
  %v315 = vsel %vm175, %v284, 0
  %317 = vmatpush.msra.mxu0 0.0
  %318 = vmatpush.msra.mxu0 0.0
  %319 = vmatpush.msra.mxu0 0.0
  %320 = vmatpush.msra.mxu0 0.0
  %321 = vmatpush.msra.mxu0 0.0
  %322 = vmatpush.msra.mxu0 0.0
  %323 = vmatpush.msra.mxu0 0.0
  %324 = vmatpush.msra.mxu0 0.0
  %325 = vmatpush.msra.mxu0 0.0
  %326 = vmatpush.msra.mxu0 0.0
  %327 = vmatpush.msra.mxu0 0.0
  %328 = vmatpush.msra.mxu0 0.0
  %329 = vmatpush.msra.mxu0 0.0
  %330 = vmatpush.msra.mxu0 0.0
  %331 = vmatpush.msra.mxu0 0.0
  %332 = vmatpush.msra.mxu0 %v312
  %333 = vmatmul.f32.gmra.mxu0 %v315
  %v334 = vpop.f32.mrf.mxu0
  %v335 = vadd.f32 0.0, %v334
  %336 = vdwg.mxu0
  %v338 = vsel %vm175, %v309, 0
  %v341 = vsel %vm175, %v335, 0
  %343 = vmatpush.msra.mxu0 0.0
  %344 = vmatpush.msra.mxu0 0.0
  %345 = vmatpush.msra.mxu0 0.0
  %346 = vmatpush.msra.mxu0 0.0
  %347 = vmatpush.msra.mxu0 0.0
  %348 = vmatpush.msra.mxu0 0.0
  %349 = vmatpush.msra.mxu0 0.0
  %350 = vmatpush.msra.mxu0 0.0
  %351 = vmatpush.msra.mxu0 0.0
  %352 = vmatpush.msra.mxu0 0.0
  %353 = vmatpush.msra.mxu0 0.0
  %354 = vmatpush.msra.mxu0 0.0
  %355 = vmatpush.msra.mxu0 0.0
  %356 = vmatpush.msra.mxu0 0.0
  %357 = vmatpush.msra.mxu0 0.0
  %358 = vmatpush.msra.mxu0 %v163
  %359 = vmatmul.f32.gmra.mxu0 %v338
  %v360 = vpop.f32.mrf.mxu0
  %v361 = vadd.f32 0.0, %v360
  %362 = vmatmul.f32.gmra.mxu0 %v341
  %v363 = vpop.f32.mrf.mxu0
  %v364 = vadd.f32 0.0, %v363
  %365 = vdwg.mxu0
  %v366 = vadd.f32 %v171, %v361
  %v367 = vadd.f32 %v171, %v364
  %368 = vrot.lane.b32.xlu0 %v158, 120
  %v369 = vpop.permute.xlu0 %368
  %370 = vrot.lane.b32.xlu0 %v158, 88
  %v371 = vpop.permute.xlu0 %370
  %v372 = vsel %vm175, %v369, 0
  %v374 = vsel %vm175, %v371, 0
  %376 = vmatpush.xpose.msra.mxu0 0.0
  %377 = vmatpush.xpose.msra.mxu0 0.0
  %378 = vmatpush.xpose.msra.mxu0 0.0
  %379 = vmatpush.xpose.msra.mxu0 0.0
  %380 = vmatpush.xpose.msra.mxu0 0.0
  %381 = vmatpush.xpose.msra.mxu0 0.0
  %382 = vmatpush.xpose.msra.mxu0 0.0
  %383 = vmatpush.xpose.msra.mxu0 0.0
  %384 = vmatpush.xpose.msra.mxu0 0.0
  %385 = vmatpush.xpose.msra.mxu0 0.0
  %386 = vmatpush.xpose.msra.mxu0 0.0
  %387 = vmatpush.xpose.msra.mxu0 0.0
  %388 = vmatpush.xpose.msra.mxu0 0.0
  %389 = vmatpush.xpose.msra.mxu0 0.0
  %390 = vmatpush.xpose.msra.mxu0 0.0
  %391 = vmatpush.xpose.msra.mxu0 %v374
  %392 = vmatmul.f32.gmra.mxu0 %v372
  %v393 = vpop.f32.mrf.mxu0
  %v394 = vadd.f32 0.0, %v393
  %395 = vdwg.mxu0
  %396 = vrot.lane.b32.xlu0 %v161, 120
  %v397 = vpop.permute.xlu0 %396
  %398 = vrot.lane.b32.xlu0 %v161, 88
  %v399 = vpop.permute.xlu0 %398
  %v400 = vsel %vm175, %v397, 0
  %v402 = vsel %vm175, %v399, 0
  %404 = vmatpush.xpose.msra.mxu0 0.0
  %405 = vmatpush.xpose.msra.mxu0 0.0
  %406 = vmatpush.xpose.msra.mxu0 0.0
  %407 = vmatpush.xpose.msra.mxu0 0.0
  %408 = vmatpush.xpose.msra.mxu0 0.0
  %409 = vmatpush.xpose.msra.mxu0 0.0
  %410 = vmatpush.xpose.msra.mxu0 0.0
  %411 = vmatpush.xpose.msra.mxu0 0.0
  %412 = vmatpush.xpose.msra.mxu0 0.0
  %413 = vmatpush.xpose.msra.mxu0 0.0
  %414 = vmatpush.xpose.msra.mxu0 0.0
  %415 = vmatpush.xpose.msra.mxu0 0.0
  %416 = vmatpush.xpose.msra.mxu0 0.0
  %417 = vmatpush.xpose.msra.mxu0 0.0
  %418 = vmatpush.xpose.msra.mxu0 0.0
  %419 = vmatpush.xpose.msra.mxu0 %v402
  %420 = vmatmul.f32.gmra.mxu0 %v400
  %v421 = vpop.f32.mrf.mxu0
  %v422 = vadd.f32 0.0, %v421
  %423 = vdwg.mxu0
  %v424 = vmul.f32 %v394, 0.35355338
  %v425 = vmul.f32 %v422, 0.35355338
  %v426 = vadd.f32 %v424, %v231
  %v427 = vadd.f32 %v425, %v232
  %v428 = vsel %vm175, %v426, -inf
  %429 = vmax.xlane.f32.xlu0 %v428
  %v430 = vpop.xlane.xlu0 %429
  %v431 = vsel %vm175, %v427, -inf
  %432 = vmax.xlane.f32.xlu0 %v431
  %v433 = vpop.xlane.xlu0 %432
  %v434 = vsub.f32 %v426, %v430
  %v435 = vsub.f32 %v427, %v433
  %v436 = vmul.f32 %v434, 1.442695
  %v437 = vpow.pop %v436
  %v438 = vmul.f32 %v435, 1.442695
  %v439 = vpow.pop %v438
  %v440 = vsel %vm175, %v437, 0.0
  %441 = vadd.xlane.f32.xlu0 %v440
  %v442 = vpop.xlane.xlu0 %441
  %v443 = vsel %vm175, %v439, 0.0
  %444 = vadd.xlane.f32.xlu0 %v443
  %v445 = vpop.xlane.xlu0 %444
  %v446 = vrcp.pop %v442
  %v447 = vmul.f32 %v442, %v446
  %v448 = vsub.f32 1.0, %v447
  %v449 = vmul.f32 %v446, %v448
  %v450 = vadd.f32 %v446, %v449
  %vm451 = vweird.f32 %v442
  %vm452 = vweird.f32 %v446
  %vm453 = vmor %vm451, %vm452
  %v454 = vsel %vm453, %v446, %v450
  %v455 = vand.u32 2147483647, %v442
  %vm456 = vcmp.eq.f32.partialorder %v455, 8.507059e+37
  %v457 = vand.u32 %v442, 2147483648
  %v458 = vor.u32 1.1754944e-38, %v457
  %v459 = vsel %vm456, %v458, %v454
  %v460 = vmul.f32 %v437, %v459
  %v461 = vrcp.pop %v445
  %v462 = vmul.f32 %v445, %v461
  %v463 = vsub.f32 1.0, %v462
  %v464 = vmul.f32 %v461, %v463
  %v465 = vadd.f32 %v461, %v464
  %vm466 = vweird.f32 %v445
  %vm467 = vweird.f32 %v461
  %vm468 = vmor %vm466, %vm467
  %v469 = vsel %vm468, %v461, %v465
  %v470 = vand.u32 2147483647, %v445
  %vm471 = vcmp.eq.f32.partialorder %v470, 8.507059e+37
  %v472 = vand.u32 %v445, 2147483648
  %v473 = vor.u32 1.1754944e-38, %v472
  %v474 = vsel %vm471, %v473, %v469
  %v475 = vmul.f32 %v439, %v474
  %476 = vrot.lane.b32.xlu0 %v158, 56
  %v477 = vpop.permute.xlu0 %476
  %v480 = vsel %vm175, %v460, 0
  %482 = vmatpush.msra.mxu0 0.0
  %483 = vmatpush.msra.mxu0 0.0
  %484 = vmatpush.msra.mxu0 0.0
  %485 = vmatpush.msra.mxu0 0.0
  %486 = vmatpush.msra.mxu0 0.0
  %487 = vmatpush.msra.mxu0 0.0
  %488 = vmatpush.msra.mxu0 0.0
  %489 = vmatpush.msra.mxu0 0.0
  %490 = vmatpush.msra.mxu0 0.0
  %491 = vmatpush.msra.mxu0 0.0
  %492 = vmatpush.msra.mxu0 0.0
  %493 = vmatpush.msra.mxu0 0.0
  %494 = vmatpush.msra.mxu0 0.0
  %495 = vmatpush.msra.mxu0 0.0
  %496 = vmatpush.msra.mxu0 0.0
  %497 = vmatpush.msra.mxu0 %v477
  %498 = vmatmul.f32.gmra.mxu0 %v480
  %v499 = vpop.f32.mrf.mxu0
  %v500 = vadd.f32 0.0, %v499
  %501 = vdwg.mxu0
  %502 = vrot.lane.b32.xlu0 %v161, 56
  %v503 = vpop.permute.xlu0 %502
  %v506 = vsel %vm175, %v475, 0
  %508 = vmatpush.msra.mxu0 0.0
  %509 = vmatpush.msra.mxu0 0.0
  %510 = vmatpush.msra.mxu0 0.0
  %511 = vmatpush.msra.mxu0 0.0
  %512 = vmatpush.msra.mxu0 0.0
  %513 = vmatpush.msra.mxu0 0.0
  %514 = vmatpush.msra.mxu0 0.0
  %515 = vmatpush.msra.mxu0 0.0
  %516 = vmatpush.msra.mxu0 0.0
  %517 = vmatpush.msra.mxu0 0.0
  %518 = vmatpush.msra.mxu0 0.0
  %519 = vmatpush.msra.mxu0 0.0
  %520 = vmatpush.msra.mxu0 0.0
  %521 = vmatpush.msra.mxu0 0.0
  %522 = vmatpush.msra.mxu0 0.0
  %523 = vmatpush.msra.mxu0 %v503
  %524 = vmatmul.f32.gmra.mxu0 %v506
  %v525 = vpop.f32.mrf.mxu0
  %v526 = vadd.f32 0.0, %v525
  %527 = vdwg.mxu0
  %v529 = vsel %vm175, %v500, 0
  %v532 = vsel %vm175, %v526, 0
  %534 = vmatpush.msra.mxu0 0.0
  %535 = vmatpush.msra.mxu0 0.0
  %536 = vmatpush.msra.mxu0 0.0
  %537 = vmatpush.msra.mxu0 0.0
  %538 = vmatpush.msra.mxu0 0.0
  %539 = vmatpush.msra.mxu0 0.0
  %540 = vmatpush.msra.mxu0 0.0
  %541 = vmatpush.msra.mxu0 0.0
  %542 = vmatpush.msra.mxu0 0.0
  %543 = vmatpush.msra.mxu0 0.0
  %544 = vmatpush.msra.mxu0 0.0
  %545 = vmatpush.msra.mxu0 0.0
  %546 = vmatpush.msra.mxu0 0.0
  %547 = vmatpush.msra.mxu0 0.0
  %548 = vmatpush.msra.mxu0 0.0
  %549 = vmatpush.msra.mxu0 %v164
  %550 = vmatmul.f32.gmra.mxu0 %v529
  %v551 = vpop.f32.mrf.mxu0
  %v552 = vadd.f32 0.0, %v551
  %553 = vmatmul.f32.gmra.mxu0 %v532
  %v554 = vpop.f32.mrf.mxu0
  %v555 = vadd.f32 0.0, %v554
  %556 = vdwg.mxu0
  %v557 = vadd.f32 %v366, %v552
  %v558 = vadd.f32 %v367, %v555
  %559 = vrot.lane.b32.xlu0 %v158, 112
  %v560 = vpop.permute.xlu0 %559
  %561 = vrot.lane.b32.xlu0 %v158, 80
  %v562 = vpop.permute.xlu0 %561
  %v563 = vsel %vm175, %v560, 0
  %v565 = vsel %vm175, %v562, 0
  %567 = vmatpush.xpose.msra.mxu0 0.0
  %568 = vmatpush.xpose.msra.mxu0 0.0
  %569 = vmatpush.xpose.msra.mxu0 0.0
  %570 = vmatpush.xpose.msra.mxu0 0.0
  %571 = vmatpush.xpose.msra.mxu0 0.0
  %572 = vmatpush.xpose.msra.mxu0 0.0
  %573 = vmatpush.xpose.msra.mxu0 0.0
  %574 = vmatpush.xpose.msra.mxu0 0.0
  %575 = vmatpush.xpose.msra.mxu0 0.0
  %576 = vmatpush.xpose.msra.mxu0 0.0
  %577 = vmatpush.xpose.msra.mxu0 0.0
  %578 = vmatpush.xpose.msra.mxu0 0.0
  %579 = vmatpush.xpose.msra.mxu0 0.0
  %580 = vmatpush.xpose.msra.mxu0 0.0
  %581 = vmatpush.xpose.msra.mxu0 0.0
  %582 = vmatpush.xpose.msra.mxu0 %v565
  %583 = vmatmul.f32.gmra.mxu0 %v563
  %v584 = vpop.f32.mrf.mxu0
  %v585 = vadd.f32 0.0, %v584
  %586 = vdwg.mxu0
  %587 = vrot.lane.b32.xlu0 %v161, 112
  %v588 = vpop.permute.xlu0 %587
  %589 = vrot.lane.b32.xlu0 %v161, 80
  %v590 = vpop.permute.xlu0 %589
  %v591 = vsel %vm175, %v588, 0
  %v593 = vsel %vm175, %v590, 0
  %595 = vmatpush.xpose.msra.mxu0 0.0
  %596 = vmatpush.xpose.msra.mxu0 0.0
  %597 = vmatpush.xpose.msra.mxu0 0.0
  %598 = vmatpush.xpose.msra.mxu0 0.0
  %599 = vmatpush.xpose.msra.mxu0 0.0
  %600 = vmatpush.xpose.msra.mxu0 0.0
  %601 = vmatpush.xpose.msra.mxu0 0.0
  %602 = vmatpush.xpose.msra.mxu0 0.0
  %603 = vmatpush.xpose.msra.mxu0 0.0
  %604 = vmatpush.xpose.msra.mxu0 0.0
  %605 = vmatpush.xpose.msra.mxu0 0.0
  %606 = vmatpush.xpose.msra.mxu0 0.0
  %607 = vmatpush.xpose.msra.mxu0 0.0
  %608 = vmatpush.xpose.msra.mxu0 0.0
  %609 = vmatpush.xpose.msra.mxu0 0.0
  %610 = vmatpush.xpose.msra.mxu0 %v593
  %611 = vmatmul.f32.gmra.mxu0 %v591
  %v612 = vpop.f32.mrf.mxu0
  %v613 = vadd.f32 0.0, %v612
  %614 = vdwg.mxu0
  %v615 = vmul.f32 %v585, 0.35355338
  %v616 = vmul.f32 %v613, 0.35355338
  %v617 = vadd.f32 %v615, %v231
  %v618 = vadd.f32 %v616, %v232
  %v619 = vsel %vm175, %v617, -inf
  %620 = vmax.xlane.f32.xlu0 %v619
  %v621 = vpop.xlane.xlu0 %620
  %v622 = vsel %vm175, %v618, -inf
  %623 = vmax.xlane.f32.xlu0 %v622
  %v624 = vpop.xlane.xlu0 %623
  %v625 = vsub.f32 %v617, %v621
  %v626 = vsub.f32 %v618, %v624
  %v627 = vmul.f32 %v625, 1.442695
  %v628 = vpow.pop %v627
  %v629 = vmul.f32 %v626, 1.442695
  %v630 = vpow.pop %v629
  %v631 = vsel %vm175, %v628, 0.0
  %632 = vadd.xlane.f32.xlu0 %v631
  %v633 = vpop.xlane.xlu0 %632
  %v634 = vsel %vm175, %v630, 0.0
  %635 = vadd.xlane.f32.xlu0 %v634
  %v636 = vpop.xlane.xlu0 %635
  %v637 = vrcp.pop %v633
  %v638 = vmul.f32 %v633, %v637
  %v639 = vsub.f32 1.0, %v638
  %v640 = vmul.f32 %v637, %v639
  %v641 = vadd.f32 %v637, %v640
  %vm642 = vweird.f32 %v633
  %vm643 = vweird.f32 %v637
  %vm644 = vmor %vm642, %vm643
  %v645 = vsel %vm644, %v637, %v641
  %v646 = vand.u32 2147483647, %v633
  %vm647 = vcmp.eq.f32.partialorder %v646, 8.507059e+37
  %v648 = vand.u32 %v633, 2147483648
  %v649 = vor.u32 1.1754944e-38, %v648
  %v650 = vsel %vm647, %v649, %v645
  %v651 = vmul.f32 %v628, %v650
  %v652 = vrcp.pop %v636
  %v653 = vmul.f32 %v636, %v652
  %v654 = vsub.f32 1.0, %v653
  %v655 = vmul.f32 %v652, %v654
  %v656 = vadd.f32 %v652, %v655
  %vm657 = vweird.f32 %v636
  %vm658 = vweird.f32 %v652
  %vm659 = vmor %vm657, %vm658
  %v660 = vsel %vm659, %v652, %v656
  %v661 = vand.u32 2147483647, %v636
  %vm662 = vcmp.eq.f32.partialorder %v661, 8.507059e+37
  %v663 = vand.u32 %v636, 2147483648
  %v664 = vor.u32 1.1754944e-38, %v663
  %v665 = vsel %vm662, %v664, %v660
  %v666 = vmul.f32 %v630, %v665
  %667 = vrot.lane.b32.xlu0 %v158, 48
  %v668 = vpop.permute.xlu0 %667
  %v671 = vsel %vm175, %v651, 0
  %673 = vmatpush.msra.mxu0 0.0
  %674 = vmatpush.msra.mxu0 0.0
  %675 = vmatpush.msra.mxu0 0.0
  %676 = vmatpush.msra.mxu0 0.0
  %677 = vmatpush.msra.mxu0 0.0
  %678 = vmatpush.msra.mxu0 0.0
  %679 = vmatpush.msra.mxu0 0.0
  %680 = vmatpush.msra.mxu0 0.0
  %681 = vmatpush.msra.mxu0 0.0
  %682 = vmatpush.msra.mxu0 0.0
  %683 = vmatpush.msra.mxu0 0.0
  %684 = vmatpush.msra.mxu0 0.0
  %685 = vmatpush.msra.mxu0 0.0
  %686 = vmatpush.msra.mxu0 0.0
  %687 = vmatpush.msra.mxu0 0.0
  %688 = vmatpush.msra.mxu0 %v668
  %689 = vmatmul.f32.gmra.mxu0 %v671
  %v690 = vpop.f32.mrf.mxu0
  %v691 = vadd.f32 0.0, %v690
  %692 = vdwg.mxu0
  %693 = vrot.lane.b32.xlu0 %v161, 48
  %v694 = vpop.permute.xlu0 %693
  %v697 = vsel %vm175, %v666, 0
  %699 = vmatpush.msra.mxu0 0.0
  %700 = vmatpush.msra.mxu0 0.0
  %701 = vmatpush.msra.mxu0 0.0
  %702 = vmatpush.msra.mxu0 0.0
  %703 = vmatpush.msra.mxu0 0.0
  %704 = vmatpush.msra.mxu0 0.0
  %705 = vmatpush.msra.mxu0 0.0
  %706 = vmatpush.msra.mxu0 0.0
  %707 = vmatpush.msra.mxu0 0.0
  %708 = vmatpush.msra.mxu0 0.0
  %709 = vmatpush.msra.mxu0 0.0
  %710 = vmatpush.msra.mxu0 0.0
  %711 = vmatpush.msra.mxu0 0.0
  %712 = vmatpush.msra.mxu0 0.0
  %713 = vmatpush.msra.mxu0 0.0
  %714 = vmatpush.msra.mxu0 %v694
  %715 = vmatmul.f32.gmra.mxu0 %v697
  %v716 = vpop.f32.mrf.mxu0
  %v717 = vadd.f32 0.0, %v716
  %718 = vdwg.mxu0
  %v720 = vsel %vm175, %v691, 0
  %v723 = vsel %vm175, %v717, 0
  %725 = vmatpush.msra.mxu0 0.0
  %726 = vmatpush.msra.mxu0 0.0
  %727 = vmatpush.msra.mxu0 0.0
  %728 = vmatpush.msra.mxu0 0.0
  %729 = vmatpush.msra.mxu0 0.0
  %730 = vmatpush.msra.mxu0 0.0
  %731 = vmatpush.msra.mxu0 0.0
  %732 = vmatpush.msra.mxu0 0.0
  %733 = vmatpush.msra.mxu0 0.0
  %734 = vmatpush.msra.mxu0 0.0
  %735 = vmatpush.msra.mxu0 0.0
  %736 = vmatpush.msra.mxu0 0.0
  %737 = vmatpush.msra.mxu0 0.0
  %738 = vmatpush.msra.mxu0 0.0
  %739 = vmatpush.msra.mxu0 0.0
  %740 = vmatpush.msra.mxu0 %v165
  %741 = vmatmul.f32.gmra.mxu0 %v720
  %v742 = vpop.f32.mrf.mxu0
  %v743 = vadd.f32 0.0, %v742
  %744 = vmatmul.f32.gmra.mxu0 %v723
  %v745 = vpop.f32.mrf.mxu0
  %v746 = vadd.f32 0.0, %v745
  %747 = vdwg.mxu0
  %v748 = vadd.f32 %v557, %v743
  %v749 = vadd.f32 %v558, %v746
  %750 = vrot.lane.b32.xlu0 %v158, 104
  %v751 = vpop.permute.xlu0 %750
  %752 = vrot.lane.b32.xlu0 %v158, 72
  %v753 = vpop.permute.xlu0 %752
  %v754 = vsel %vm175, %v751, 0
  %v756 = vsel %vm175, %v753, 0
  %758 = vmatpush.xpose.msra.mxu0 0.0
  %759 = vmatpush.xpose.msra.mxu0 0.0
  %760 = vmatpush.xpose.msra.mxu0 0.0
  %761 = vmatpush.xpose.msra.mxu0 0.0
  %762 = vmatpush.xpose.msra.mxu0 0.0
  %763 = vmatpush.xpose.msra.mxu0 0.0
  %764 = vmatpush.xpose.msra.mxu0 0.0
  %765 = vmatpush.xpose.msra.mxu0 0.0
  %766 = vmatpush.xpose.msra.mxu0 0.0
  %767 = vmatpush.xpose.msra.mxu0 0.0
  %768 = vmatpush.xpose.msra.mxu0 0.0
  %769 = vmatpush.xpose.msra.mxu0 0.0
  %770 = vmatpush.xpose.msra.mxu0 0.0
  %771 = vmatpush.xpose.msra.mxu0 0.0
  %772 = vmatpush.xpose.msra.mxu0 0.0
  %773 = vmatpush.xpose.msra.mxu0 %v756
  %774 = vmatmul.f32.gmra.mxu0 %v754
  %v775 = vpop.f32.mrf.mxu0
  %v776 = vadd.f32 0.0, %v775
  %777 = vdwg.mxu0
  %778 = vrot.lane.b32.xlu0 %v161, 104
  %v779 = vpop.permute.xlu0 %778
  %780 = vrot.lane.b32.xlu0 %v161, 72
  %v781 = vpop.permute.xlu0 %780
  %v782 = vsel %vm175, %v779, 0
  %v784 = vsel %vm175, %v781, 0
  %786 = vmatpush.xpose.msra.mxu0 0.0
  %787 = vmatpush.xpose.msra.mxu0 0.0
  %788 = vmatpush.xpose.msra.mxu0 0.0
  %789 = vmatpush.xpose.msra.mxu0 0.0
  %790 = vmatpush.xpose.msra.mxu0 0.0
  %791 = vmatpush.xpose.msra.mxu0 0.0
  %792 = vmatpush.xpose.msra.mxu0 0.0
  %793 = vmatpush.xpose.msra.mxu0 0.0
  %794 = vmatpush.xpose.msra.mxu0 0.0
  %795 = vmatpush.xpose.msra.mxu0 0.0
  %796 = vmatpush.xpose.msra.mxu0 0.0
  %797 = vmatpush.xpose.msra.mxu0 0.0
  %798 = vmatpush.xpose.msra.mxu0 0.0
  %799 = vmatpush.xpose.msra.mxu0 0.0
  %800 = vmatpush.xpose.msra.mxu0 0.0
  %801 = vmatpush.xpose.msra.mxu0 %v784
  %802 = vmatmul.f32.gmra.mxu0 %v782
  %v803 = vpop.f32.mrf.mxu0
  %v804 = vadd.f32 0.0, %v803
  %805 = vdwg.mxu0
  %v806 = vmul.f32 %v776, 0.35355338
  %v807 = vmul.f32 %v804, 0.35355338
  %v808 = vadd.f32 %v806, %v231
  %v809 = vadd.f32 %v807, %v232
  %v810 = vsel %vm175, %v808, -inf
  %811 = vmax.xlane.f32.xlu0 %v810
  %v812 = vpop.xlane.xlu0 %811
  %v813 = vsel %vm175, %v809, -inf
  %814 = vmax.xlane.f32.xlu0 %v813
  %v815 = vpop.xlane.xlu0 %814
  %v816 = vsub.f32 %v808, %v812
  %v817 = vsub.f32 %v809, %v815
  %v818 = vmul.f32 %v816, 1.442695
  %v819 = vpow.pop %v818
  %v820 = vmul.f32 %v817, 1.442695
  %v821 = vpow.pop %v820
  %v822 = vsel %vm175, %v819, 0.0
  %823 = vadd.xlane.f32.xlu0 %v822
  %v824 = vpop.xlane.xlu0 %823
  %v825 = vsel %vm175, %v821, 0.0
  %826 = vadd.xlane.f32.xlu0 %v825
  %v827 = vpop.xlane.xlu0 %826
  %v828 = vrcp.pop %v824
  %v829 = vmul.f32 %v824, %v828
  %v830 = vsub.f32 1.0, %v829
  %v831 = vmul.f32 %v828, %v830
  %v832 = vadd.f32 %v828, %v831
  %vm833 = vweird.f32 %v824
  %vm834 = vweird.f32 %v828
  %vm835 = vmor %vm833, %vm834
  %v836 = vsel %vm835, %v828, %v832
  %v837 = vand.u32 2147483647, %v824
  %vm838 = vcmp.eq.f32.partialorder %v837, 8.507059e+37
  %v839 = vand.u32 %v824, 2147483648
  %v840 = vor.u32 1.1754944e-38, %v839
  %v841 = vsel %vm838, %v840, %v836
  %v842 = vmul.f32 %v819, %v841
  %v843 = vrcp.pop %v827
  %v844 = vmul.f32 %v827, %v843
  %v845 = vsub.f32 1.0, %v844
  %v846 = vmul.f32 %v843, %v845
  %v847 = vadd.f32 %v843, %v846
  %vm848 = vweird.f32 %v827
  %vm849 = vweird.f32 %v843
  %vm850 = vmor %vm848, %vm849
  %v851 = vsel %vm850, %v843, %v847
  %v852 = vand.u32 2147483647, %v827
  %vm853 = vcmp.eq.f32.partialorder %v852, 8.507059e+37
  %v854 = vand.u32 %v827, 2147483648
  %v855 = vor.u32 1.1754944e-38, %v854
  %v856 = vsel %vm853, %v855, %v851
  %v857 = vmul.f32 %v821, %v856
  %858 = vrot.lane.b32.xlu0 %v158, 40
  %v859 = vpop.permute.xlu0 %858
  %v862 = vsel %vm175, %v842, 0
  %864 = vmatpush.msra.mxu0 0.0
  %865 = vmatpush.msra.mxu0 0.0
  %866 = vmatpush.msra.mxu0 0.0
  %867 = vmatpush.msra.mxu0 0.0
  %868 = vmatpush.msra.mxu0 0.0
  %869 = vmatpush.msra.mxu0 0.0
  %870 = vmatpush.msra.mxu0 0.0
  %871 = vmatpush.msra.mxu0 0.0
  %872 = vmatpush.msra.mxu0 0.0
  %873 = vmatpush.msra.mxu0 0.0
  %874 = vmatpush.msra.mxu0 0.0
  %875 = vmatpush.msra.mxu0 0.0
  %876 = vmatpush.msra.mxu0 0.0
  %877 = vmatpush.msra.mxu0 0.0
  %878 = vmatpush.msra.mxu0 0.0
  %879 = vmatpush.msra.mxu0 %v859
  %880 = vmatmul.f32.gmra.mxu0 %v862
  %v881 = vpop.f32.mrf.mxu0
  %v882 = vadd.f32 0.0, %v881
  %883 = vdwg.mxu0
  %884 = vrot.lane.b32.xlu0 %v161, 40
  %v885 = vpop.permute.xlu0 %884
  %v888 = vsel %vm175, %v857, 0
  %890 = vmatpush.msra.mxu0 0.0
  %891 = vmatpush.msra.mxu0 0.0
  %892 = vmatpush.msra.mxu0 0.0
  %893 = vmatpush.msra.mxu0 0.0
  %894 = vmatpush.msra.mxu0 0.0
  %895 = vmatpush.msra.mxu0 0.0
  %896 = vmatpush.msra.mxu0 0.0
  %897 = vmatpush.msra.mxu0 0.0
  %898 = vmatpush.msra.mxu0 0.0
  %899 = vmatpush.msra.mxu0 0.0
  %900 = vmatpush.msra.mxu0 0.0
  %901 = vmatpush.msra.mxu0 0.0
  %902 = vmatpush.msra.mxu0 0.0
  %903 = vmatpush.msra.mxu0 0.0
  %904 = vmatpush.msra.mxu0 0.0
  %905 = vmatpush.msra.mxu0 %v885
  %906 = vmatmul.f32.gmra.mxu0 %v888
  %v907 = vpop.f32.mrf.mxu0
  %v908 = vadd.f32 0.0, %v907
  %909 = vdwg.mxu0
  %v911 = vsel %vm175, %v882, 0
  %v914 = vsel %vm175, %v908, 0
  %916 = vmatpush.msra.mxu0 0.0
  %917 = vmatpush.msra.mxu0 0.0
  %918 = vmatpush.msra.mxu0 0.0
  %919 = vmatpush.msra.mxu0 0.0
  %920 = vmatpush.msra.mxu0 0.0
  %921 = vmatpush.msra.mxu0 0.0
  %922 = vmatpush.msra.mxu0 0.0
  %923 = vmatpush.msra.mxu0 0.0
  %924 = vmatpush.msra.mxu0 0.0
  %925 = vmatpush.msra.mxu0 0.0
  %926 = vmatpush.msra.mxu0 0.0
  %927 = vmatpush.msra.mxu0 0.0
  %928 = vmatpush.msra.mxu0 0.0
  %929 = vmatpush.msra.mxu0 0.0
  %930 = vmatpush.msra.mxu0 0.0
  %931 = vmatpush.msra.mxu0 %v166
  %932 = vmatmul.f32.gmra.mxu0 %v911
  %v933 = vpop.f32.mrf.mxu0
  %v934 = vadd.f32 0.0, %v933
  %935 = vmatmul.f32.gmra.mxu0 %v914
  %v936 = vpop.f32.mrf.mxu0
  %v937 = vadd.f32 0.0, %v936
  %938 = vdwg.mxu0
  %v939 = vadd.f32 %v748, %v934
  %v940 = vadd.f32 %v749, %v937
  %v941 = vadd.f32 %v939, %v123
  %v942 = vadd.f32 %v940, %v124
  %v943 = vld [vmem:[%s8] sm:$0x1]
  %v944 = vld [vmem:[%s9] sm:$0x1]
  %v945 = vsel %vm63, %v941, 0.0
  %946 = vadd.xlane.f32.xlu0 %v945
  %v947 = vpop.xlane.xlu0 %946
  %v948 = vsel %vm63, %v942, 0.0
  %949 = vadd.xlane.f32.xlu0 %v948
  %v950 = vpop.xlane.xlu0 %949
  %v951 = vmul.f32 %v947, %v76
  %v952 = vmul.f32 %v950, %v76
  %v953 = vsub.f32 %v941, %v951
  %v954 = vsub.f32 %v942, %v952
  %v955 = vmul.f32 %v953, %v953
  %v956 = vmul.f32 %v954, %v954
  %v957 = vsel %vm63, %v955, 0.0
  %958 = vadd.xlane.f32.xlu0 %v957
  %v959 = vpop.xlane.xlu0 %958
  %v960 = vsel %vm63, %v956, 0.0
  %961 = vadd.xlane.f32.xlu0 %v960
  %v962 = vpop.xlane.xlu0 %961
  %v963 = vmul.f32 %v959, %v76
  %v964 = vmul.f32 %v962, %v76
  %v965 = vadd.f32 %v963, 1e-12
  %v966 = vadd.f32 %v964, 1e-12
  %v967 = vrsqrt.pop %v965
  %v968 = vmul.f32 %v967, %v965
  %v969 = vmul.f32 %v968, %v967
  %v970 = vmul.f32 0.5, %v969
  %v971 = vsub.f32 1.5, %v970
  %v972 = vmul.f32 %v967, %v971
  %vm973 = vweird.f32 %v965
  %vm974 = vweird.f32 %v967
  %vm975 = vmor %vm973, %vm974
  %v976 = vsel %vm975, %v967, %v972
  %v977 = vrsqrt.pop %v966
  %v978 = vmul.f32 %v977, %v966
  %v979 = vmul.f32 %v978, %v977
  %v980 = vmul.f32 0.5, %v979
  %v981 = vsub.f32 1.5, %v980
  %v982 = vmul.f32 %v977, %v981
  %vm983 = vweird.f32 %v966
  %vm984 = vweird.f32 %v977
  %vm985 = vmor %vm983, %vm984
  %v986 = vsel %vm985, %v977, %v982
  %v987 = vmul.f32 %v953, %v976
  %v988 = vmul.f32 %v954, %v986
  %v990 = vperm.slane %v943, 0
  %v992 = vmul.f32 %v987, %v990
  %v993 = vmul.f32 %v988, %v990
  %v995 = vperm.slane %v944, 0
  %v997 = vadd.f32 %v992, %v995
  %v998 = vadd.f32 %v993, %v995
  %v999 = vld [vmem:[%s10] sm:$0xff]
  %v1000 = vld [vmem:[%s10 + $0x8] sm:$0xff]
  %v1001 = vld [vmem:[%s10 + $0x10] sm:$0xff]
  %v1002 = vld [vmem:[%s10 + $0x18] sm:$0xff]
  %v1003 = vld [vmem:[%s11] sm:$0x1]
  %v1005 = vperm.slane %v1003, 0
  %v1008 = vsel %vm63, %v997, 0
  %v1011 = vsel %vm63, %v998, 0
  %1013 = vmatpush.msra.mxu0 0.0
  %1014 = vmatpush.msra.mxu0 0.0
  %1015 = vmatpush.msra.mxu0 0.0
  %1016 = vmatpush.msra.mxu0 0.0
  %1017 = vmatpush.msra.mxu0 0.0
  %1018 = vmatpush.msra.mxu0 0.0
  %1019 = vmatpush.msra.mxu0 0.0
  %1020 = vmatpush.msra.mxu0 0.0
  %1021 = vmatpush.msra.mxu0 0.0
  %1022 = vmatpush.msra.mxu0 0.0
  %1023 = vmatpush.msra.mxu0 0.0
  %1024 = vmatpush.msra.mxu0 0.0
  %1025 = vmatpush.msra.mxu0 %v1002
  %1026 = vmatpush.msra.mxu0 %v1001
  %1027 = vmatpush.msra.mxu0 %v1000
  %1028 = vmatpush.msra.mxu0 %v999
  %1029 = vmatmul.f32.gmra.mxu0 %v1008
  %v1030 = vpop.f32.mrf.mxu0
  %v1031 = vadd.f32 %v1005, %v1030
  %1032 = vmatmul.f32.gmra.mxu0 %v1011
  %v1033 = vpop.f32.mrf.mxu0
  %v1034 = vadd.f32 %v1005, %v1033
  %1035 = vdwg.mxu0
  %v1036 = vmul.f32 %v1031, 0.5
  %v1037 = vmul.f32 %v1034, 0.5
  %v1038 = vmul.f32 %v1031, 0.044715
  %v1039 = vmul.f32 %v1034, 0.044715
  %v1040 = vmul.f32 %v1038, %v1031
  %v1041 = vmul.f32 %v1039, %v1034
  %v1042 = vmul.f32 %v1040, %v1031
  %v1043 = vmul.f32 %v1041, %v1034
  %v1044 = vadd.f32 %v1031, %v1042
  %v1045 = vadd.f32 %v1034, %v1043
  %v1046 = vmul.f32 %v1044, 0.7978846
  %v1047 = vmul.f32 %v1045, 0.7978846
  %v1048 = vtanh.pop %v1046
  %v1049 = vtanh.pop %v1047
  %v1050 = vadd.f32 %v1048, 1.0
  %v1051 = vadd.f32 %v1049, 1.0
  %v1052 = vmul.f32 %v1036, %v1050
  %v1053 = vmul.f32 %v1037, %v1051
  %v1054 = vld [vmem:[%s12] sm:$0xff]
  %v1055 = vld [vmem:[%s12 + $0x8] sm:$0xff]
  %v1056 = vld [vmem:[%s12 + $0x10] sm:$0xff]
  %v1057 = vld [vmem:[%s12 + $0x18] sm:$0xff]
  %v1058 = vld [vmem:[%s12 + $0x20] sm:$0xff]
  %v1059 = vld [vmem:[%s12 + $0x28] sm:$0xff]
  %v1060 = vld [vmem:[%s12 + $0x30] sm:$0xff]
  %v1061 = vld [vmem:[%s12 + $0x38] sm:$0xff]
  %v1062 = vld [vmem:[%s13] sm:$0x1]
  %v1064 = vperm.slane %v1062, 0
  %vm1066 = vcmask 523264
  %v1068 = vsel %vm1066, %v1052, 0
  %v1071 = vsel %vm1066, %v1053, 0
  %1073 = vmatpush.msra.mxu0 0.0
  %1074 = vmatpush.msra.mxu0 0.0
  %1075 = vmatpush.msra.mxu0 0.0
  %1076 = vmatpush.msra.mxu0 0.0
  %1077 = vmatpush.msra.mxu0 0.0
  %1078 = vmatpush.msra.mxu0 0.0
  %1079 = vmatpush.msra.mxu0 0.0
  %1080 = vmatpush.msra.mxu0 0.0
  %1081 = vmatpush.msra.mxu0 %v1061
  %1082 = vmatpush.msra.mxu0 %v1060
  %1083 = vmatpush.msra.mxu0 %v1059
  %1084 = vmatpush.msra.mxu0 %v1058
  %1085 = vmatpush.msra.mxu0 %v1057
  %1086 = vmatpush.msra.mxu0 %v1056
  %1087 = vmatpush.msra.mxu0 %v1055
  %1088 = vmatpush.msra.mxu0 %v1054
  %1089 = vmatmul.f32.gmra.mxu0 %v1068
  %v1090 = vpop.f32.mrf.mxu0
  %v1091 = vadd.f32 %v1064, %v1090
  %1092 = vmatmul.f32.gmra.mxu0 %v1071
  %v1093 = vpop.f32.mrf.mxu0
  %v1094 = vadd.f32 %v1064, %v1093
  %1095 = vdwg.mxu0
  %v1096 = vadd.f32 %v1091, %v997
  %v1097 = vadd.f32 %v1094, %v998
  %v1098 = vld [vmem:[%s14] sm:$0x1]
  %v1099 = vld [vmem:[%s15] sm:$0x1]
  %v1100 = vsel %vm63, %v1096, 0.0
  %1101 = vadd.xlane.f32.xlu0 %v1100
  %v1102 = vpop.xlane.xlu0 %1101
  %v1103 = vsel %vm63, %v1097, 0.0
  %1104 = vadd.xlane.f32.xlu0 %v1103
  %v1105 = vpop.xlane.xlu0 %1104
  %v1106 = vmul.f32 %v1102, %v76
  %v1107 = vmul.f32 %v1105, %v76
  %v1108 = vsub.f32 %v1096, %v1106
  %v1109 = vsub.f32 %v1097, %v1107
  %v1110 = vmul.f32 %v1108, %v1108
  %v1111 = vmul.f32 %v1109, %v1109
  %v1112 = vsel %vm63, %v1110, 0.0
  %1113 = vadd.xlane.f32.xlu0 %v1112
  %v1114 = vpop.xlane.xlu0 %1113
  %v1115 = vsel %vm63, %v1111, 0.0
  %1116 = vadd.xlane.f32.xlu0 %v1115
  %v1117 = vpop.xlane.xlu0 %1116
  %v1118 = vmul.f32 %v1114, %v76
  %v1119 = vmul.f32 %v1117, %v76
  %v1120 = vadd.f32 %v1118, 1e-12
  %v1121 = vadd.f32 %v1119, 1e-12
  %v1122 = vrsqrt.pop %v1120
  %v1123 = vmul.f32 %v1122, %v1120
  %v1124 = vmul.f32 %v1123, %v1122
  %v1125 = vmul.f32 0.5, %v1124
  %v1126 = vsub.f32 1.5, %v1125
  %v1127 = vmul.f32 %v1122, %v1126
  %vm1128 = vweird.f32 %v1120
  %vm1129 = vweird.f32 %v1122
  %vm1130 = vmor %vm1128, %vm1129
  %v1131 = vsel %vm1130, %v1122, %v1127
  %v1132 = vrsqrt.pop %v1121
  %v1133 = vmul.f32 %v1132, %v1121
  %v1134 = vmul.f32 %v1133, %v1132
  %v1135 = vmul.f32 0.5, %v1134
  %v1136 = vsub.f32 1.5, %v1135
  %v1137 = vmul.f32 %v1132, %v1136
  %vm1138 = vweird.f32 %v1121
  %vm1139 = vweird.f32 %v1132
  %vm1140 = vmor %vm1138, %vm1139
  %v1141 = vsel %vm1140, %v1132, %v1137
  %v1142 = vmul.f32 %v1108, %v1131
  %v1143 = vmul.f32 %v1109, %v1141
  %v1145 = vperm.slane %v1098, 0
  %v1147 = vmul.f32 %v1142, %v1145
  %v1148 = vmul.f32 %v1143, %v1145
  %v1150 = vperm.slane %v1099, 0
  %v1152 = vadd.f32 %v1147, %v1150
  %v1153 = vadd.f32 %v1148, %v1150
  %s1154 = scalar_lea.vmem %s4, 32
  %v1155 = vld [vmem:[%s1154] sm:$0xff]
  %v1156 = vld [vmem:[%s1154 + $0x8] sm:$0xff]
  %v1157 = vld [vmem:[%s1154 + $0x10] sm:$0xff]
  %v1158 = vld [vmem:[%s1154 + $0x18] sm:$0xff]
  %s1159 = scalar_lea.vmem %s5, 1
  %v1160 = vld [vmem:[%s1159] sm:$0x1]
  %v1162 = vperm.slane %v1160, 0
  %v1165 = vsel %vm63, %v1152, 0
  %v1168 = vsel %vm63, %v1153, 0
  %1170 = vmatpush.msra.mxu0 0.0
  %1171 = vmatpush.msra.mxu0 0.0
  %1172 = vmatpush.msra.mxu0 0.0
  %1173 = vmatpush.msra.mxu0 0.0
  %1174 = vmatpush.msra.mxu0 0.0
  %1175 = vmatpush.msra.mxu0 0.0
  %1176 = vmatpush.msra.mxu0 0.0
  %1177 = vmatpush.msra.mxu0 0.0
  %1178 = vmatpush.msra.mxu0 0.0
  %1179 = vmatpush.msra.mxu0 0.0
  %1180 = vmatpush.msra.mxu0 0.0
  %1181 = vmatpush.msra.mxu0 0.0
  %1182 = vmatpush.msra.mxu0 %v1158
  %1183 = vmatpush.msra.mxu0 %v1157
  %1184 = vmatpush.msra.mxu0 %v1156
  %1185 = vmatpush.msra.mxu0 %v1155
  %1186 = vmatmul.f32.gmra.mxu0 %v1165
  %v1187 = vpop.f32.mrf.mxu0
  %v1188 = vadd.f32 %v1162, %v1187
  %1189 = vmatmul.f32.gmra.mxu0 %v1168
  %v1190 = vpop.f32.mrf.mxu0
  %v1191 = vadd.f32 %v1162, %v1190
  %1192 = vdwg.mxu0
  %s1193 = scalar_lea.vmem %s6, 32
  %v1194 = vld [vmem:[%s1193] sm:$0xff]
  %v1195 = vld [vmem:[%s1193 + $0x8] sm:$0xff]
  %v1196 = vld [vmem:[%s1193 + $0x10] sm:$0xff]
  %v1197 = vld [vmem:[%s1193 + $0x18] sm:$0xff]
  %s1198 = scalar_lea.vmem %s7, 1
  %v1199 = vld [vmem:[%s1198] sm:$0x1]
  %v1201 = vperm.slane %v1199, 0
  %v1203 = vadd.f32 %v1201, 0.0
  %1205 = vrot.lane.b32.xlu0 %v1188, 96
  %v1206 = vpop.permute.xlu0 %1205
  %v1207 = vsel %vm175, %v1188, 0
  %v1209 = vsel %vm175, %v1206, 0
  %1211 = vmatpush.xpose.msra.mxu0 0.0
  %1212 = vmatpush.xpose.msra.mxu0 0.0
  %1213 = vmatpush.xpose.msra.mxu0 0.0
  %1214 = vmatpush.xpose.msra.mxu0 0.0
  %1215 = vmatpush.xpose.msra.mxu0 0.0
  %1216 = vmatpush.xpose.msra.mxu0 0.0
  %1217 = vmatpush.xpose.msra.mxu0 0.0
  %1218 = vmatpush.xpose.msra.mxu0 0.0
  %1219 = vmatpush.xpose.msra.mxu0 0.0
  %1220 = vmatpush.xpose.msra.mxu0 0.0
  %1221 = vmatpush.xpose.msra.mxu0 0.0
  %1222 = vmatpush.xpose.msra.mxu0 0.0
  %1223 = vmatpush.xpose.msra.mxu0 0.0
  %1224 = vmatpush.xpose.msra.mxu0 0.0
  %1225 = vmatpush.xpose.msra.mxu0 0.0
  %1226 = vmatpush.xpose.msra.mxu0 %v1209
  %1227 = vmatmul.f32.gmra.mxu0 %v1207
  %v1228 = vpop.f32.mrf.mxu0
  %v1229 = vadd.f32 0.0, %v1228
  %1230 = vdwg.mxu0
  %1232 = vrot.lane.b32.xlu0 %v1191, 96
  %v1233 = vpop.permute.xlu0 %1232
  %v1234 = vsel %vm175, %v1191, 0
  %v1236 = vsel %vm175, %v1233, 0
  %1238 = vmatpush.xpose.msra.mxu0 0.0
  %1239 = vmatpush.xpose.msra.mxu0 0.0
  %1240 = vmatpush.xpose.msra.mxu0 0.0
  %1241 = vmatpush.xpose.msra.mxu0 0.0
  %1242 = vmatpush.xpose.msra.mxu0 0.0
  %1243 = vmatpush.xpose.msra.mxu0 0.0
  %1244 = vmatpush.xpose.msra.mxu0 0.0
  %1245 = vmatpush.xpose.msra.mxu0 0.0
  %1246 = vmatpush.xpose.msra.mxu0 0.0
  %1247 = vmatpush.xpose.msra.mxu0 0.0
  %1248 = vmatpush.xpose.msra.mxu0 0.0
  %1249 = vmatpush.xpose.msra.mxu0 0.0
  %1250 = vmatpush.xpose.msra.mxu0 0.0
  %1251 = vmatpush.xpose.msra.mxu0 0.0
  %1252 = vmatpush.xpose.msra.mxu0 0.0
  %1253 = vmatpush.xpose.msra.mxu0 %v1236
  %1254 = vmatmul.f32.gmra.mxu0 %v1234
  %v1255 = vpop.f32.mrf.mxu0
  %v1256 = vadd.f32 0.0, %v1255
  %1257 = vdwg.mxu0
  %v1258 = vmul.f32 %v1229, 0.35355338
  %v1259 = vmul.f32 %v1256, 0.35355338
  %v1260 = vadd.f32 %v1258, %v231
  %v1261 = vadd.f32 %v1259, %v232
  %v1262 = vsel %vm175, %v1260, -inf
  %1263 = vmax.xlane.f32.xlu0 %v1262
  %v1264 = vpop.xlane.xlu0 %1263
  %v1265 = vsel %vm175, %v1261, -inf
  %1266 = vmax.xlane.f32.xlu0 %v1265
  %v1267 = vpop.xlane.xlu0 %1266
  %v1268 = vsub.f32 %v1260, %v1264
  %v1269 = vsub.f32 %v1261, %v1267
  %v1270 = vmul.f32 %v1268, 1.442695
  %v1271 = vpow.pop %v1270
  %v1272 = vmul.f32 %v1269, 1.442695
  %v1273 = vpow.pop %v1272
  %v1274 = vsel %vm175, %v1271, 0.0
  %1275 = vadd.xlane.f32.xlu0 %v1274
  %v1276 = vpop.xlane.xlu0 %1275
  %v1277 = vsel %vm175, %v1273, 0.0
  %1278 = vadd.xlane.f32.xlu0 %v1277
  %v1279 = vpop.xlane.xlu0 %1278
  %v1280 = vrcp.pop %v1276
  %v1281 = vmul.f32 %v1276, %v1280
  %v1282 = vsub.f32 1.0, %v1281
  %v1283 = vmul.f32 %v1280, %v1282
  %v1284 = vadd.f32 %v1280, %v1283
  %vm1285 = vweird.f32 %v1276
  %vm1286 = vweird.f32 %v1280
  %vm1287 = vmor %vm1285, %vm1286
  %v1288 = vsel %vm1287, %v1280, %v1284
  %v1289 = vand.u32 2147483647, %v1276
  %vm1290 = vcmp.eq.f32.partialorder %v1289, 8.507059e+37
  %v1291 = vand.u32 %v1276, 2147483648
  %v1292 = vor.u32 1.1754944e-38, %v1291
  %v1293 = vsel %vm1290, %v1292, %v1288
  %v1294 = vmul.f32 %v1271, %v1293
  %v1295 = vrcp.pop %v1279
  %v1296 = vmul.f32 %v1279, %v1295
  %v1297 = vsub.f32 1.0, %v1296
  %v1298 = vmul.f32 %v1295, %v1297
  %v1299 = vadd.f32 %v1295, %v1298
  %vm1300 = vweird.f32 %v1279
  %vm1301 = vweird.f32 %v1295
  %vm1302 = vmor %vm1300, %vm1301
  %v1303 = vsel %vm1302, %v1295, %v1299
  %v1304 = vand.u32 2147483647, %v1279
  %vm1305 = vcmp.eq.f32.partialorder %v1304, 8.507059e+37
  %v1306 = vand.u32 %v1279, 2147483648
  %v1307 = vor.u32 1.1754944e-38, %v1306
  %v1308 = vsel %vm1305, %v1307, %v1303
  %v1309 = vmul.f32 %v1273, %v1308
  %1310 = vrot.lane.b32.xlu0 %v1188, 64
  %v1311 = vpop.permute.xlu0 %1310
  %v1314 = vsel %vm175, %v1294, 0
  %1316 = vmatpush.msra.mxu0 0.0
  %1317 = vmatpush.msra.mxu0 0.0
  %1318 = vmatpush.msra.mxu0 0.0
  %1319 = vmatpush.msra.mxu0 0.0
  %1320 = vmatpush.msra.mxu0 0.0
  %1321 = vmatpush.msra.mxu0 0.0
  %1322 = vmatpush.msra.mxu0 0.0
  %1323 = vmatpush.msra.mxu0 0.0
  %1324 = vmatpush.msra.mxu0 0.0
  %1325 = vmatpush.msra.mxu0 0.0
  %1326 = vmatpush.msra.mxu0 0.0
  %1327 = vmatpush.msra.mxu0 0.0
  %1328 = vmatpush.msra.mxu0 0.0
  %1329 = vmatpush.msra.mxu0 0.0
  %1330 = vmatpush.msra.mxu0 0.0
  %1331 = vmatpush.msra.mxu0 %v1311
  %1332 = vmatmul.f32.gmra.mxu0 %v1314
  %v1333 = vpop.f32.mrf.mxu0
  %v1334 = vadd.f32 0.0, %v1333
  %1335 = vdwg.mxu0
  %1336 = vrot.lane.b32.xlu0 %v1191, 64
  %v1337 = vpop.permute.xlu0 %1336
  %v1340 = vsel %vm175, %v1309, 0
  %1342 = vmatpush.msra.mxu0 0.0
  %1343 = vmatpush.msra.mxu0 0.0
  %1344 = vmatpush.msra.mxu0 0.0
  %1345 = vmatpush.msra.mxu0 0.0
  %1346 = vmatpush.msra.mxu0 0.0
  %1347 = vmatpush.msra.mxu0 0.0
  %1348 = vmatpush.msra.mxu0 0.0
  %1349 = vmatpush.msra.mxu0 0.0
  %1350 = vmatpush.msra.mxu0 0.0
  %1351 = vmatpush.msra.mxu0 0.0
  %1352 = vmatpush.msra.mxu0 0.0
  %1353 = vmatpush.msra.mxu0 0.0
  %1354 = vmatpush.msra.mxu0 0.0
  %1355 = vmatpush.msra.mxu0 0.0
  %1356 = vmatpush.msra.mxu0 0.0
  %1357 = vmatpush.msra.mxu0 %v1337
  %1358 = vmatmul.f32.gmra.mxu0 %v1340
  %v1359 = vpop.f32.mrf.mxu0
  %v1360 = vadd.f32 0.0, %v1359
  %1361 = vdwg.mxu0
  %v1363 = vsel %vm175, %v1334, 0
  %v1366 = vsel %vm175, %v1360, 0
  %1368 = vmatpush.msra.mxu0 0.0
  %1369 = vmatpush.msra.mxu0 0.0
  %1370 = vmatpush.msra.mxu0 0.0
  %1371 = vmatpush.msra.mxu0 0.0
  %1372 = vmatpush.msra.mxu0 0.0
  %1373 = vmatpush.msra.mxu0 0.0
  %1374 = vmatpush.msra.mxu0 0.0
  %1375 = vmatpush.msra.mxu0 0.0
  %1376 = vmatpush.msra.mxu0 0.0
  %1377 = vmatpush.msra.mxu0 0.0
  %1378 = vmatpush.msra.mxu0 0.0
  %1379 = vmatpush.msra.mxu0 0.0
  %1380 = vmatpush.msra.mxu0 0.0
  %1381 = vmatpush.msra.mxu0 0.0
  %1382 = vmatpush.msra.mxu0 0.0
  %1383 = vmatpush.msra.mxu0 %v1194
  %1384 = vmatmul.f32.gmra.mxu0 %v1363
  %v1385 = vpop.f32.mrf.mxu0
  %v1386 = vadd.f32 0.0, %v1385
  %1387 = vmatmul.f32.gmra.mxu0 %v1366
  %v1388 = vpop.f32.mrf.mxu0
  %v1389 = vadd.f32 0.0, %v1388
  %1390 = vdwg.mxu0
  %v1391 = vadd.f32 %v1203, %v1386
  %v1392 = vadd.f32 %v1203, %v1389
  %1393 = vrot.lane.b32.xlu0 %v1188, 120
  %v1394 = vpop.permute.xlu0 %1393
  %1395 = vrot.lane.b32.xlu0 %v1188, 88
  %v1396 = vpop.permute.xlu0 %1395
  %v1397 = vsel %vm175, %v1394, 0
  %v1399 = vsel %vm175, %v1396, 0
  %1401 = vmatpush.xpose.msra.mxu0 0.0
  %1402 = vmatpush.xpose.msra.mxu0 0.0
  %1403 = vmatpush.xpose.msra.mxu0 0.0
  %1404 = vmatpush.xpose.msra.mxu0 0.0
  %1405 = vmatpush.xpose.msra.mxu0 0.0
  %1406 = vmatpush.xpose.msra.mxu0 0.0
  %1407 = vmatpush.xpose.msra.mxu0 0.0
  %1408 = vmatpush.xpose.msra.mxu0 0.0
  %1409 = vmatpush.xpose.msra.mxu0 0.0
  %1410 = vmatpush.xpose.msra.mxu0 0.0
  %1411 = vmatpush.xpose.msra.mxu0 0.0
  %1412 = vmatpush.xpose.msra.mxu0 0.0
  %1413 = vmatpush.xpose.msra.mxu0 0.0
  %1414 = vmatpush.xpose.msra.mxu0 0.0
  %1415 = vmatpush.xpose.msra.mxu0 0.0
  %1416 = vmatpush.xpose.msra.mxu0 %v1399
  %1417 = vmatmul.f32.gmra.mxu0 %v1397
  %v1418 = vpop.f32.mrf.mxu0
  %v1419 = vadd.f32 0.0, %v1418
  %1420 = vdwg.mxu0
  %1421 = vrot.lane.b32.xlu0 %v1191, 120
  %v1422 = vpop.permute.xlu0 %1421
  %1423 = vrot.lane.b32.xlu0 %v1191, 88
  %v1424 = vpop.permute.xlu0 %1423
  %v1425 = vsel %vm175, %v1422, 0
  %v1427 = vsel %vm175, %v1424, 0
  %1429 = vmatpush.xpose.msra.mxu0 0.0
  %1430 = vmatpush.xpose.msra.mxu0 0.0
  %1431 = vmatpush.xpose.msra.mxu0 0.0
  %1432 = vmatpush.xpose.msra.mxu0 0.0
  %1433 = vmatpush.xpose.msra.mxu0 0.0
  %1434 = vmatpush.xpose.msra.mxu0 0.0
  %1435 = vmatpush.xpose.msra.mxu0 0.0
  %1436 = vmatpush.xpose.msra.mxu0 0.0
  %1437 = vmatpush.xpose.msra.mxu0 0.0
  %1438 = vmatpush.xpose.msra.mxu0 0.0
  %1439 = vmatpush.xpose.msra.mxu0 0.0
  %1440 = vmatpush.xpose.msra.mxu0 0.0
  %1441 = vmatpush.xpose.msra.mxu0 0.0
  %1442 = vmatpush.xpose.msra.mxu0 0.0
  %1443 = vmatpush.xpose.msra.mxu0 0.0
  %1444 = vmatpush.xpose.msra.mxu0 %v1427
  %1445 = vmatmul.f32.gmra.mxu0 %v1425
  %v1446 = vpop.f32.mrf.mxu0
  %v1447 = vadd.f32 0.0, %v1446
  %1448 = vdwg.mxu0
  %v1449 = vmul.f32 %v1419, 0.35355338
  %v1450 = vmul.f32 %v1447, 0.35355338
  %v1451 = vadd.f32 %v1449, %v231
  %v1452 = vadd.f32 %v1450, %v232
  %v1453 = vsel %vm175, %v1451, -inf
  %1454 = vmax.xlane.f32.xlu0 %v1453
  %v1455 = vpop.xlane.xlu0 %1454
  %v1456 = vsel %vm175, %v1452, -inf
  %1457 = vmax.xlane.f32.xlu0 %v1456
  %v1458 = vpop.xlane.xlu0 %1457
  %v1459 = vsub.f32 %v1451, %v1455
  %v1460 = vsub.f32 %v1452, %v1458
  %v1461 = vmul.f32 %v1459, 1.442695
  %v1462 = vpow.pop %v1461
  %v1463 = vmul.f32 %v1460, 1.442695
  %v1464 = vpow.pop %v1463
  %v1465 = vsel %vm175, %v1462, 0.0
  %1466 = vadd.xlane.f32.xlu0 %v1465
  %v1467 = vpop.xlane.xlu0 %1466
  %v1468 = vsel %vm175, %v1464, 0.0
  %1469 = vadd.xlane.f32.xlu0 %v1468
  %v1470 = vpop.xlane.xlu0 %1469
  %v1471 = vrcp.pop %v1467
  %v1472 = vmul.f32 %v1467, %v1471
  %v1473 = vsub.f32 1.0, %v1472
  %v1474 = vmul.f32 %v1471, %v1473
  %v1475 = vadd.f32 %v1471, %v1474
  %vm1476 = vweird.f32 %v1467
  %vm1477 = vweird.f32 %v1471
  %vm1478 = vmor %vm1476, %vm1477
  %v1479 = vsel %vm1478, %v1471, %v1475
  %v1480 = vand.u32 2147483647, %v1467
  %vm1481 = vcmp.eq.f32.partialorder %v1480, 8.507059e+37
  %v1482 = vand.u32 %v1467, 2147483648
  %v1483 = vor.u32 1.1754944e-38, %v1482
  %v1484 = vsel %vm1481, %v1483, %v1479
  %v1485 = vmul.f32 %v1462, %v1484
  %v1486 = vrcp.pop %v1470
  %v1487 = vmul.f32 %v1470, %v1486
  %v1488 = vsub.f32 1.0, %v1487
  %v1489 = vmul.f32 %v1486, %v1488
  %v1490 = vadd.f32 %v1486, %v1489
  %vm1491 = vweird.f32 %v1470
  %vm1492 = vweird.f32 %v1486
  %vm1493 = vmor %vm1491, %vm1492
  %v1494 = vsel %vm1493, %v1486, %v1490
  %v1495 = vand.u32 2147483647, %v1470
  %vm1496 = vcmp.eq.f32.partialorder %v1495, 8.507059e+37
  %v1497 = vand.u32 %v1470, 2147483648
  %v1498 = vor.u32 1.1754944e-38, %v1497
  %v1499 = vsel %vm1496, %v1498, %v1494
  %v1500 = vmul.f32 %v1464, %v1499
  %1501 = vrot.lane.b32.xlu0 %v1188, 56
  %v1502 = vpop.permute.xlu0 %1501
  %v1505 = vsel %vm175, %v1485, 0
  %1507 = vmatpush.msra.mxu0 0.0
  %1508 = vmatpush.msra.mxu0 0.0
  %1509 = vmatpush.msra.mxu0 0.0
  %1510 = vmatpush.msra.mxu0 0.0
  %1511 = vmatpush.msra.mxu0 0.0
  %1512 = vmatpush.msra.mxu0 0.0
  %1513 = vmatpush.msra.mxu0 0.0
  %1514 = vmatpush.msra.mxu0 0.0
  %1515 = vmatpush.msra.mxu0 0.0
  %1516 = vmatpush.msra.mxu0 0.0
  %1517 = vmatpush.msra.mxu0 0.0
  %1518 = vmatpush.msra.mxu0 0.0
  %1519 = vmatpush.msra.mxu0 0.0
  %1520 = vmatpush.msra.mxu0 0.0
  %1521 = vmatpush.msra.mxu0 0.0
  %1522 = vmatpush.msra.mxu0 %v1502
  %1523 = vmatmul.f32.gmra.mxu0 %v1505
  %v1524 = vpop.f32.mrf.mxu0
  %v1525 = vadd.f32 0.0, %v1524
  %1526 = vdwg.mxu0
  %1527 = vrot.lane.b32.xlu0 %v1191, 56
  %v1528 = vpop.permute.xlu0 %1527
  %v1531 = vsel %vm175, %v1500, 0
  %1533 = vmatpush.msra.mxu0 0.0
  %1534 = vmatpush.msra.mxu0 0.0
  %1535 = vmatpush.msra.mxu0 0.0
  %1536 = vmatpush.msra.mxu0 0.0
  %1537 = vmatpush.msra.mxu0 0.0
  %1538 = vmatpush.msra.mxu0 0.0
  %1539 = vmatpush.msra.mxu0 0.0
  %1540 = vmatpush.msra.mxu0 0.0
  %1541 = vmatpush.msra.mxu0 0.0
  %1542 = vmatpush.msra.mxu0 0.0
  %1543 = vmatpush.msra.mxu0 0.0
  %1544 = vmatpush.msra.mxu0 0.0
  %1545 = vmatpush.msra.mxu0 0.0
  %1546 = vmatpush.msra.mxu0 0.0
  %1547 = vmatpush.msra.mxu0 0.0
  %1548 = vmatpush.msra.mxu0 %v1528
  %1549 = vmatmul.f32.gmra.mxu0 %v1531
  %v1550 = vpop.f32.mrf.mxu0
  %v1551 = vadd.f32 0.0, %v1550
  %1552 = vdwg.mxu0
  %v1554 = vsel %vm175, %v1525, 0
  %v1557 = vsel %vm175, %v1551, 0
  %1559 = vmatpush.msra.mxu0 0.0
  %1560 = vmatpush.msra.mxu0 0.0
  %1561 = vmatpush.msra.mxu0 0.0
  %1562 = vmatpush.msra.mxu0 0.0
  %1563 = vmatpush.msra.mxu0 0.0
  %1564 = vmatpush.msra.mxu0 0.0
  %1565 = vmatpush.msra.mxu0 0.0
  %1566 = vmatpush.msra.mxu0 0.0
  %1567 = vmatpush.msra.mxu0 0.0
  %1568 = vmatpush.msra.mxu0 0.0
  %1569 = vmatpush.msra.mxu0 0.0
  %1570 = vmatpush.msra.mxu0 0.0
  %1571 = vmatpush.msra.mxu0 0.0
  %1572 = vmatpush.msra.mxu0 0.0
  %1573 = vmatpush.msra.mxu0 0.0
  %1574 = vmatpush.msra.mxu0 %v1195
  %1575 = vmatmul.f32.gmra.mxu0 %v1554
  %v1576 = vpop.f32.mrf.mxu0
  %v1577 = vadd.f32 0.0, %v1576
  %1578 = vmatmul.f32.gmra.mxu0 %v1557
  %v1579 = vpop.f32.mrf.mxu0
  %v1580 = vadd.f32 0.0, %v1579
  %1581 = vdwg.mxu0
  %v1582 = vadd.f32 %v1391, %v1577
  %v1583 = vadd.f32 %v1392, %v1580
  %1584 = vrot.lane.b32.xlu0 %v1188, 112
  %v1585 = vpop.permute.xlu0 %1584
  %1586 = vrot.lane.b32.xlu0 %v1188, 80
  %v1587 = vpop.permute.xlu0 %1586
  %v1588 = vsel %vm175, %v1585, 0
  %v1590 = vsel %vm175, %v1587, 0
  %1592 = vmatpush.xpose.msra.mxu0 0.0
  %1593 = vmatpush.xpose.msra.mxu0 0.0
  %1594 = vmatpush.xpose.msra.mxu0 0.0
  %1595 = vmatpush.xpose.msra.mxu0 0.0
  %1596 = vmatpush.xpose.msra.mxu0 0.0
  %1597 = vmatpush.xpose.msra.mxu0 0.0
  %1598 = vmatpush.xpose.msra.mxu0 0.0
  %1599 = vmatpush.xpose.msra.mxu0 0.0
  %1600 = vmatpush.xpose.msra.mxu0 0.0
  %1601 = vmatpush.xpose.msra.mxu0 0.0
  %1602 = vmatpush.xpose.msra.mxu0 0.0
  %1603 = vmatpush.xpose.msra.mxu0 0.0
  %1604 = vmatpush.xpose.msra.mxu0 0.0
  %1605 = vmatpush.xpose.msra.mxu0 0.0
  %1606 = vmatpush.xpose.msra.mxu0 0.0
  %1607 = vmatpush.xpose.msra.mxu0 %v1590
  %1608 = vmatmul.f32.gmra.mxu0 %v1588
  %v1609 = vpop.f32.mrf.mxu0
  %v1610 = vadd.f32 0.0, %v1609
  %1611 = vdwg.mxu0
  %1612 = vrot.lane.b32.xlu0 %v1191, 112
  %v1613 = vpop.permute.xlu0 %1612
  %1614 = vrot.lane.b32.xlu0 %v1191, 80
  %v1615 = vpop.permute.xlu0 %1614
  %v1616 = vsel %vm175, %v1613, 0
  %v1618 = vsel %vm175, %v1615, 0
  %1620 = vmatpush.xpose.msra.mxu0 0.0
  %1621 = vmatpush.xpose.msra.mxu0 0.0
  %1622 = vmatpush.xpose.msra.mxu0 0.0
  %1623 = vmatpush.xpose.msra.mxu0 0.0
  %1624 = vmatpush.xpose.msra.mxu0 0.0
  %1625 = vmatpush.xpose.msra.mxu0 0.0
  %1626 = vmatpush.xpose.msra.mxu0 0.0
  %1627 = vmatpush.xpose.msra.mxu0 0.0
  %1628 = vmatpush.xpose.msra.mxu0 0.0
  %1629 = vmatpush.xpose.msra.mxu0 0.0
  %1630 = vmatpush.xpose.msra.mxu0 0.0
  %1631 = vmatpush.xpose.msra.mxu0 0.0
  %1632 = vmatpush.xpose.msra.mxu0 0.0
  %1633 = vmatpush.xpose.msra.mxu0 0.0
  %1634 = vmatpush.xpose.msra.mxu0 0.0
  %1635 = vmatpush.xpose.msra.mxu0 %v1618
  %1636 = vmatmul.f32.gmra.mxu0 %v1616
  %v1637 = vpop.f32.mrf.mxu0
  %v1638 = vadd.f32 0.0, %v1637
  %1639 = vdwg.mxu0
  %v1640 = vmul.f32 %v1610, 0.35355338
  %v1641 = vmul.f32 %v1638, 0.35355338
  %v1642 = vadd.f32 %v1640, %v231
  %v1643 = vadd.f32 %v1641, %v232
  %v1644 = vsel %vm175, %v1642, -inf
  %1645 = vmax.xlane.f32.xlu0 %v1644
  %v1646 = vpop.xlane.xlu0 %1645
  %v1647 = vsel %vm175, %v1643, -inf
  %1648 = vmax.xlane.f32.xlu0 %v1647
  %v1649 = vpop.xlane.xlu0 %1648
  %v1650 = vsub.f32 %v1642, %v1646
  %v1651 = vsub.f32 %v1643, %v1649
  %v1652 = vmul.f32 %v1650, 1.442695
  %v1653 = vpow.pop %v1652
  %v1654 = vmul.f32 %v1651, 1.442695
  %v1655 = vpow.pop %v1654
  %v1656 = vsel %vm175, %v1653, 0.0
  %1657 = vadd.xlane.f32.xlu0 %v1656
  %v1658 = vpop.xlane.xlu0 %1657
  %v1659 = vsel %vm175, %v1655, 0.0
  %1660 = vadd.xlane.f32.xlu0 %v1659
  %v1661 = vpop.xlane.xlu0 %1660
  %v1662 = vrcp.pop %v1658
  %v1663 = vmul.f32 %v1658, %v1662
  %v1664 = vsub.f32 1.0, %v1663
  %v1665 = vmul.f32 %v1662, %v1664
  %v1666 = vadd.f32 %v1662, %v1665
  %vm1667 = vweird.f32 %v1658
  %vm1668 = vweird.f32 %v1662
  %vm1669 = vmor %vm1667, %vm1668
  %v1670 = vsel %vm1669, %v1662, %v1666
  %v1671 = vand.u32 2147483647, %v1658
  %vm1672 = vcmp.eq.f32.partialorder %v1671, 8.507059e+37
  %v1673 = vand.u32 %v1658, 2147483648
  %v1674 = vor.u32 1.1754944e-38, %v1673
  %v1675 = vsel %vm1672, %v1674, %v1670
  %v1676 = vmul.f32 %v1653, %v1675
  %v1677 = vrcp.pop %v1661
  %v1678 = vmul.f32 %v1661, %v1677
  %v1679 = vsub.f32 1.0, %v1678
  %v1680 = vmul.f32 %v1677, %v1679
  %v1681 = vadd.f32 %v1677, %v1680
  %vm1682 = vweird.f32 %v1661
  %vm1683 = vweird.f32 %v1677
  %vm1684 = vmor %vm1682, %vm1683
  %v1685 = vsel %vm1684, %v1677, %v1681
  %v1686 = vand.u32 2147483647, %v1661
  %vm1687 = vcmp.eq.f32.partialorder %v1686, 8.507059e+37
  %v1688 = vand.u32 %v1661, 2147483648
  %v1689 = vor.u32 1.1754944e-38, %v1688
  %v1690 = vsel %vm1687, %v1689, %v1685
  %v1691 = vmul.f32 %v1655, %v1690
  %1692 = vrot.lane.b32.xlu0 %v1188, 48
  %v1693 = vpop.permute.xlu0 %1692
  %v1696 = vsel %vm175, %v1676, 0
  %1698 = vmatpush.msra.mxu0 0.0
  %1699 = vmatpush.msra.mxu0 0.0
  %1700 = vmatpush.msra.mxu0 0.0
  %1701 = vmatpush.msra.mxu0 0.0
  %1702 = vmatpush.msra.mxu0 0.0
  %1703 = vmatpush.msra.mxu0 0.0
  %1704 = vmatpush.msra.mxu0 0.0
  %1705 = vmatpush.msra.mxu0 0.0
  %1706 = vmatpush.msra.mxu0 0.0
  %1707 = vmatpush.msra.mxu0 0.0
  %1708 = vmatpush.msra.mxu0 0.0
  %1709 = vmatpush.msra.mxu0 0.0
  %1710 = vmatpush.msra.mxu0 0.0
  %1711 = vmatpush.msra.mxu0 0.0
  %1712 = vmatpush.msra.mxu0 0.0
  %1713 = vmatpush.msra.mxu0 %v1693
  %1714 = vmatmul.f32.gmra.mxu0 %v1696
  %v1715 = vpop.f32.mrf.mxu0
  %v1716 = vadd.f32 0.0, %v1715
  %1717 = vdwg.mxu0
  %1718 = vrot.lane.b32.xlu0 %v1191, 48
  %v1719 = vpop.permute.xlu0 %1718
  %v1722 = vsel %vm175, %v1691, 0
  %1724 = vmatpush.msra.mxu0 0.0
  %1725 = vmatpush.msra.mxu0 0.0
  %1726 = vmatpush.msra.mxu0 0.0
  %1727 = vmatpush.msra.mxu0 0.0
  %1728 = vmatpush.msra.mxu0 0.0
  %1729 = vmatpush.msra.mxu0 0.0
  %1730 = vmatpush.msra.mxu0 0.0
  %1731 = vmatpush.msra.mxu0 0.0
  %1732 = vmatpush.msra.mxu0 0.0
  %1733 = vmatpush.msra.mxu0 0.0
  %1734 = vmatpush.msra.mxu0 0.0
  %1735 = vmatpush.msra.mxu0 0.0
  %1736 = vmatpush.msra.mxu0 0.0
  %1737 = vmatpush.msra.mxu0 0.0
  %1738 = vmatpush.msra.mxu0 0.0
  %1739 = vmatpush.msra.mxu0 %v1719
  %1740 = vmatmul.f32.gmra.mxu0 %v1722
  %v1741 = vpop.f32.mrf.mxu0
  %v1742 = vadd.f32 0.0, %v1741
  %1743 = vdwg.mxu0
  %v1745 = vsel %vm175, %v1716, 0
  %v1748 = vsel %vm175, %v1742, 0
  %1750 = vmatpush.msra.mxu0 0.0
  %1751 = vmatpush.msra.mxu0 0.0
  %1752 = vmatpush.msra.mxu0 0.0
  %1753 = vmatpush.msra.mxu0 0.0
  %1754 = vmatpush.msra.mxu0 0.0
  %1755 = vmatpush.msra.mxu0 0.0
  %1756 = vmatpush.msra.mxu0 0.0
  %1757 = vmatpush.msra.mxu0 0.0
  %1758 = vmatpush.msra.mxu0 0.0
  %1759 = vmatpush.msra.mxu0 0.0
  %1760 = vmatpush.msra.mxu0 0.0
  %1761 = vmatpush.msra.mxu0 0.0
  %1762 = vmatpush.msra.mxu0 0.0
  %1763 = vmatpush.msra.mxu0 0.0
  %1764 = vmatpush.msra.mxu0 0.0
  %1765 = vmatpush.msra.mxu0 %v1196
  %1766 = vmatmul.f32.gmra.mxu0 %v1745
  %v1767 = vpop.f32.mrf.mxu0
  %v1768 = vadd.f32 0.0, %v1767
  %1769 = vmatmul.f32.gmra.mxu0 %v1748
  %v1770 = vpop.f32.mrf.mxu0
  %v1771 = vadd.f32 0.0, %v1770
  %1772 = vdwg.mxu0
  %v1773 = vadd.f32 %v1582, %v1768
  %v1774 = vadd.f32 %v1583, %v1771
  %1775 = vrot.lane.b32.xlu0 %v1188, 104
  %v1776 = vpop.permute.xlu0 %1775
  %1777 = vrot.lane.b32.xlu0 %v1188, 72
  %v1778 = vpop.permute.xlu0 %1777
  %v1779 = vsel %vm175, %v1776, 0
  %v1781 = vsel %vm175, %v1778, 0
  %1783 = vmatpush.xpose.msra.mxu0 0.0
  %1784 = vmatpush.xpose.msra.mxu0 0.0
  %1785 = vmatpush.xpose.msra.mxu0 0.0
  %1786 = vmatpush.xpose.msra.mxu0 0.0
  %1787 = vmatpush.xpose.msra.mxu0 0.0
  %1788 = vmatpush.xpose.msra.mxu0 0.0
  %1789 = vmatpush.xpose.msra.mxu0 0.0
  %1790 = vmatpush.xpose.msra.mxu0 0.0
  %1791 = vmatpush.xpose.msra.mxu0 0.0
  %1792 = vmatpush.xpose.msra.mxu0 0.0
  %1793 = vmatpush.xpose.msra.mxu0 0.0
  %1794 = vmatpush.xpose.msra.mxu0 0.0
  %1795 = vmatpush.xpose.msra.mxu0 0.0
  %1796 = vmatpush.xpose.msra.mxu0 0.0
  %1797 = vmatpush.xpose.msra.mxu0 0.0
  %1798 = vmatpush.xpose.msra.mxu0 %v1781
  %1799 = vmatmul.f32.gmra.mxu0 %v1779
  %v1800 = vpop.f32.mrf.mxu0
  %v1801 = vadd.f32 0.0, %v1800
  %1802 = vdwg.mxu0
  %1803 = vrot.lane.b32.xlu0 %v1191, 104
  %v1804 = vpop.permute.xlu0 %1803
  %1805 = vrot.lane.b32.xlu0 %v1191, 72
  %v1806 = vpop.permute.xlu0 %1805
  %v1807 = vsel %vm175, %v1804, 0
  %v1809 = vsel %vm175, %v1806, 0
  %1811 = vmatpush.xpose.msra.mxu0 0.0
  %1812 = vmatpush.xpose.msra.mxu0 0.0
  %1813 = vmatpush.xpose.msra.mxu0 0.0
  %1814 = vmatpush.xpose.msra.mxu0 0.0
  %1815 = vmatpush.xpose.msra.mxu0 0.0
  %1816 = vmatpush.xpose.msra.mxu0 0.0
  %1817 = vmatpush.xpose.msra.mxu0 0.0
  %1818 = vmatpush.xpose.msra.mxu0 0.0
  %1819 = vmatpush.xpose.msra.mxu0 0.0
  %1820 = vmatpush.xpose.msra.mxu0 0.0
  %1821 = vmatpush.xpose.msra.mxu0 0.0
  %1822 = vmatpush.xpose.msra.mxu0 0.0
  %1823 = vmatpush.xpose.msra.mxu0 0.0
  %1824 = vmatpush.xpose.msra.mxu0 0.0
  %1825 = vmatpush.xpose.msra.mxu0 0.0
  %1826 = vmatpush.xpose.msra.mxu0 %v1809
  %1827 = vmatmul.f32.gmra.mxu0 %v1807
  %v1828 = vpop.f32.mrf.mxu0
  %v1829 = vadd.f32 0.0, %v1828
  %1830 = vdwg.mxu0
  %v1831 = vmul.f32 %v1801, 0.35355338
  %v1832 = vmul.f32 %v1829, 0.35355338
  %v1833 = vadd.f32 %v1831, %v231
  %v1834 = vadd.f32 %v1832, %v232
  %v1835 = vsel %vm175, %v1833, -inf
  %1836 = vmax.xlane.f32.xlu0 %v1835
  %v1837 = vpop.xlane.xlu0 %1836
  %v1838 = vsel %vm175, %v1834, -inf
  %1839 = vmax.xlane.f32.xlu0 %v1838
  %v1840 = vpop.xlane.xlu0 %1839
  %v1841 = vsub.f32 %v1833, %v1837
  %v1842 = vsub.f32 %v1834, %v1840
  %v1843 = vmul.f32 %v1841, 1.442695
  %v1844 = vpow.pop %v1843
  %v1845 = vmul.f32 %v1842, 1.442695
  %v1846 = vpow.pop %v1845
  %v1847 = vsel %vm175, %v1844, 0.0
  %1848 = vadd.xlane.f32.xlu0 %v1847
  %v1849 = vpop.xlane.xlu0 %1848
  %v1850 = vsel %vm175, %v1846, 0.0
  %1851 = vadd.xlane.f32.xlu0 %v1850
  %v1852 = vpop.xlane.xlu0 %1851
  %v1853 = vrcp.pop %v1849
  %v1854 = vmul.f32 %v1849, %v1853
  %v1855 = vsub.f32 1.0, %v1854
  %v1856 = vmul.f32 %v1853, %v1855
  %v1857 = vadd.f32 %v1853, %v1856
  %vm1858 = vweird.f32 %v1849
  %vm1859 = vweird.f32 %v1853
  %vm1860 = vmor %vm1858, %vm1859
  %v1861 = vsel %vm1860, %v1853, %v1857
  %v1862 = vand.u32 2147483647, %v1849
  %vm1863 = vcmp.eq.f32.partialorder %v1862, 8.507059e+37
  %v1864 = vand.u32 %v1849, 2147483648
  %v1865 = vor.u32 1.1754944e-38, %v1864
  %v1866 = vsel %vm1863, %v1865, %v1861
  %v1867 = vmul.f32 %v1844, %v1866
  %v1868 = vrcp.pop %v1852
  %v1869 = vmul.f32 %v1852, %v1868
  %v1870 = vsub.f32 1.0, %v1869
  %v1871 = vmul.f32 %v1868, %v1870
  %v1872 = vadd.f32 %v1868, %v1871
  %vm1873 = vweird.f32 %v1852
  %vm1874 = vweird.f32 %v1868
  %vm1875 = vmor %vm1873, %vm1874
  %v1876 = vsel %vm1875, %v1868, %v1872
  %v1877 = vand.u32 2147483647, %v1852
  %vm1878 = vcmp.eq.f32.partialorder %v1877, 8.507059e+37
  %v1879 = vand.u32 %v1852, 2147483648
  %v1880 = vor.u32 1.1754944e-38, %v1879
  %v1881 = vsel %vm1878, %v1880, %v1876
  %v1882 = vmul.f32 %v1846, %v1881
  %1883 = vrot.lane.b32.xlu0 %v1188, 40
  %v1884 = vpop.permute.xlu0 %1883
  %v1887 = vsel %vm175, %v1867, 0
  %1889 = vmatpush.msra.mxu0 0.0
  %1890 = vmatpush.msra.mxu0 0.0
  %1891 = vmatpush.msra.mxu0 0.0
  %1892 = vmatpush.msra.mxu0 0.0
  %1893 = vmatpush.msra.mxu0 0.0
  %1894 = vmatpush.msra.mxu0 0.0
  %1895 = vmatpush.msra.mxu0 0.0
  %1896 = vmatpush.msra.mxu0 0.0
  %1897 = vmatpush.msra.mxu0 0.0
  %1898 = vmatpush.msra.mxu0 0.0
  %1899 = vmatpush.msra.mxu0 0.0
  %1900 = vmatpush.msra.mxu0 0.0
  %1901 = vmatpush.msra.mxu0 0.0
  %1902 = vmatpush.msra.mxu0 0.0
  %1903 = vmatpush.msra.mxu0 0.0
  %1904 = vmatpush.msra.mxu0 %v1884
  %1905 = vmatmul.f32.gmra.mxu0 %v1887
  %v1906 = vpop.f32.mrf.mxu0
  %v1907 = vadd.f32 0.0, %v1906
  %1908 = vdwg.mxu0
  %1909 = vrot.lane.b32.xlu0 %v1191, 40
  %v1910 = vpop.permute.xlu0 %1909
  %v1913 = vsel %vm175, %v1882, 0
  %1915 = vmatpush.msra.mxu0 0.0
  %1916 = vmatpush.msra.mxu0 0.0
  %1917 = vmatpush.msra.mxu0 0.0
  %1918 = vmatpush.msra.mxu0 0.0
  %1919 = vmatpush.msra.mxu0 0.0
  %1920 = vmatpush.msra.mxu0 0.0
  %1921 = vmatpush.msra.mxu0 0.0
  %1922 = vmatpush.msra.mxu0 0.0
  %1923 = vmatpush.msra.mxu0 0.0
  %1924 = vmatpush.msra.mxu0 0.0
  %1925 = vmatpush.msra.mxu0 0.0
  %1926 = vmatpush.msra.mxu0 0.0
  %1927 = vmatpush.msra.mxu0 0.0
  %1928 = vmatpush.msra.mxu0 0.0
  %1929 = vmatpush.msra.mxu0 0.0
  %1930 = vmatpush.msra.mxu0 %v1910
  %1931 = vmatmul.f32.gmra.mxu0 %v1913
  %v1932 = vpop.f32.mrf.mxu0
  %v1933 = vadd.f32 0.0, %v1932
  %1934 = vdwg.mxu0
  %v1936 = vsel %vm175, %v1907, 0
  %v1939 = vsel %vm175, %v1933, 0
  %1941 = vmatpush.msra.mxu0 0.0
  %1942 = vmatpush.msra.mxu0 0.0
  %1943 = vmatpush.msra.mxu0 0.0
  %1944 = vmatpush.msra.mxu0 0.0
  %1945 = vmatpush.msra.mxu0 0.0
  %1946 = vmatpush.msra.mxu0 0.0
  %1947 = vmatpush.msra.mxu0 0.0
  %1948 = vmatpush.msra.mxu0 0.0
  %1949 = vmatpush.msra.mxu0 0.0
  %1950 = vmatpush.msra.mxu0 0.0
  %1951 = vmatpush.msra.mxu0 0.0
  %1952 = vmatpush.msra.mxu0 0.0
  %1953 = vmatpush.msra.mxu0 0.0
  %1954 = vmatpush.msra.mxu0 0.0
  %1955 = vmatpush.msra.mxu0 0.0
  %1956 = vmatpush.msra.mxu0 %v1197
  %1957 = vmatmul.f32.gmra.mxu0 %v1936
  %v1958 = vpop.f32.mrf.mxu0
  %v1959 = vadd.f32 0.0, %v1958
  %1960 = vmatmul.f32.gmra.mxu0 %v1939
  %v1961 = vpop.f32.mrf.mxu0
  %v1962 = vadd.f32 0.0, %v1961
  %1963 = vdwg.mxu0
  %v1964 = vadd.f32 %v1773, %v1959
  %v1965 = vadd.f32 %v1774, %v1962
  %v1966 = vadd.f32 %v1964, %v1152
  %v1967 = vadd.f32 %v1965, %v1153
  %s1968 = scalar_lea.vmem %s8, 1
  %v1969 = vld [vmem:[%s1968] sm:$0x1]
  %s1970 = scalar_lea.vmem %s9, 1
  %v1971 = vld [vmem:[%s1970] sm:$0x1]
  %v1972 = vsel %vm63, %v1966, 0.0
  %1973 = vadd.xlane.f32.xlu0 %v1972
  %v1974 = vpop.xlane.xlu0 %1973
  %v1975 = vsel %vm63, %v1967, 0.0
  %1976 = vadd.xlane.f32.xlu0 %v1975
  %v1977 = vpop.xlane.xlu0 %1976
  %v1978 = vmul.f32 %v1974, %v76
  %v1979 = vmul.f32 %v1977, %v76
  %v1980 = vsub.f32 %v1966, %v1978
  %v1981 = vsub.f32 %v1967, %v1979
  %v1982 = vmul.f32 %v1980, %v1980
  %v1983 = vmul.f32 %v1981, %v1981
  %v1984 = vsel %vm63, %v1982, 0.0
  %1985 = vadd.xlane.f32.xlu0 %v1984
  %v1986 = vpop.xlane.xlu0 %1985
  %v1987 = vsel %vm63, %v1983, 0.0
  %1988 = vadd.xlane.f32.xlu0 %v1987
  %v1989 = vpop.xlane.xlu0 %1988
  %v1990 = vmul.f32 %v1986, %v76
  %v1991 = vmul.f32 %v1989, %v76
  %v1992 = vadd.f32 %v1990, 1e-12
  %v1993 = vadd.f32 %v1991, 1e-12
  %v1994 = vrsqrt.pop %v1992
  %v1995 = vmul.f32 %v1994, %v1992
  %v1996 = vmul.f32 %v1995, %v1994
  %v1997 = vmul.f32 0.5, %v1996
  %v1998 = vsub.f32 1.5, %v1997
  %v1999 = vmul.f32 %v1994, %v1998
  %vm2000 = vweird.f32 %v1992
  %vm2001 = vweird.f32 %v1994
  %vm2002 = vmor %vm2000, %vm2001
  %v2003 = vsel %vm2002, %v1994, %v1999
  %v2004 = vrsqrt.pop %v1993
  %v2005 = vmul.f32 %v2004, %v1993
  %v2006 = vmul.f32 %v2005, %v2004
  %v2007 = vmul.f32 0.5, %v2006
  %v2008 = vsub.f32 1.5, %v2007
  %v2009 = vmul.f32 %v2004, %v2008
  %vm2010 = vweird.f32 %v1993
  %vm2011 = vweird.f32 %v2004
  %vm2012 = vmor %vm2010, %vm2011
  %v2013 = vsel %vm2012, %v2004, %v2009
  %v2014 = vmul.f32 %v1980, %v2003
  %v2015 = vmul.f32 %v1981, %v2013
  %v2017 = vperm.slane %v1969, 0
  %v2019 = vmul.f32 %v2014, %v2017
  %v2020 = vmul.f32 %v2015, %v2017
  %v2022 = vperm.slane %v1971, 0
  %v2024 = vadd.f32 %v2019, %v2022
  %v2025 = vadd.f32 %v2020, %v2022
  %s2026 = scalar_lea.vmem %s10, 32
  %v2027 = vld [vmem:[%s2026] sm:$0xff]
  %v2028 = vld [vmem:[%s2026 + $0x8] sm:$0xff]
  %v2029 = vld [vmem:[%s2026 + $0x10] sm:$0xff]
  %v2030 = vld [vmem:[%s2026 + $0x18] sm:$0xff]
  %s2031 = scalar_lea.vmem %s11, 1
  %v2032 = vld [vmem:[%s2031] sm:$0x1]
  %v2034 = vperm.slane %v2032, 0
  %v2037 = vsel %vm63, %v2024, 0
  %v2040 = vsel %vm63, %v2025, 0
  %2042 = vmatpush.msra.mxu0 0.0
  %2043 = vmatpush.msra.mxu0 0.0
  %2044 = vmatpush.msra.mxu0 0.0
  %2045 = vmatpush.msra.mxu0 0.0
  %2046 = vmatpush.msra.mxu0 0.0
  %2047 = vmatpush.msra.mxu0 0.0
  %2048 = vmatpush.msra.mxu0 0.0
  %2049 = vmatpush.msra.mxu0 0.0
  %2050 = vmatpush.msra.mxu0 0.0
  %2051 = vmatpush.msra.mxu0 0.0
  %2052 = vmatpush.msra.mxu0 0.0
  %2053 = vmatpush.msra.mxu0 0.0
  %2054 = vmatpush.msra.mxu0 %v2030
  %2055 = vmatpush.msra.mxu0 %v2029
  %2056 = vmatpush.msra.mxu0 %v2028
  %2057 = vmatpush.msra.mxu0 %v2027
  %2058 = vmatmul.f32.gmra.mxu0 %v2037
  %v2059 = vpop.f32.mrf.mxu0
  %v2060 = vadd.f32 %v2034, %v2059
  %2061 = vmatmul.f32.gmra.mxu0 %v2040
  %v2062 = vpop.f32.mrf.mxu0
  %v2063 = vadd.f32 %v2034, %v2062
  %2064 = vdwg.mxu0
  %v2065 = vmul.f32 %v2060, 0.5
  %v2066 = vmul.f32 %v2063, 0.5
  %v2067 = vmul.f32 %v2060, 0.044715
  %v2068 = vmul.f32 %v2063, 0.044715
  %v2069 = vmul.f32 %v2067, %v2060
  %v2070 = vmul.f32 %v2068, %v2063
  %v2071 = vmul.f32 %v2069, %v2060
  %v2072 = vmul.f32 %v2070, %v2063
  %v2073 = vadd.f32 %v2060, %v2071
  %v2074 = vadd.f32 %v2063, %v2072
  %v2075 = vmul.f32 %v2073, 0.7978846
  %v2076 = vmul.f32 %v2074, 0.7978846
  %v2077 = vtanh.pop %v2075
  %v2078 = vtanh.pop %v2076
  %v2079 = vadd.f32 %v2077, 1.0
  %v2080 = vadd.f32 %v2078, 1.0
  %v2081 = vmul.f32 %v2065, %v2079
  %v2082 = vmul.f32 %v2066, %v2080
  %s2083 = scalar_lea.vmem %s12, 64
  %v2084 = vld [vmem:[%s2083] sm:$0xff]
  %v2085 = vld [vmem:[%s2083 + $0x8] sm:$0xff]
  %v2086 = vld [vmem:[%s2083 + $0x10] sm:$0xff]
  %v2087 = vld [vmem:[%s2083 + $0x18] sm:$0xff]
  %v2088 = vld [vmem:[%s2083 + $0x20] sm:$0xff]
  %v2089 = vld [vmem:[%s2083 + $0x28] sm:$0xff]
  %v2090 = vld [vmem:[%s2083 + $0x30] sm:$0xff]
  %v2091 = vld [vmem:[%s2083 + $0x38] sm:$0xff]
  %s2092 = scalar_lea.vmem %s13, 1
  %v2093 = vld [vmem:[%s2092] sm:$0x1]
  %v2095 = vperm.slane %v2093, 0
  %v2098 = vsel %vm1066, %v2081, 0
  %v2101 = vsel %vm1066, %v2082, 0
  %2103 = vmatpush.msra.mxu0 0.0
  %2104 = vmatpush.msra.mxu0 0.0
  %2105 = vmatpush.msra.mxu0 0.0
  %2106 = vmatpush.msra.mxu0 0.0
  %2107 = vmatpush.msra.mxu0 0.0
  %2108 = vmatpush.msra.mxu0 0.0
  %2109 = vmatpush.msra.mxu0 0.0
  %2110 = vmatpush.msra.mxu0 0.0
  %2111 = vmatpush.msra.mxu0 %v2091
  %2112 = vmatpush.msra.mxu0 %v2090
  %2113 = vmatpush.msra.mxu0 %v2089
  %2114 = vmatpush.msra.mxu0 %v2088
  %2115 = vmatpush.msra.mxu0 %v2087
  %2116 = vmatpush.msra.mxu0 %v2086
  %2117 = vmatpush.msra.mxu0 %v2085
  %2118 = vmatpush.msra.mxu0 %v2084
  %2119 = vmatmul.f32.gmra.mxu0 %v2098
  %v2120 = vpop.f32.mrf.mxu0
  %v2121 = vadd.f32 %v2095, %v2120
  %2122 = vmatmul.f32.gmra.mxu0 %v2101
  %v2123 = vpop.f32.mrf.mxu0
  %v2124 = vadd.f32 %v2095, %v2123
  %2125 = vdwg.mxu0
  %v2126 = vadd.f32 %v2121, %v2024
  %v2127 = vadd.f32 %v2124, %v2025
  %s2128 = scalar_lea.vmem %s14, 1
  %v2129 = vld [vmem:[%s2128] sm:$0x1]
  %s2130 = scalar_lea.vmem %s15, 1
  %v2131 = vld [vmem:[%s2130] sm:$0x1]
  %v2132 = vsel %vm63, %v2126, 0.0
  %2133 = vadd.xlane.f32.xlu0 %v2132
  %v2134 = vpop.xlane.xlu0 %2133
  %v2135 = vsel %vm63, %v2127, 0.0
  %2136 = vadd.xlane.f32.xlu0 %v2135
  %v2137 = vpop.xlane.xlu0 %2136
  %v2138 = vmul.f32 %v2134, %v76
  %v2139 = vmul.f32 %v2137, %v76
  %v2140 = vsub.f32 %v2126, %v2138
  %v2141 = vsub.f32 %v2127, %v2139
  %v2142 = vmul.f32 %v2140, %v2140
  %v2143 = vmul.f32 %v2141, %v2141
  %v2144 = vsel %vm63, %v2142, 0.0
  %2145 = vadd.xlane.f32.xlu0 %v2144
  %v2146 = vpop.xlane.xlu0 %2145
  %v2147 = vsel %vm63, %v2143, 0.0
  %2148 = vadd.xlane.f32.xlu0 %v2147
  %v2149 = vpop.xlane.xlu0 %2148
  %v2150 = vmul.f32 %v2146, %v76
  %v2151 = vmul.f32 %v2149, %v76
  %v2152 = vadd.f32 %v2150, 1e-12
  %v2153 = vadd.f32 %v2151, 1e-12
  %v2154 = vrsqrt.pop %v2152
  %v2155 = vmul.f32 %v2154, %v2152
  %v2156 = vmul.f32 %v2155, %v2154
  %v2157 = vmul.f32 0.5, %v2156
  %v2158 = vsub.f32 1.5, %v2157
  %v2159 = vmul.f32 %v2154, %v2158
  %vm2160 = vweird.f32 %v2152
  %vm2161 = vweird.f32 %v2154
  %vm2162 = vmor %vm2160, %vm2161
  %v2163 = vsel %vm2162, %v2154, %v2159
  %v2164 = vrsqrt.pop %v2153
  %v2165 = vmul.f32 %v2164, %v2153
  %v2166 = vmul.f32 %v2165, %v2164
  %v2167 = vmul.f32 0.5, %v2166
  %v2168 = vsub.f32 1.5, %v2167
  %v2169 = vmul.f32 %v2164, %v2168
  %vm2170 = vweird.f32 %v2153
  %vm2171 = vweird.f32 %v2164
  %vm2172 = vmor %vm2170, %vm2171
  %v2173 = vsel %vm2172, %v2164, %v2169
  %v2174 = vmul.f32 %v2140, %v2163
  %v2175 = vmul.f32 %v2141, %v2173
  %v2177 = vperm.slane %v2129, 0
  %v2179 = vmul.f32 %v2174, %v2177
  %v2180 = vmul.f32 %v2175, %v2177
  %v2182 = vperm.slane %v2131, 0
  %v2184 = vadd.f32 %v2179, %v2182
  %v2185 = vadd.f32 %v2180, %v2182
  %v2186 = vld [vmem:[%s16] sm:$0xff]
  %v2187 = vld [vmem:[%s16 + $0x8] sm:$0xff]
  %v2188 = vld [vmem:[%s16 + $0x10] sm:$0xff]
  %v2189 = vld [vmem:[%s16 + $0x18] sm:$0xff]
  %v2190 = vld [vmem:[%s17] sm:$0x1]
  %v2192 = vperm.slane %v2190, 0
  %v2195 = vsel %vm63, %v2184, 0
  %v2198 = vsel %vm63, %v2185, 0
  %2200 = vmatpush.msra.mxu0 0.0
  %2201 = vmatpush.msra.mxu0 0.0
  %2202 = vmatpush.msra.mxu0 0.0
  %2203 = vmatpush.msra.mxu0 0.0
  %2204 = vmatpush.msra.mxu0 0.0
  %2205 = vmatpush.msra.mxu0 0.0
  %2206 = vmatpush.msra.mxu0 0.0
  %2207 = vmatpush.msra.mxu0 0.0
  %2208 = vmatpush.msra.mxu0 0.0
  %2209 = vmatpush.msra.mxu0 0.0
  %2210 = vmatpush.msra.mxu0 0.0
  %2211 = vmatpush.msra.mxu0 0.0
  %2212 = vmatpush.msra.mxu0 %v2189
  %2213 = vmatpush.msra.mxu0 %v2188
  %2214 = vmatpush.msra.mxu0 %v2187
  %2215 = vmatpush.msra.mxu0 %v2186
  %2216 = vmatmul.f32.gmra.mxu0 %v2195
  %v2217 = vpop.f32.mrf.mxu0
  %v2218 = vadd.f32 %v2192, %v2217
  %2219 = vmatmul.f32.gmra.mxu0 %v2198
  %v2220 = vpop.f32.mrf.mxu0
  %v2221 = vadd.f32 %v2192, %v2220
  %2222 = vdwg.mxu0
  %2223 = vst [vmem:[%s18] sm:$0xff] %v2218
  %2224 = vst [vmem:[%s18 + $0x8] sm:$0xff] %v2221
  // Predicated region
  $region74: #{_lambda_.1} parent=0 // pred_check
    _
  $region75: #{_lambda_.1} parent=0 // pred_check_branch
    %2226 = sbr.rel (0) target = $region77
  $region76: #{_lambda_.1} parent=0 // pred_region
    _
  $region77: #{_lambda_.1} parent=0 // pred_fallthru
    _
  // Predicated region
  $region78: #{_lambda_.1} parent=0 // pred_check
    _
  $region79: #{_lambda_.1} parent=0 // pred_check_branch
    %2228 = sbr.rel (0) target = $region81
  $region80: #{_lambda_.1} parent=0 // pred_region
    _
  $region81: #{_lambda_.1} parent=0 // pred_fallthru
    _

</llo_original>
